<compile_context>
chip_gen: v7x
topology: tpu7x:2x2x1
jax: 0.10.0
libtpu: 0.0.40
codegen_flags: <defaults>
</compile_context>

<pallas_src>
import jax
import jax.numpy as jnp
from jax.experimental import pallas as pl
from jax.experimental.pallas import tpu as pltpu

BLOCK = 32  # fixed by the PyTorch module


def _make_kernel(CB):
    def dppix_kernel(x_ref, noise_ref, bhs_ref, bwT_ref, bhT_ref, bw_ref, o_ref):
        # x_ref:     (CB, TH, W)   packed channel planes (one H tile)
        # noise_ref: (CB, 32, 32)  2 * Laplace(0, 0.1) noise per plane
        # bhs_ref:   (32, TH)      Bh[:, h-tile] / (HB*WB)  (mean scaling folded in)
        # bwT_ref:   (W, 32)       Bw^T
        # bhT_ref:   (TH, 32)      Bh[:, h-tile]^T
        # bw_ref:    (32, W)       Bw
        # o_ref:     (CB, TH, W)
        bhs = bhs_ref[...]
        bwT = bwT_ref[...]
        bhT = bhT_ref[...]
        bw = bw_ref[...]
        hi = jax.lax.Precision.HIGHEST

        for c in range(CB):  # CB <= 8, static -> small unroll
            x = x_ref[c].astype(jnp.float32)                                    # (TH, W)

            # block mean of x, lane-dense ordering: (32,TH)@(TH,W) then (32,W)@(W,32)
            rowm = jnp.dot(bhs, x, preferred_element_type=jnp.float32,
                           precision=hi)                                        # (32, W)
            mean = jnp.dot(rowm, bwT, preferred_element_type=jnp.float32,
                           precision=hi)                                        # (32, 32)

            # folded epilogue: v = clip(mean + 2*noise, -1, 1)
            # (rows outside this H tile are zero in `mean`; they are killed by
            #  the zero columns of bhT below, so adding noise to them is harmless)
            v = jnp.clip(mean + noise_ref[c], -1.0, 1.0)                        # (32, 32)

            # broadcast back to the tile: (TH, W) = Bh_tile^T @ v @ Bw
            t2 = jnp.dot(v, bw, preferred_element_type=jnp.float32,
                         precision=hi)                                          # (32, W)
            out = jnp.dot(bhT, t2, preferred_element_type=jnp.float32,
                          precision=hi)                                         # (TH, W)
            o_ref[c] = out.astype(o_ref.dtype)

    return dppix_kernel


def _vmem_budgets():
    """Generation-aware (block-bytes target, vmem limit)."""
    try:
        vmem_cap = int(pltpu.get_tpu_info().vmem_capacity_bytes)
    except Exception:  # fall back to 128 MiB parts (v5e/v6e)
        vmem_cap = 128 * 1024 * 1024
    target_block_bytes = max(1 << 20, min(2 << 20, vmem_cap // 48))
    vmem_limit = int(min(vmem_cap // 2, 64 << 20))
    return target_block_bytes, vmem_limit


def _choose_th(H, HB, W, target_block_bytes):
    """H-tile rows: multiple of HB (block rows stay tile-local), and either the
    full H or a multiple of 128 (lane/BlockSpec constraint on the Bh slices)."""
    row_bytes = W * 4
    target_rows = max(HB, target_block_bytes // row_bytes)
    cands = [t for t in range(HB, H + 1, HB)
             if H % t == 0 and (t == H or t % 128 == 0)]
    ok = [t for t in cands if t <= target_rows]
    return max(ok) if ok else min(cands)


def _choose_cb(BC, n_h_tiles, tile_bytes, target_block_bytes, max_cb=8):
    """Channels per grid step: ~1-2 MiB blocks, >=4 total grid steps if possible,
    hard cap so the in-kernel channel unroll stays small."""
    cap = max(1, min(max_cb, target_block_bytes // max(tile_bytes, 1), BC))
    divs = [d for d in range(1, BC + 1) if BC % d == 0 and d <= cap]
    for min_steps in (4, 2):
        pref = [d for d in divs if (BC // d) * n_h_tiles >= min_steps]
        if pref:
            return max(pref)
    return max(divs)


def dppix_forward(x, key):
    """x: (B, C, H, W) float32 (NCHW, same as PyTorch). Returns (B, C, H, W)."""
    B, C, H, W = x.shape
    # Module contract: H, W multiples of 32. (W a multiple of 128 keeps stores
    # lane-dense; the demo uses W=128.)
    assert H % BLOCK == 0 and W % BLOCK == 0, "H, W must be multiples of 32"
    BC = B * C
    HB, WB = H // BLOCK, W // BLOCK

    target_block_bytes, vmem_limit = _vmem_budgets()

    TH = _choose_th(H, HB, W, target_block_bytes)
    n_h = H // TH
    tile_bytes = TH * W * 4
    CB = _choose_cb(BC, n_h, tile_bytes, target_block_bytes)
    grid = (BC // CB, n_h)

    # Laplace(0, 0.1) noise, pre-scaled by 2 for the folded epilogue.
    noise2 = (jax.random.laplace(key, (BC, BLOCK, BLOCK), dtype=jnp.float32) * 0.1) * 2.0

    x_flat = x.reshape(BC, H, W)

    # Constant selection matrices, hoisted out of the kernel.
    # Image row r maps to block row r // HB (32 is the OUTER reshape dim).
    blk = jnp.arange(BLOCK, dtype=jnp.int32)
    Bh = (jnp.arange(H, dtype=jnp.int32)[None, :] // HB == blk[:, None]).astype(jnp.float32)  # (32, H)
    Bw = (jnp.arange(W, dtype=jnp.int32)[None, :] // WB == blk[:, None]).astype(jnp.float32)  # (32, W)
    Bh_s = Bh / float(HB * WB)       # (32, H), mean scaling folded in
    BwT = Bw.T                       # (W, 32)
    BhT = Bh.T                       # (H, 32)

    kernel = _make_kernel(CB)
    out_flat = pl.pallas_call(
        kernel,
        out_shape=jax.ShapeDtypeStruct((BC, H, W), x.dtype),
        grid_spec=pltpu.PrefetchScalarGridSpec(
            num_scalar_prefetch=0,
            grid=grid,
            in_specs=[
                pl.BlockSpec((CB, TH, W), lambda g, t: (g, t, 0)),          # x
                pl.BlockSpec((CB, BLOCK, BLOCK), lambda g, t: (g, 0, 0)),   # noise
                pl.BlockSpec((BLOCK, TH), lambda g, t: (0, t)),             # Bh_s slice
                pl.BlockSpec((W, BLOCK), lambda g, t: (0, 0)),              # Bw^T
                pl.BlockSpec((TH, BLOCK), lambda g, t: (t, 0)),             # Bh^T slice
                pl.BlockSpec((BLOCK, W), lambda g, t: (0, 0)),              # Bw
            ],
            out_specs=pl.BlockSpec((CB, TH, W), lambda g, t: (g, t, 0)),
        ),
        compiler_params=pltpu.CompilerParams(
            dimension_semantics=("parallel", "parallel"),
            vmem_limit_bytes=vmem_limit,
        ),
    )(x_flat, noise2, Bh_s, BwT, BhT, Bw)

    return out_flat.reshape(B, C, H, W)


def _reference(x, noise):
    """Pure-JAX reference mirroring the PyTorch forward, for a sanity check."""
    B, C, H, W = x.shape
    HB, WB = H // BLOCK, W // BLOCK
    y = x * 0.5 + 0.5
    y = y.reshape(B, C, BLOCK, HB, BLOCK, WB).mean(axis=(3, 5))
    y = y + noise.reshape(B, C, BLOCK, BLOCK)
    y = jnp.clip(y, 0.0, 1.0)
    y = jnp.broadcast_to(y[:, :, :, None, :, None], (B, C, BLOCK, HB, BLOCK, WB))
    y = y.reshape(B, C, H, W)
    return (y - 0.5) / 0.5


if __name__ == "__main__":
    key = jax.random.PRNGKey(0)
    kx, kn = jax.random.split(key)

    # H, W must be multiples of block_size=32; W=128 keeps stores lane-dense.
    B, C, H, W = 2, 4, 64, 128
    x = jax.random.normal(kx, (B, C, H, W), dtype=jnp.float32)

    out = dppix_forward(x, kn)
    out = jax.block_until_ready(out)

    # verify against pure-JAX reference using the same noise draw
    noise = jax.random.laplace(kn, (B * C, BLOCK, BLOCK), dtype=jnp.float32) * 0.1
    ref = _reference(x, noise)
    assert out.shape == (B, C, H, W)
    assert float(jnp.max(jnp.abs(out - ref))) < 1e-4, "mismatch vs reference"

    print("KERNEL_OK")
</pallas_src>

<mosaic_0001>
module attributes {stable_mosaic.version = 11 : i64} {
  func.func @dppix_kernel(%arg0: i32, %arg1: i32, %arg2: memref<2x64x128xf32, #tpu.memory_space<vmem>>, %arg3: memref<2x32x32xf32, #tpu.memory_space<vmem>>, %arg4: memref<32x64xf32, #tpu.memory_space<vmem>>, %arg5: memref<128x32xf32, #tpu.memory_space<vmem>>, %arg6: memref<64x32xf32, #tpu.memory_space<vmem>>, %arg7: memref<32x128xf32, #tpu.memory_space<vmem>>, %arg8: memref<2x64x128xf32, #tpu.memory_space<vmem>>) attributes {dimension_semantics = [#tpu.dimension_semantics<parallel>, #tpu.dimension_semantics<parallel>], iteration_bounds = array<i64: 4, 1>, scalar_prefetch = 0 : i64, scratch_operands = 0 : i64, tpu.core_type = #tpu.core_type<tc>, window_params = [{transform_indices = @transform_0, window_bounds = array<i64: 2, 64, 128>}, {transform_indices = @transform_1, window_bounds = array<i64: 2, 32, 32>}, {transform_indices = @transform_2, window_bounds = array<i64: 32, 64>}, {pipeline_mode = #tpu.pipeline_mode<synchronous>, transform_indices = @transform_3, window_bounds = array<i64: 128, 32>}, {transform_indices = @transform_4, window_bounds = array<i64: 64, 32>}, {pipeline_mode = #tpu.pipeline_mode<synchronous>, transform_indices = @transform_5, window_bounds = array<i64: 32, 128>}, {transform_indices = @transform_6, window_bounds = array<i64: 2, 64, 128>}]} {
    %c0 = arith.constant 0 : index
    %c0_0 = arith.constant 0 : index
    %0 = vector.load %arg4[%c0, %c0_0] : memref<32x64xf32, #tpu.memory_space<vmem>>, vector<32x64xf32>
    %c0_1 = arith.constant 0 : index
    %c0_2 = arith.constant 0 : index
    %1 = vector.load %arg5[%c0_1, %c0_2] : memref<128x32xf32, #tpu.memory_space<vmem>>, vector<128x32xf32>
    %c0_3 = arith.constant 0 : index
    %c0_4 = arith.constant 0 : index
    %2 = vector.load %arg6[%c0_3, %c0_4] : memref<64x32xf32, #tpu.memory_space<vmem>>, vector<64x32xf32>
    %c0_5 = arith.constant 0 : index
    %c0_6 = arith.constant 0 : index
    %3 = vector.load %arg7[%c0_5, %c0_6] : memref<32x128xf32, #tpu.memory_space<vmem>>, vector<32x128xf32>
    %c0_7 = arith.constant 0 : index
    %c0_8 = arith.constant 0 : index
    %c0_9 = arith.constant 0 : index
    %4 = vector.load %arg2[%c0_7, %c0_8, %c0_9] : memref<2x64x128xf32, #tpu.memory_space<vmem>>, vector<1x64x128xf32>
    %5 = vector.shape_cast %4 : vector<1x64x128xf32> to vector<64x128xf32>
    %cst = arith.constant dense<0.000000e+00> : vector<32x128xf32>
    %6 = tpu.matmul %0, %5, %cst {dimension_numbers = #tpu.dot_dimension_numbers<[1], [0], [0], [1], [0, 0, 1, 1], [], []>, precision = #tpu.contract_precision<fp32>} : vector<32x64xf32>, vector<64x128xf32>, vector<32x128xf32> -> vector<32x128xf32>
    %cst_10 = arith.constant dense<0.000000e+00> : vector<32x32xf32>
    %7 = tpu.matmul %6, %1, %cst_10 {dimension_numbers = #tpu.dot_dimension_numbers<[1], [0], [0], [1], [0, 0, 1, 1], [], []>, precision = #tpu.contract_precision<fp32>} : vector<32x128xf32>, vector<128x32xf32>, vector<32x32xf32> -> vector<32x32xf32>
    %c0_11 = arith.constant 0 : index
    %c0_12 = arith.constant 0 : index
    %c0_13 = arith.constant 0 : index
    %8 = vector.load %arg3[%c0_11, %c0_12, %c0_13] : memref<2x32x32xf32, #tpu.memory_space<vmem>>, vector<1x32x32xf32>
    %9 = vector.shape_cast %8 : vector<1x32x32xf32> to vector<32x32xf32>
    %10 = arith.addf %7, %9 : vector<32x32xf32>
    %cst_14 = arith.constant -1.000000e+00 : f32
    %cst_15 = arith.constant 1.000000e+00 : f32
    %11 = vector.broadcast %cst_14 : f32 to vector<32x32xf32>
    %12 = arith.maximumf %11, %10 : vector<32x32xf32>
    %13 = vector.broadcast %cst_15 : f32 to vector<32x32xf32>
    %14 = arith.minimumf %13, %12 : vector<32x32xf32>
    %cst_16 = arith.constant dense<0.000000e+00> : vector<32x128xf32>
    %15 = tpu.matmul %14, %3, %cst_16 {dimension_numbers = #tpu.dot_dimension_numbers<[1], [0], [0], [1], [0, 0, 1, 1], [], []>, precision = #tpu.contract_precision<fp32>} : vector<32x32xf32>, vector<32x128xf32>, vector<32x128xf32> -> vector<32x128xf32>
    %cst_17 = arith.constant dense<0.000000e+00> : vector<64x128xf32>
    %16 = tpu.matmul %2, %15, %cst_17 {dimension_numbers = #tpu.dot_dimension_numbers<[1], [0], [0], [1], [0, 0, 1, 1], [], []>, precision = #tpu.contract_precision<fp32>} : vector<64x32xf32>, vector<32x128xf32>, vector<64x128xf32> -> vector<64x128xf32>
    %c0_18 = arith.constant 0 : index
    %c0_19 = arith.constant 0 : index
    %c0_20 = arith.constant 0 : index
    %17 = vector.load %arg8[%c0_18, %c0_19, %c0_20] : memref<2x64x128xf32, #tpu.memory_space<vmem>>, vector<1x64x128xf32>
    %18 = vector.shape_cast %17 : vector<1x64x128xf32> to vector<64x128xf32>
    %19 = vector.shape_cast %16 : vector<64x128xf32> to vector<1x64x128xf32>
    tpu.vector_store %arg8[%c0_18, %c0_19, %c0_20], %19 {strides = array<i32>} : memref<2x64x128xf32, #tpu.memory_space<vmem>>, vector<1x64x128xf32>,
    %c1 = arith.constant 1 : index
    %c0_21 = arith.constant 0 : index
    %c0_22 = arith.constant 0 : index
    %20 = vector.load %arg2[%c1, %c0_21, %c0_22] : memref<2x64x128xf32, #tpu.memory_space<vmem>>, vector<1x64x128xf32>
    %21 = vector.shape_cast %20 : vector<1x64x128xf32> to vector<64x128xf32>
    %cst_23 = arith.constant dense<0.000000e+00> : vector<32x128xf32>
    %22 = tpu.matmul %0, %21, %cst_23 {dimension_numbers = #tpu.dot_dimension_numbers<[1], [0], [0], [1], [0, 0, 1, 1], [], []>, precision = #tpu.contract_precision<fp32>} : vector<32x64xf32>, vector<64x128xf32>, vector<32x128xf32> -> vector<32x128xf32>
    %cst_24 = arith.constant dense<0.000000e+00> : vector<32x32xf32>
    %23 = tpu.matmul %22, %1, %cst_24 {dimension_numbers = #tpu.dot_dimension_numbers<[1], [0], [0], [1], [0, 0, 1, 1], [], []>, precision = #tpu.contract_precision<fp32>} : vector<32x128xf32>, vector<128x32xf32>, vector<32x32xf32> -> vector<32x32xf32>
    %c1_25 = arith.constant 1 : index
    %c0_26 = arith.constant 0 : index
    %c0_27 = arith.constant 0 : index
    %24 = vector.load %arg3[%c1_25, %c0_26, %c0_27] : memref<2x32x32xf32, #tpu.memory_space<vmem>>, vector<1x32x32xf32>
    %25 = vector.shape_cast %24 : vector<1x32x32xf32> to vector<32x32xf32>
    %26 = arith.addf %23, %25 : vector<32x32xf32>
    %cst_28 = arith.constant -1.000000e+00 : f32
    %cst_29 = arith.constant 1.000000e+00 : f32
    %27 = vector.broadcast %cst_28 : f32 to vector<32x32xf32>
    %28 = arith.maximumf %27, %26 : vector<32x32xf32>
    %29 = vector.broadcast %cst_29 : f32 to vector<32x32xf32>
    %30 = arith.minimumf %29, %28 : vector<32x32xf32>
    %cst_30 = arith.constant dense<0.000000e+00> : vector<32x128xf32>
    %31 = tpu.matmul %30, %3, %cst_30 {dimension_numbers = #tpu.dot_dimension_numbers<[1], [0], [0], [1], [0, 0, 1, 1], [], []>, precision = #tpu.contract_precision<fp32>} : vector<32x32xf32>, vector<32x128xf32>, vector<32x128xf32> -> vector<32x128xf32>
    %cst_31 = arith.constant dense<0.000000e+00> : vector<64x128xf32>
    %32 = tpu.matmul %2, %31, %cst_31 {dimension_numbers = #tpu.dot_dimension_numbers<[1], [0], [0], [1], [0, 0, 1, 1], [], []>, precision = #tpu.contract_precision<fp32>} : vector<64x32xf32>, vector<32x128xf32>, vector<64x128xf32> -> vector<64x128xf32>
    %c1_32 = arith.constant 1 : index
    %c0_33 = arith.constant 0 : index
    %c0_34 = arith.constant 0 : index
    %33 = vector.load %arg8[%c1_32, %c0_33, %c0_34] : memref<2x64x128xf32, #tpu.memory_space<vmem>>, vector<1x64x128xf32>
    %34 = vector.shape_cast %33 : vector<1x64x128xf32> to vector<64x128xf32>
    %35 = vector.shape_cast %32 : vector<64x128xf32> to vector<1x64x128xf32>
    tpu.vector_store %arg8[%c1_32, %c0_33, %c0_34], %35 {strides = array<i32>} : memref<2x64x128xf32, #tpu.memory_space<vmem>>, vector<1x64x128xf32>,
    return
  }
  func.func @transform_0(%arg0: i32, %arg1: i32) -> (i32, i32, i32) {
    %c0_i32 = arith.constant 0 : i32
    %c0_i32_0 = arith.constant 0 : i32
    return %arg0, %arg1, %c0_i32 : i32, i32, i32
  }
  func.func @transform_1(%arg0: i32, %arg1: i32) -> (i32, i32, i32) {
    %c0_i32 = arith.constant 0 : i32
    %c0_i32_0 = arith.constant 0 : i32
    %c0_i32_1 = arith.constant 0 : i32
    return %arg0, %c0_i32, %c0_i32_0 : i32, i32, i32
  }
  func.func @transform_2(%arg0: i32, %arg1: i32) -> (i32, i32) {
    %c0_i32 = arith.constant 0 : i32
    %c0_i32_0 = arith.constant 0 : i32
    return %c0_i32, %arg1 : i32, i32
  }
  func.func @transform_3(%arg0: i32, %arg1: i32) -> (i32, i32) {
    %c0_i32 = arith.constant 0 : i32
    %c0_i32_0 = arith.constant 0 : i32
    %c0_i32_1 = arith.constant 0 : i32
    return %c0_i32, %c0_i32_0 : i32, i32
  }
  func.func @transform_4(%arg0: i32, %arg1: i32) -> (i32, i32) {
    %c0_i32 = arith.constant 0 : i32
    %c0_i32_0 = arith.constant 0 : i32
    return %arg1, %c0_i32 : i32, i32
  }
  func.func @transform_5(%arg0: i32, %arg1: i32) -> (i32, i32) {
    %c0_i32 = arith.constant 0 : i32
    %c0_i32_0 = arith.constant 0 : i32
    %c0_i32_1 = arith.constant 0 : i32
    return %c0_i32, %c0_i32_0 : i32, i32
  }
  func.func @transform_6(%arg0: i32, %arg1: i32) -> (i32, i32, i32) {
    %c0_i32 = arith.constant 0 : i32
    %c0_i32_0 = arith.constant 0 : i32
    return %arg0, %arg1, %c0_i32 : i32, i32, i32
  }
}

</mosaic_0001>

<llo_original>
// kernel: tpu_custom_call.1
$region0: #{tpu_custom_call.1}
  #allocation0 [shape = 'u32[]', space=smem, size = 0x4, offset = 0x4, fixed_abs, tag = 'smem constant byte address 0x4 - core index']
  #allocation1 [shape = 'u32[144,128]{1,0:T(1,128)}', space=vmem, size = 0x12000, scoped, tag = 'internal scratch']
  %s0 = inlined_call_operand.hbm [shape: f32[8,64,128], index: 0, kind: input, shape index: {}]
  %s1 = inlined_call_operand.hbm [shape: f32[8,32,32], index: 1, kind: input, shape index: {}]
  %s2 = inlined_call_operand.hbm [shape: f32[32,64], index: 2, kind: input, shape index: {}]
  %s3 = inlined_call_operand.hbm [shape: f32[128,32], index: 3, kind: input, shape index: {}]
  %s4 = inlined_call_operand.hbm [shape: f32[64,32], index: 4, kind: input, shape index: {}]
  %s5 = inlined_call_operand.hbm [shape: f32[32,128], index: 5, kind: input, shape index: {}]
  %s6 = inlined_call_operand.hbm [shape: f32[8,64,128], index: 6, kind: output, shape index: {}]
  %s7 = sld [smem:[#allocation0]]
  $region81: #{tpu_custom_call.1} parent=0
    _
  %s9 = ssub.s32 1, %s7
  %s10 = scalar_select 0, %s9, %s7
  $region1: #{tpu_custom_call.1} parent=0
    #allocation2 [shape = 'u8[131072]{0}', space=vmem, size = 0x20000, scoped, tag = 'input window, operand 0']
    #allocation3 [shape = 's32[2]{0}', space=sflag, size = 0x8, scoped, tag = 'scoped memory for tpu_custom_call.1']
    #allocation4 [shape = 's32[2]{0}', space=sflag, size = 0x8, scoped, tag = 'scoped memory for tpu_custom_call.1']
    #allocation5 [shape = 'u8[65536]{0}', space=vmem, size = 0x10000, scoped, tag = 'input window, operand 1']
    #allocation6 [shape = 's32[2]{0}', space=sflag, size = 0x8, scoped, tag = 'scoped memory for tpu_custom_call.1']
    #allocation7 [shape = 'u8[16384]{0}', space=vmem, size = 0x4000, scoped, tag = 'input window, operand 2, single buffered']
    #allocation8 [shape = 'u8[65536]{0}', space=vmem, size = 0x10000, scoped, tag = 'input window, operand 3, single buffered']
    #allocation9 [shape = 's32[1]{0}', space=sflag, size = 0x4, scoped, tag = 'scoped memory for tpu_custom_call.1']
    #allocation10 [shape = 'u8[32768]{0}', space=vmem, size = 0x8000, scoped, tag = 'input window, operand 4, single buffered']
    #allocation11 [shape = 'u8[16384]{0}', space=vmem, size = 0x4000, scoped, tag = 'input window, operand 5, single buffered']
    #allocation12 [shape = 's32[1]{0}', space=sflag, size = 0x4, scoped, tag = 'scoped memory for tpu_custom_call.1']
    #allocation13 [shape = 'u8[131072]{0}', space=vmem, size = 0x20000, scoped, tag = 'output window, operand 0']
    %11 = vsyncpa [#allocation3], 0
    %s12 = scalar_lea.sflag [#allocation3], 1
    %13 = vsyncpa %s12, 0
    %14 = vsyncpa [#allocation6], 0
    %s15 = scalar_lea.sflag [#allocation6], 1
    %16 = vsyncpa %s15, 0
    %17 = vsyncpa [#allocation9], 0
    %18 = vsyncpa [#allocation12], 0
    %19 = vsyncpa [#allocation4], 0
    %s20 = scalar_lea.sflag [#allocation4], 1
    %21 = vsyncpa %s20, 0
    loop: start=0, step=1, limit=6
    $region2: #{tpu_custom_call.1} parent=1 // loop_pre_header
      _
    $region3: #{tpu_custom_call.1} parent=1 // loop_header
      %s23 = sphi 0, %s27
      %p24 = scmp.ge.s32.totalorder %s23, 6
      %s30 = sphi 0, %s42
      %s31 = sphi 0, %s38
      %s32 = sphi 0, %s30
      %s33 = sphi 0, %s31
      %s34 = sphi 0, %s32
      %s35 = sphi 0, %s33
      %s47 = sphi 0, %s49
      %s50 = sphi 0, %s47
      %s51 = sphi 0, %s50
      %s67 = sphi 0, %s51
      %s73 = sphi 0, %s75
      %s76 = sphi 0, %s73
      %s77 = sphi 0, %s76
      %s93 = sphi 0, %s77
      %s99 = sphi 0, %s101
      %s102 = sphi 0, %s99
      %s103 = sphi 0, %s102
      %s119 = sphi 0, %s103
      %s123 = sphi 0, %s123
      %s125 = sphi 0, %s123
      %s126 = sphi 0, %s125
      %s140 = sphi 0, %s126
      %s146 = sphi 0, %s148
      %s149 = sphi 0, %s146
      %s150 = sphi 0, %s149
      %s166 = sphi 0, %s150
      %s170 = sphi 0, %s170
      %s172 = sphi 0, %s170
      %s173 = sphi 0, %s172
      %s187 = sphi 0, %s173
      %s195 = sphi 0, %s197
      %s198 = sphi 0, %s195
      %s199 = sphi 0, %s198
      %s215 = sphi 0, %s199
    $region4: #{tpu_custom_call.1} parent=1 // loop_header_branch
      %26 = sbr.rel (%p24) target = $region8
    $region5: #{tpu_custom_call.1} parent=1 // loop_body
      %s28 = ssub.s32 %s23, 1
      %s29 = ssub.s32 %s23, 2
      %s36 = sadd.s32 1, %s31
      %p37 = scmp.ge.s32.totalorder %s36, 1
      %s38 = scalar_select %p37, 0, %s36
      %s39 = sadd.s32 1, %s30
      %s40 = scalar_select %p37, %s39, %s30
      %p41 = scmp.ge.s32.totalorder %s40, 4
      %s42 = scalar_select %p41, 0, %s40
      %s43 = ssub.s32 %s30, %s42
      %s44 = ssub.s32 %s31, %s38
      %s45 = sor.u32 %s43, %s44
      %p46 = scmp.eq.s32.totalorder %s45, 0
      %s48 = sadd.s32 %s47, 1
      %s49 = scalar_select %p46, %s47, %s48
      %p52 = pneg %p46
      %p53 = scmp.eq.s32.totalorder %s23, 3
      %p54 = por %p52, %p53
      %p55 = scmp.ne.s32.totalorder %s47, %s50
      %p56 = scmp.eq.s32.totalorder %s23, 0
      %p57 = por %p55, %p56
      %p58 = scmp.ne.s32.totalorder %s47, %s50
      %p59 = scmp.eq.s32.totalorder %s28, 3
      %p60 = por %p58, %p59
      %p61 = scmp.ne.s32.totalorder %s50, %s51
      %p62 = scmp.eq.s32.totalorder %s28, 0
      %p63 = por %p61, %p62
      %p64 = scmp.ne.s32.totalorder %s50, %s51
      %p65 = scmp.eq.s32.totalorder %s29, 3
      %p66 = por %p64, %p65
      %p68 = scmp.ne.s32.totalorder %s51, %s67
      %p69 = scmp.eq.s32.totalorder %s29, 0
      %p70 = por %p68, %p69
      %s71 = ssub.s32 %s30, %s42
      %p72 = scmp.eq.s32.totalorder %s71, 0
      %s74 = sadd.s32 %s73, 1
      %s75 = scalar_select %p72, %s73, %s74
      %p78 = pneg %p72
      %p79 = scmp.eq.s32.totalorder %s23, 3
      %p80 = por %p78, %p79
      %p81 = scmp.ne.s32.totalorder %s73, %s76
      %p82 = scmp.eq.s32.totalorder %s23, 0
      %p83 = por %p81, %p82
      %p84 = scmp.ne.s32.totalorder %s73, %s76
      %p85 = scmp.eq.s32.totalorder %s28, 3
      %p86 = por %p84, %p85
      %p87 = scmp.ne.s32.totalorder %s76, %s77
      %p88 = scmp.eq.s32.totalorder %s28, 0
      %p89 = por %p87, %p88
      %p90 = scmp.ne.s32.totalorder %s76, %s77
      %p91 = scmp.eq.s32.totalorder %s29, 3
      %p92 = por %p90, %p91
      %p94 = scmp.ne.s32.totalorder %s77, %s93
      %p95 = scmp.eq.s32.totalorder %s29, 0
      %p96 = por %p94, %p95
      %s97 = ssub.s32 %s31, %s38
      %p98 = scmp.eq.s32.totalorder %s97, 0
      %s100 = sadd.s32 %s99, 1
      %s101 = scalar_select %p98, %s99, %s100
      %p104 = pneg %p98
      %p105 = scmp.eq.s32.totalorder %s23, 3
      %p106 = por %p104, %p105
      %p107 = scmp.ne.s32.totalorder %s99, %s102
      %p108 = scmp.eq.s32.totalorder %s23, 0
      %p109 = por %p107, %p108
      %p110 = scmp.ne.s32.totalorder %s99, %s102
      %p111 = scmp.eq.s32.totalorder %s28, 3
      %p112 = por %p110, %p111
      %p113 = scmp.ne.s32.totalorder %s102, %s103
      %p114 = scmp.eq.s32.totalorder %s28, 0
      %p115 = por %p113, %p114
      %p116 = scmp.ne.s32.totalorder %s102, %s103
      %p117 = scmp.eq.s32.totalorder %s29, 3
      %p118 = por %p116, %p117
      %p120 = scmp.ne.s32.totalorder %s103, %s119
      %p121 = scmp.eq.s32.totalorder %s29, 0
      %p122 = por %p120, %p121
      %s124 = sadd.s32 %s123, 1
      %p127 = scmp.eq.s32.totalorder %s23, 3
      %p128 = scmp.ne.s32.totalorder %s123, %s125
      %p129 = scmp.eq.s32.totalorder %s23, 0
      %p130 = por %p128, %p129
      %p131 = scmp.ne.s32.totalorder %s123, %s125
      %p132 = scmp.eq.s32.totalorder %s28, 3
      %p133 = por %p131, %p132
      %p134 = scmp.ne.s32.totalorder %s125, %s126
      %p135 = scmp.eq.s32.totalorder %s28, 0
      %p136 = por %p134, %p135
      %p137 = scmp.ne.s32.totalorder %s125, %s126
      %p138 = scmp.eq.s32.totalorder %s29, 3
      %p139 = por %p137, %p138
      %p141 = scmp.ne.s32.totalorder %s126, %s140
      %p142 = scmp.eq.s32.totalorder %s29, 0
      %p143 = por %p141, %p142
      %s144 = ssub.s32 %s31, %s38
      %p145 = scmp.eq.s32.totalorder %s144, 0
      %s147 = sadd.s32 %s146, 1
      %s148 = scalar_select %p145, %s146, %s147
      %p151 = pneg %p145
      %p152 = scmp.eq.s32.totalorder %s23, 3
      %p153 = por %p151, %p152
      %p154 = scmp.ne.s32.totalorder %s146, %s149
      %p155 = scmp.eq.s32.totalorder %s23, 0
      %p156 = por %p154, %p155
      %p157 = scmp.ne.s32.totalorder %s146, %s149
      %p158 = scmp.eq.s32.totalorder %s28, 3
      %p159 = por %p157, %p158
      %p160 = scmp.ne.s32.totalorder %s149, %s150
      %p161 = scmp.eq.s32.totalorder %s28, 0
      %p162 = por %p160, %p161
      %p163 = scmp.ne.s32.totalorder %s149, %s150
      %p164 = scmp.eq.s32.totalorder %s29, 3
      %p165 = por %p163, %p164
      %p167 = scmp.ne.s32.totalorder %s150, %s166
      %p168 = scmp.eq.s32.totalorder %s29, 0
      %p169 = por %p167, %p168
      %s171 = sadd.s32 %s170, 1
      %p174 = scmp.eq.s32.totalorder %s23, 3
      %p175 = scmp.ne.s32.totalorder %s170, %s172
      %p176 = scmp.eq.s32.totalorder %s23, 0
      %p177 = por %p175, %p176
      %p178 = scmp.ne.s32.totalorder %s170, %s172
      %p179 = scmp.eq.s32.totalorder %s28, 3
      %p180 = por %p178, %p179
      %p181 = scmp.ne.s32.totalorder %s172, %s173
      %p182 = scmp.eq.s32.totalorder %s28, 0
      %p183 = por %p181, %p182
      %p184 = scmp.ne.s32.totalorder %s172, %s173
      %p185 = scmp.eq.s32.totalorder %s29, 3
      %p186 = por %p184, %p185
      %p188 = scmp.ne.s32.totalorder %s173, %s187
      %p189 = scmp.eq.s32.totalorder %s29, 0
      %p190 = por %p188, %p189
      %s191 = ssub.s32 %s30, %s42
      %s192 = ssub.s32 %s31, %s38
      %s193 = sor.u32 %s191, %s192
      %p194 = scmp.eq.s32.totalorder %s193, 0
      %s196 = sadd.s32 %s195, 1
      %s197 = scalar_select %p194, %s195, %s196
      %p200 = pneg %p194
      %p201 = scmp.eq.s32.totalorder %s23, 3
      %p202 = por %p200, %p201
      %p203 = scmp.ne.s32.totalorder %s195, %s198
      %p204 = scmp.eq.s32.totalorder %s23, 0
      %p205 = por %p203, %p204
      %p206 = scmp.ne.s32.totalorder %s195, %s198
      %p207 = scmp.eq.s32.totalorder %s28, 3
      %p208 = por %p206, %p207
      %p209 = scmp.ne.s32.totalorder %s198, %s199
      %p210 = scmp.eq.s32.totalorder %s28, 0
      %p211 = por %p209, %p210
      %p212 = scmp.ne.s32.totalorder %s198, %s199
      %p213 = scmp.eq.s32.totalorder %s29, 3
      %p214 = por %p212, %p213
      %p216 = scmp.ne.s32.totalorder %s199, %s215
      %p217 = scmp.eq.s32.totalorder %s29, 0
      %p218 = por %p216, %p217
      %p219 = scmp.le.s32.totalorder 1, %s23
      %p220 = scmp.lt.s32.totalorder %s23, 5
      %p221 = pnand %p219, %p220
      %p222 = pneg %p221
      // Predicated region
      $region9: #{tpu_custom_call.1} parent=5 // pred_check
        _
      $region10: #{tpu_custom_call.1} parent=5 // pred_check_branch
        %224 = sbr.rel (%p221) target = $region12
      $region11: #{tpu_custom_call.1} parent=5 // pred_region
        %s225 = ssub.s32 %s23, 1
        // Predicated region
        $region13: #{tpu_custom_call.1} parent=11 // pred_check
          %p226 = pneg %p115
        $region14: #{tpu_custom_call.1} parent=11 // pred_check_branch
          %228 = sbr.rel (%p226) target = $region16
        $region15: #{tpu_custom_call.1} parent=11 // pred_region
          %s230 = ssub.s32 512, 512
          %231 = vsyncadd [#allocation6], %s230
          %s232 = smul.addr %s33, 128
          %s233 = scalar_lea.hbm %s2, %s232
          %s234 = sshll.u32 [#allocation7], 4
          %s235 = int_to_ptr.vmem [resolvable:$true] %s234
          %240 = dma.hbm_to_vmem [thread:$0]  %s233, 512, %s235, [#allocation6], 128, 128, 8
        $region16: #{tpu_custom_call.1} parent=11 // pred_fallthru
          _
        // Predicated region
        $region17: #{tpu_custom_call.1} parent=11 // pred_check
          %p241 = pneg %p136
        $region18: #{tpu_custom_call.1} parent=11 // pred_check_branch
          %243 = sbr.rel (%p241) target = $region20
        $region19: #{tpu_custom_call.1} parent=11 // pred_region
          %s245 = ssub.s32 2048, 2048
          %246 = vsyncadd [#allocation9], %s245
          %s247 = sshll.u32 [#allocation8], 4
          %s248 = int_to_ptr.vmem [resolvable:$true] %s247
          %253 = dma.hbm_to_vmem [thread:$0]  %s3, 2048, %s248, [#allocation9], 128, 128, 8
        $region20: #{tpu_custom_call.1} parent=11 // pred_fallthru
          _
        // Predicated region
        $region21: #{tpu_custom_call.1} parent=11 // pred_check
          %p254 = pneg %p162
        $region22: #{tpu_custom_call.1} parent=11 // pred_check_branch
          %256 = sbr.rel (%p254) target = $region24
        $region23: #{tpu_custom_call.1} parent=11 // pred_region
          %s257 = smul.u32 8, %s33
          %s259 = ssub.s32 1024, 1024
          %260 = vsyncadd [#allocation9], %s259
          %s261 = smul.addr %s257, 128
          %s262 = scalar_lea.hbm %s4, %s261
          %s263 = sshll.u32 [#allocation10], 4
          %s264 = int_to_ptr.vmem [resolvable:$true] %s263
          %269 = dma.hbm_to_vmem [thread:$0]  %s262, 1024, %s264, [#allocation9], 128, 128, 8
        $region24: #{tpu_custom_call.1} parent=11 // pred_fallthru
          _
        // Predicated region
        $region25: #{tpu_custom_call.1} parent=11 // pred_check
          %p270 = pneg %p183
        $region26: #{tpu_custom_call.1} parent=11 // pred_check_branch
          %272 = sbr.rel (%p270) target = $region28
        $region27: #{tpu_custom_call.1} parent=11 // pred_region
          %s274 = ssub.s32 512, 512
          %275 = vsyncadd [#allocation12], %s274
          %s276 = sshll.u32 [#allocation11], 4
          %s277 = int_to_ptr.vmem [resolvable:$true] %s276
          %282 = dma.hbm_to_vmem [thread:$0]  %s5, 512, %s277, [#allocation12], 128, 128, 8
        $region28: #{tpu_custom_call.1} parent=11 // pred_fallthru
          _
      $region12: #{tpu_custom_call.1} parent=5 // pred_fallthru
        _
      %p283 = scmp.lt.s32.totalorder %s23, 4
      // Predicated region
      $region29: #{tpu_custom_call.1} parent=5 // pred_check
        %p284 = pneg %p283
      $region30: #{tpu_custom_call.1} parent=5 // pred_check_branch
        %286 = sbr.rel (%p284) target = $region32
      $region31: #{tpu_custom_call.1} parent=5 // pred_region
        // Predicated region
        $region33: #{tpu_custom_call.1} parent=31 // pred_check
          %p287 = pneg %p57
        $region34: #{tpu_custom_call.1} parent=31 // pred_check_branch
          %289 = sbr.rel (%p287) target = $region36
        $region35: #{tpu_custom_call.1} parent=31 // pred_region
          %s290 = sand.u32 %s47, 1
          %s291 = scalar_lea.sflag [#allocation3], %s290
          %s292 = sand.u32 %s47, 1
          %s293 = smul.addr %s292, 128
          %s294 = scalar_lea.vmem [#allocation2], %s293
          %s295 = smul.u32 2, %s30
          %s296 = smul.u32 8, %s31
          %s298 = ssub.s32 2048, 2048
          %299 = vsyncadd %s291, %s298
          %s300 = smul.addr %s295, 8
          %s301 = sadd.s32 %s296, %s300
          %s302 = smul.addr %s301, 128
          %s303 = scalar_lea.hbm %s0, %s302
          %s304 = sshll.u32 %s294, 4
          %s305 = int_to_ptr.vmem [resolvable:$true] %s304
          %310 = dma.hbm_to_vmem [thread:$0]  %s303, 2048, %s305, %s291, 128, 128, 8
        $region36: #{tpu_custom_call.1} parent=31 // pred_fallthru
          _
        // Predicated region
        $region37: #{tpu_custom_call.1} parent=31 // pred_check
          %p311 = pneg %p83
        $region38: #{tpu_custom_call.1} parent=31 // pred_check_branch
          %313 = sbr.rel (%p311) target = $region40
        $region39: #{tpu_custom_call.1} parent=31 // pred_region
          %s314 = sand.u32 %s23, 1
          %s315 = scalar_lea.sflag [#allocation6], %s314
          %s316 = sand.u32 %s73, 1
          %s317 = smul.addr %s316, 64
          %s318 = scalar_lea.vmem [#allocation5], %s317
          %s319 = smul.u32 2, %s30
          %s321 = ssub.s32 1024, 1024
          %322 = vsyncadd %s315, %s321
          %s323 = smul.addr %s319, 4
          %s324 = smul.addr %s323, 128
          %s325 = scalar_lea.hbm %s1, %s324
          %s326 = sshll.u32 %s318, 4
          %s327 = int_to_ptr.vmem [resolvable:$true] %s326
          %332 = dma.hbm_to_vmem [thread:$0]  %s325, 1024, %s327, %s315, 128, 128, 8
        $region40: #{tpu_custom_call.1} parent=31 // pred_fallthru
          _
      $region32: #{tpu_custom_call.1} parent=5 // pred_fallthru
        _
      %p333 = scmp.le.s32.totalorder 1, %s23
      %p334 = scmp.lt.s32.totalorder %s23, 5
      %p335 = pnand %p333, %p334
      %p336 = pneg %p335
      // Predicated region
      $region41: #{tpu_custom_call.1} parent=5 // pred_check
        _
      $region42: #{tpu_custom_call.1} parent=5 // pred_check_branch
        %338 = sbr.rel (%p335) target = $region44
      $region43: #{tpu_custom_call.1} parent=5 // pred_region
        %s339 = ssub.s32 %s23, 1
        %s340 = sand.u32 %s50, 1
        %s341 = scalar_lea.sflag [#allocation3], %s340
        %s342 = sand.u32 %s50, 1
        %s343 = smul.addr %s342, 128
        %s344 = scalar_lea.vmem [#allocation2], %s343
        // Predicated region
        $region45: #{tpu_custom_call.1} parent=43 // pred_check
          %p345 = pneg %p63
        $region46: #{tpu_custom_call.1} parent=43 // pred_check_branch
          %347 = sbr.rel (%p345) target = $region48
        $region47: #{tpu_custom_call.1} parent=43 // pred_region
          %348 = dma.done %s341, 2048
        $region48: #{tpu_custom_call.1} parent=43 // pred_fallthru
          _
        %s349 = sand.u32 %s28, 1
        %s350 = scalar_lea.sflag [#allocation6], %s349
        %s351 = sand.u32 %s76, 1
        %s352 = smul.addr %s351, 64
        %s353 = scalar_lea.vmem [#allocation5], %s352
        // Predicated region
        $region49: #{tpu_custom_call.1} parent=43 // pred_check
          %p354 = pneg %p89
        $region50: #{tpu_custom_call.1} parent=43 // pred_check_branch
          %356 = sbr.rel (%p354) target = $region52
        $region51: #{tpu_custom_call.1} parent=43 // pred_region
          %357 = dma.done %s350, 1024
        $region52: #{tpu_custom_call.1} parent=43 // pred_fallthru
          _
        // Predicated region
        $region53: #{tpu_custom_call.1} parent=43 // pred_check
          %p358 = pneg %p115
        $region54: #{tpu_custom_call.1} parent=43 // pred_check_branch
          %360 = sbr.rel (%p358) target = $region56
        $region55: #{tpu_custom_call.1} parent=43 // pred_region
          %361 = dma.done [#allocation6], 512
        $region56: #{tpu_custom_call.1} parent=43 // pred_fallthru
          _
        // Predicated region
        $region57: #{tpu_custom_call.1} parent=43 // pred_check
          %p362 = pneg %p136
        $region58: #{tpu_custom_call.1} parent=43 // pred_check_branch
          %364 = sbr.rel (%p362) target = $region60
        $region59: #{tpu_custom_call.1} parent=43 // pred_region
          %365 = dma.done [#allocation9], 2048
        $region60: #{tpu_custom_call.1} parent=43 // pred_fallthru
          _
        // Predicated region
        $region61: #{tpu_custom_call.1} parent=43 // pred_check
          %p366 = pneg %p162
        $region62: #{tpu_custom_call.1} parent=43 // pred_check_branch
          %368 = sbr.rel (%p366) target = $region64
        $region63: #{tpu_custom_call.1} parent=43 // pred_region
          %369 = dma.done [#allocation9], 1024
        $region64: #{tpu_custom_call.1} parent=43 // pred_fallthru
          _
        // Predicated region
        $region65: #{tpu_custom_call.1} parent=43 // pred_check
          %p370 = pneg %p183
        $region66: #{tpu_custom_call.1} parent=43 // pred_check_branch
          %372 = sbr.rel (%p370) target = $region68
        $region67: #{tpu_custom_call.1} parent=43 // pred_region
          %373 = dma.done [#allocation12], 512
        $region68: #{tpu_custom_call.1} parent=43 // pred_fallthru
          _
        %s374 = sand.u32 %s50, 1
        %s375 = scalar_lea.sflag [#allocation3], %s374
        %s376 = sand.u32 %s50, 1
        %s377 = smul.addr %s376, 128
        %s378 = scalar_lea.vmem [#allocation2], %s377
        %p379 = pneg %p63
        %p380 = pneg %p60
        %s381 = sand.u32 %s28, 1
        %s382 = scalar_lea.sflag [#allocation6], %s381
        %s383 = sand.u32 %s76, 1
        %s384 = smul.addr %s383, 64
        %s385 = scalar_lea.vmem [#allocation5], %s384
        %p386 = pneg %p89
        %p387 = pneg %p86
        %p388 = pneg %p115
        %p389 = pneg %p112
        %p390 = pneg %p136
        %p391 = pneg %p133
        %p392 = pneg %p162
        %p393 = pneg %p159
        %p394 = pneg %p183
        %p395 = pneg %p180
        %p396 = pneg %p211
        %p397 = pneg %p208
        %s398 = sand.u32 %s198, 1
        %s399 = scalar_lea.sflag [#allocation4], %s398
        %s400 = sand.u32 %s198, 1
        %s401 = smul.addr %s400, 128
        %s402 = scalar_lea.vmem [#allocation13], %s401
        %s403 = smul.u32 2, %s32
        %s404 = smul.u32 8, %s33
        %s405 = smul.u32 2, %s32
        %s406 = smul.u32 8, %s33
        %s407 = smul.u32 2, %s32
        %s408 = smul.u32 8, %s33
        %v409 = vld [vmem:[#allocation7] sm:$0xff]
        %v410 = vld [vmem:[#allocation7 + $0x8] sm:$0xff]
        %v411 = vld [vmem:[#allocation7 + $0x10] sm:$0xff]
        %v412 = vld [vmem:[#allocation7 + $0x18] sm:$0xff]
        %v413 = vld [vmem:[#allocation8] sm:$0xff]
        %v414 = vld [vmem:[#allocation8 + $0x8] sm:$0xff]
        %v415 = vld [vmem:[#allocation8 + $0x10] sm:$0xff]
        %v416 = vld [vmem:[#allocation8 + $0x18] sm:$0xff]
        %v417 = vld [vmem:[#allocation8 + $0x20] sm:$0xff]
        %v418 = vld [vmem:[#allocation8 + $0x28] sm:$0xff]
        %v419 = vld [vmem:[#allocation8 + $0x30] sm:$0xff]
        %v420 = vld [vmem:[#allocation8 + $0x38] sm:$0xff]
        %v421 = vld [vmem:[#allocation8 + $0x40] sm:$0xff]
        %v422 = vld [vmem:[#allocation8 + $0x48] sm:$0xff]
        %v423 = vld [vmem:[#allocation8 + $0x50] sm:$0xff]
        %v424 = vld [vmem:[#allocation8 + $0x58] sm:$0xff]
        %v425 = vld [vmem:[#allocation8 + $0x60] sm:$0xff]
        %v426 = vld [vmem:[#allocation8 + $0x68] sm:$0xff]
        %v427 = vld [vmem:[#allocation8 + $0x70] sm:$0xff]
        %v428 = vld [vmem:[#allocation8 + $0x78] sm:$0xff]
        %v429 = vld [vmem:[#allocation10] sm:$0xff]
        %v430 = vld [vmem:[#allocation10 + $0x8] sm:$0xff]
        %v431 = vld [vmem:[#allocation10 + $0x10] sm:$0xff]
        %v432 = vld [vmem:[#allocation10 + $0x18] sm:$0xff]
        %v433 = vld [vmem:[#allocation10 + $0x20] sm:$0xff]
        %v434 = vld [vmem:[#allocation10 + $0x28] sm:$0xff]
        %v435 = vld [vmem:[#allocation10 + $0x30] sm:$0xff]
        %v436 = vld [vmem:[#allocation10 + $0x38] sm:$0xff]
        %v437 = vld [vmem:[#allocation11] sm:$0xff]
        %v438 = vld [vmem:[#allocation11 + $0x8] sm:$0xff]
        %v439 = vld [vmem:[#allocation11 + $0x10] sm:$0xff]
        %v440 = vld [vmem:[#allocation11 + $0x18] sm:$0xff]
        %v441 = vld [vmem:[%s344] sm:$0xff]
        %v442 = vld [vmem:[%s344 + $0x8] sm:$0xff]
        %v443 = vld [vmem:[%s344 + $0x10] sm:$0xff]
        %v444 = vld [vmem:[%s344 + $0x18] sm:$0xff]
        %v445 = vld [vmem:[%s344 + $0x20] sm:$0xff]
        %v446 = vld [vmem:[%s344 + $0x28] sm:$0xff]
        %v447 = vld [vmem:[%s344 + $0x30] sm:$0xff]
        %v448 = vld [vmem:[%s344 + $0x38] sm:$0xff]
        %vm449 = vcmask 523264
        %v451 = vsel %vm449, %v409, 0
        %v454 = vsel %vm449, %v410, 0
        %v457 = vsel %vm449, %v411, 0
        %v460 = vsel %vm449, %v412, 0
        %462 = vmatprep.subr.mxu0 0.0
        %v463 = vand.u32 %v441, 4294901760
        %464 = vmatpush1.msra.mxu0 %v463
        %465 = vmatprep.subr.mxu0 0.0
        %v466 = vand.u32 %v442, 4294901760
        %467 = vmatpush1.msra.mxu0 %v466
        %468 = vmatprep.subr.mxu0 0.0
        %v469 = vand.u32 %v443, 4294901760
        %470 = vmatpush1.msra.mxu0 %v469
        %471 = vmatprep.subr.mxu0 0.0
        %v472 = vand.u32 %v444, 4294901760
        %473 = vmatpush1.msra.mxu0 %v472
        %474 = vmatprep.subr.mxu0 0.0
        %v475 = vand.u32 %v445, 4294901760
        %476 = vmatpush1.msra.mxu0 %v475
        %477 = vmatprep.subr.mxu0 0.0
        %v478 = vand.u32 %v446, 4294901760
        %479 = vmatpush1.msra.mxu0 %v478
        %480 = vmatprep.subr.mxu0 0.0
        %v481 = vand.u32 %v447, 4294901760
        %482 = vmatpush1.msra.mxu0 %v481
        %483 = vmatprep.subr.mxu0 0.0
        %v484 = vand.u32 %v448, 4294901760
        %485 = vmatpush1.msra.mxu0 %v484
        %486 = vmatprep.subr.mxu0 0.0
        %487 = vmatpush1.msra.mxu0 0.0
        %488 = vmatprep.subr.mxu0 0.0
        %489 = vmatpush1.msra.mxu0 0.0
        %490 = vmatprep.subr.mxu0 0.0
        %491 = vmatpush1.msra.mxu0 0.0
        %492 = vmatprep.subr.mxu0 0.0
        %493 = vmatpush1.msra.mxu0 0.0
        %494 = vmatprep.subr.mxu0 0.0
        %495 = vmatpush1.msra.mxu0 0.0
        %496 = vmatprep.subr.mxu0 0.0
        %497 = vmatpush1.msra.mxu0 0.0
        %498 = vmatprep.subr.mxu0 0.0
        %499 = vmatpush1.msra.mxu0 0.0
        %500 = vmatprep.subr.mxu0 0.0
        %501 = vmatpush1.msra.mxu0 0.0
        %502 = vmatprep.subr.mxu0 0.0
        %503 = vmatpush1.msra.mxu0 0.0
        %504 = vmatprep.subr.mxu0 0.0
        %505 = vmatpush1.msra.mxu0 0.0
        %506 = vmatprep.subr.mxu0 0.0
        %507 = vmatpush1.msra.mxu0 0.0
        %508 = vmatprep.subr.mxu0 0.0
        %509 = vmatpush1.msra.mxu0 0.0
        %510 = vmatprep.subr.mxu0 0.0
        %511 = vmatpush1.msra.mxu0 0.0
        %512 = vmatprep.subr.mxu0 0.0
        %513 = vmatpush1.msra.mxu0 0.0
        %514 = vmatprep.subr.mxu0 0.0
        %515 = vmatpush1.msra.mxu0 0.0
        %516 = vmatprep.subr.mxu0 0.0
        %517 = vmatpush1.msra.mxu0 0.0
        %518 = vmatprep.subr.mxu0 0.0
        %519 = vmatpush1.msra.mxu0 0.0
        %520 = vmatprep.subr.mxu0 0.0
        %521 = vmatpush1.msra.mxu0 0.0
        %522 = vmatprep.subr.mxu0 0.0
        %523 = vmatpush1.msra.mxu0 0.0
        %524 = vmatprep.subr.mxu0 0.0
        %525 = vmatpush1.msra.mxu0 0.0
        %526 = vmatprep.subr.mxu0 0.0
        %527 = vmatpush1.msra.mxu0 0.0
        %528 = vmatprep.subr.mxu0 0.0
        %529 = vmatpush1.msra.mxu0 0.0
        %530 = vmatprep.subr.mxu0 0.0
        %531 = vmatpush1.msra.mxu0 0.0
        %532 = vmatprep.subr.mxu0 0.0
        %533 = vmatpush1.msra.mxu0 0.0
        %534 = vmatprep.mubr.f32.mxu0 0.0
        %v535 = vand.u32 %v451, 4294901760
        %v536 = vsub.f32 %v451, %v535
        %v537 = vand.u32 %v536, 4294901760
        %v538 = vsub.f32 %v536, %v537
        %v539 = vand.u32 %v538, 4294901760
        %540 = vmatmul.mubr.f32.gmra.mrb[0].mxu0 %v539
        %v541 = vpop.f32.mrb[0].mxu0
        %v542 = vadd.f32 0.0, %v541
        %v543 = vpop.f32.mrb[0].mxu0
        %544 = vmatprep.mubr.f32.mxu0 0.0
        %v545 = vand.u32 %v454, 4294901760
        %v546 = vsub.f32 %v454, %v545
        %v547 = vand.u32 %v546, 4294901760
        %v548 = vsub.f32 %v546, %v547
        %v549 = vand.u32 %v548, 4294901760
        %550 = vmatmul.mubr.f32.gmra.mrb[0].mxu0 %v549
        %v551 = vpop.f32.mrb[0].mxu0
        %v552 = vadd.f32 0.0, %v551
        %v553 = vpop.f32.mrb[0].mxu0
        %554 = vmatprep.mubr.f32.mxu0 0.0
        %v555 = vand.u32 %v457, 4294901760
        %v556 = vsub.f32 %v457, %v555
        %v557 = vand.u32 %v556, 4294901760
        %v558 = vsub.f32 %v556, %v557
        %v559 = vand.u32 %v558, 4294901760
        %560 = vmatmul.mubr.f32.gmra.mrb[0].mxu0 %v559
        %v561 = vpop.f32.mrb[0].mxu0
        %v562 = vadd.f32 0.0, %v561
        %v563 = vpop.f32.mrb[0].mxu0
        %564 = vmatprep.mubr.f32.mxu0 0.0
        %v565 = vand.u32 %v460, 4294901760
        %v566 = vsub.f32 %v460, %v565
        %v567 = vand.u32 %v566, 4294901760
        %v568 = vsub.f32 %v566, %v567
        %v569 = vand.u32 %v568, 4294901760
        %570 = vmatmul.mubr.f32.gmra.mrb[0].mxu0 %v569
        %v571 = vpop.f32.mrb[0].mxu0
        %v572 = vadd.f32 0.0, %v571
        %v573 = vpop.f32.mrb[0].mxu0
        %574 = vdwg.mxu0
        %575 = vmatprep.subr.mxu0 0.0
        %v576 = vand.u32 %v441, 4294901760
        %v577 = vsub.f32 %v441, %v576
        %v578 = vand.u32 %v577, 4294901760
        %v579 = vsub.f32 %v577, %v578
        %v580 = vand.u32 %v579, 4294901760
        %581 = vmatpush1.msra.mxu0 %v580
        %582 = vmatprep.subr.mxu0 0.0
        %v583 = vand.u32 %v442, 4294901760
        %v584 = vsub.f32 %v442, %v583
        %v585 = vand.u32 %v584, 4294901760
        %v586 = vsub.f32 %v584, %v585
        %v587 = vand.u32 %v586, 4294901760
        %588 = vmatpush1.msra.mxu0 %v587
        %589 = vmatprep.subr.mxu0 0.0
        %v590 = vand.u32 %v443, 4294901760
        %v591 = vsub.f32 %v443, %v590
        %v592 = vand.u32 %v591, 4294901760
        %v593 = vsub.f32 %v591, %v592
        %v594 = vand.u32 %v593, 4294901760
        %595 = vmatpush1.msra.mxu0 %v594
        %596 = vmatprep.subr.mxu0 0.0
        %v597 = vand.u32 %v444, 4294901760
        %v598 = vsub.f32 %v444, %v597
        %v599 = vand.u32 %v598, 4294901760
        %v600 = vsub.f32 %v598, %v599
        %v601 = vand.u32 %v600, 4294901760
        %602 = vmatpush1.msra.mxu0 %v601
        %603 = vmatprep.subr.mxu0 0.0
        %v604 = vand.u32 %v445, 4294901760
        %v605 = vsub.f32 %v445, %v604
        %v606 = vand.u32 %v605, 4294901760
        %v607 = vsub.f32 %v605, %v606
        %v608 = vand.u32 %v607, 4294901760
        %609 = vmatpush1.msra.mxu0 %v608
        %610 = vmatprep.subr.mxu0 0.0
        %v611 = vand.u32 %v446, 4294901760
        %v612 = vsub.f32 %v446, %v611
        %v613 = vand.u32 %v612, 4294901760
        %v614 = vsub.f32 %v612, %v613
        %v615 = vand.u32 %v614, 4294901760
        %616 = vmatpush1.msra.mxu0 %v615
        %617 = vmatprep.subr.mxu0 0.0
        %v618 = vand.u32 %v447, 4294901760
        %v619 = vsub.f32 %v447, %v618
        %v620 = vand.u32 %v619, 4294901760
        %v621 = vsub.f32 %v619, %v620
        %v622 = vand.u32 %v621, 4294901760
        %623 = vmatpush1.msra.mxu0 %v622
        %624 = vmatprep.subr.mxu0 0.0
        %v625 = vand.u32 %v448, 4294901760
        %v626 = vsub.f32 %v448, %v625
        %v627 = vand.u32 %v626, 4294901760
        %v628 = vsub.f32 %v626, %v627
        %v629 = vand.u32 %v628, 4294901760
        %630 = vmatpush1.msra.mxu0 %v629
        %631 = vmatprep.subr.mxu0 0.0
        %632 = vmatpush1.msra.mxu0 0.0
        %633 = vmatprep.subr.mxu0 0.0
        %634 = vmatpush1.msra.mxu0 0.0
        %635 = vmatprep.subr.mxu0 0.0
        %636 = vmatpush1.msra.mxu0 0.0
        %637 = vmatprep.subr.mxu0 0.0
        %638 = vmatpush1.msra.mxu0 0.0
        %639 = vmatprep.subr.mxu0 0.0
        %640 = vmatpush1.msra.mxu0 0.0
        %641 = vmatprep.subr.mxu0 0.0
        %642 = vmatpush1.msra.mxu0 0.0
        %643 = vmatprep.subr.mxu0 0.0
        %644 = vmatpush1.msra.mxu0 0.0
        %645 = vmatprep.subr.mxu0 0.0
        %646 = vmatpush1.msra.mxu0 0.0
        %647 = vmatprep.subr.mxu0 0.0
        %648 = vmatpush1.msra.mxu0 0.0
        %649 = vmatprep.subr.mxu0 0.0
        %650 = vmatpush1.msra.mxu0 0.0
        %651 = vmatprep.subr.mxu0 0.0
        %652 = vmatpush1.msra.mxu0 0.0
        %653 = vmatprep.subr.mxu0 0.0
        %654 = vmatpush1.msra.mxu0 0.0
        %655 = vmatprep.subr.mxu0 0.0
        %656 = vmatpush1.msra.mxu0 0.0
        %657 = vmatprep.subr.mxu0 0.0
        %658 = vmatpush1.msra.mxu0 0.0
        %659 = vmatprep.subr.mxu0 0.0
        %660 = vmatpush1.msra.mxu0 0.0
        %661 = vmatprep.subr.mxu0 0.0
        %662 = vmatpush1.msra.mxu0 0.0
        %663 = vmatprep.subr.mxu0 0.0
        %664 = vmatpush1.msra.mxu0 0.0
        %665 = vmatprep.subr.mxu0 0.0
        %666 = vmatpush1.msra.mxu0 0.0
        %667 = vmatprep.subr.mxu0 0.0
        %668 = vmatpush1.msra.mxu0 0.0
        %669 = vmatprep.subr.mxu0 0.0
        %670 = vmatpush1.msra.mxu0 0.0
        %671 = vmatprep.subr.mxu0 0.0
        %672 = vmatpush1.msra.mxu0 0.0
        %673 = vmatprep.subr.mxu0 0.0
        %674 = vmatpush1.msra.mxu0 0.0
        %675 = vmatprep.subr.mxu0 0.0
        %676 = vmatpush1.msra.mxu0 0.0
        %677 = vmatprep.subr.mxu0 0.0
        %678 = vmatpush1.msra.mxu0 0.0
        %679 = vmatprep.mubr.f32.mxu0 0.0
        %v680 = vand.u32 %v451, 4294901760
        %681 = vmatmul.mubr.f32.gmra.mrb[0].mxu0 %v680
        %v682 = vpop.f32.mrb[0].mxu0
        %v683 = vadd.f32 %v542, %v682
        %v684 = vpop.f32.mrb[0].mxu0
        %685 = vmatprep.mubr.f32.mxu0 0.0
        %v686 = vand.u32 %v454, 4294901760
        %687 = vmatmul.mubr.f32.gmra.mrb[0].mxu0 %v686
        %v688 = vpop.f32.mrb[0].mxu0
        %v689 = vadd.f32 %v552, %v688
        %v690 = vpop.f32.mrb[0].mxu0
        %691 = vmatprep.mubr.f32.mxu0 0.0
        %v692 = vand.u32 %v457, 4294901760
        %693 = vmatmul.mubr.f32.gmra.mrb[0].mxu0 %v692
        %v694 = vpop.f32.mrb[0].mxu0
        %v695 = vadd.f32 %v562, %v694
        %v696 = vpop.f32.mrb[0].mxu0
        %697 = vmatprep.mubr.f32.mxu0 0.0
        %v698 = vand.u32 %v460, 4294901760
        %699 = vmatmul.mubr.f32.gmra.mrb[0].mxu0 %v698
        %v700 = vpop.f32.mrb[0].mxu0
        %v701 = vadd.f32 %v572, %v700
        %v702 = vpop.f32.mrb[0].mxu0
        %703 = vdwg.mxu0
        %704 = vmatprep.subr.mxu0 0.0
        %v705 = vand.u32 %v441, 4294901760
        %v706 = vsub.f32 %v441, %v705
        %707 = vmatpush1.msra.mxu0 %v706
        %708 = vmatprep.subr.mxu0 0.0
        %v709 = vand.u32 %v442, 4294901760
        %v710 = vsub.f32 %v442, %v709
        %711 = vmatpush1.msra.mxu0 %v710
        %712 = vmatprep.subr.mxu0 0.0
        %v713 = vand.u32 %v443, 4294901760
        %v714 = vsub.f32 %v443, %v713
        %715 = vmatpush1.msra.mxu0 %v714
        %716 = vmatprep.subr.mxu0 0.0
        %v717 = vand.u32 %v444, 4294901760
        %v718 = vsub.f32 %v444, %v717
        %719 = vmatpush1.msra.mxu0 %v718
        %720 = vmatprep.subr.mxu0 0.0
        %v721 = vand.u32 %v445, 4294901760
        %v722 = vsub.f32 %v445, %v721
        %723 = vmatpush1.msra.mxu0 %v722
        %724 = vmatprep.subr.mxu0 0.0
        %v725 = vand.u32 %v446, 4294901760
        %v726 = vsub.f32 %v446, %v725
        %727 = vmatpush1.msra.mxu0 %v726
        %728 = vmatprep.subr.mxu0 0.0
        %v729 = vand.u32 %v447, 4294901760
        %v730 = vsub.f32 %v447, %v729
        %731 = vmatpush1.msra.mxu0 %v730
        %732 = vmatprep.subr.mxu0 0.0
        %v733 = vand.u32 %v448, 4294901760
        %v734 = vsub.f32 %v448, %v733
        %735 = vmatpush1.msra.mxu0 %v734
        %736 = vmatprep.subr.mxu0 0.0
        %737 = vmatpush1.msra.mxu0 0.0
        %738 = vmatprep.subr.mxu0 0.0
        %739 = vmatpush1.msra.mxu0 0.0
        %740 = vmatprep.subr.mxu0 0.0
        %741 = vmatpush1.msra.mxu0 0.0
        %742 = vmatprep.subr.mxu0 0.0
        %743 = vmatpush1.msra.mxu0 0.0
        %744 = vmatprep.subr.mxu0 0.0
        %745 = vmatpush1.msra.mxu0 0.0
        %746 = vmatprep.subr.mxu0 0.0
        %747 = vmatpush1.msra.mxu0 0.0
        %748 = vmatprep.subr.mxu0 0.0
        %749 = vmatpush1.msra.mxu0 0.0
        %750 = vmatprep.subr.mxu0 0.0
        %751 = vmatpush1.msra.mxu0 0.0
        %752 = vmatprep.subr.mxu0 0.0
        %753 = vmatpush1.msra.mxu0 0.0
        %754 = vmatprep.subr.mxu0 0.0
        %755 = vmatpush1.msra.mxu0 0.0
        %756 = vmatprep.subr.mxu0 0.0
        %757 = vmatpush1.msra.mxu0 0.0
        %758 = vmatprep.subr.mxu0 0.0
        %759 = vmatpush1.msra.mxu0 0.0
        %760 = vmatprep.subr.mxu0 0.0
        %761 = vmatpush1.msra.mxu0 0.0
        %762 = vmatprep.subr.mxu0 0.0
        %763 = vmatpush1.msra.mxu0 0.0
        %764 = vmatprep.subr.mxu0 0.0
        %765 = vmatpush1.msra.mxu0 0.0
        %766 = vmatprep.subr.mxu0 0.0
        %767 = vmatpush1.msra.mxu0 0.0
        %768 = vmatprep.subr.mxu0 0.0
        %769 = vmatpush1.msra.mxu0 0.0
        %770 = vmatprep.subr.mxu0 0.0
        %771 = vmatpush1.msra.mxu0 0.0
        %772 = vmatprep.subr.mxu0 0.0
        %773 = vmatpush1.msra.mxu0 0.0
        %774 = vmatprep.subr.mxu0 0.0
        %775 = vmatpush1.msra.mxu0 0.0
        %776 = vmatprep.subr.mxu0 0.0
        %777 = vmatpush1.msra.mxu0 0.0
        %778 = vmatprep.subr.mxu0 0.0
        %779 = vmatpush1.msra.mxu0 0.0
        %780 = vmatprep.subr.mxu0 0.0
        %781 = vmatpush1.msra.mxu0 0.0
        %782 = vmatprep.subr.mxu0 0.0
        %783 = vmatpush1.msra.mxu0 0.0
        %784 = vmatprep.mubr.f32.mxu0 0.0
        %v785 = vand.u32 %v451, 4294901760
        %v786 = vsub.f32 %v451, %v785
        %787 = vmatmul.mubr.f32.gmra.mrb[0].mxu0 %v786
        %v788 = vpop.f32.mrb[0].mxu0
        %v789 = vadd.f32 %v683, %v788
        %v790 = vpop.f32.mrb[0].mxu0
        %791 = vmatprep.mubr.f32.mxu0 0.0
        %v792 = vand.u32 %v454, 4294901760
        %v793 = vsub.f32 %v454, %v792
        %794 = vmatmul.mubr.f32.gmra.mrb[0].mxu0 %v793
        %v795 = vpop.f32.mrb[0].mxu0
        %v796 = vadd.f32 %v689, %v795
        %v797 = vpop.f32.mrb[0].mxu0
        %798 = vmatprep.mubr.f32.mxu0 0.0
        %v799 = vand.u32 %v457, 4294901760
        %v800 = vsub.f32 %v457, %v799
        %801 = vmatmul.mubr.f32.gmra.mrb[0].mxu0 %v800
        %v802 = vpop.f32.mrb[0].mxu0
        %v803 = vadd.f32 %v695, %v802
        %v804 = vpop.f32.mrb[0].mxu0
        %805 = vmatprep.mubr.f32.mxu0 0.0
        %v806 = vand.u32 %v460, 4294901760
        %v807 = vsub.f32 %v460, %v806
        %808 = vmatmul.mubr.f32.gmra.mrb[0].mxu0 %v807
        %v809 = vpop.f32.mrb[0].mxu0
        %v810 = vadd.f32 %v701, %v809
        %v811 = vpop.f32.mrb[0].mxu0
        %812 = vdwg.mxu0
        %813 = vmatprep.subr.mxu0 0.0
        %v814 = vand.u32 %v441, 4294901760
        %815 = vmatpush1.msra.mxu0 %v814
        %816 = vmatprep.subr.mxu0 0.0
        %v817 = vand.u32 %v442, 4294901760
        %818 = vmatpush1.msra.mxu0 %v817
        %819 = vmatprep.subr.mxu0 0.0
        %v820 = vand.u32 %v443, 4294901760
        %821 = vmatpush1.msra.mxu0 %v820
        %822 = vmatprep.subr.mxu0 0.0
        %v823 = vand.u32 %v444, 4294901760
        %824 = vmatpush1.msra.mxu0 %v823
        %825 = vmatprep.subr.mxu0 0.0
        %v826 = vand.u32 %v445, 4294901760
        %827 = vmatpush1.msra.mxu0 %v826
        %828 = vmatprep.subr.mxu0 0.0
        %v829 = vand.u32 %v446, 4294901760
        %830 = vmatpush1.msra.mxu0 %v829
        %831 = vmatprep.subr.mxu0 0.0
        %v832 = vand.u32 %v447, 4294901760
        %833 = vmatpush1.msra.mxu0 %v832
        %834 = vmatprep.subr.mxu0 0.0
        %v835 = vand.u32 %v448, 4294901760
        %836 = vmatpush1.msra.mxu0 %v835
        %837 = vmatprep.subr.mxu0 0.0
        %838 = vmatpush1.msra.mxu0 0.0
        %839 = vmatprep.subr.mxu0 0.0
        %840 = vmatpush1.msra.mxu0 0.0
        %841 = vmatprep.subr.mxu0 0.0
        %842 = vmatpush1.msra.mxu0 0.0
        %843 = vmatprep.subr.mxu0 0.0
        %844 = vmatpush1.msra.mxu0 0.0
        %845 = vmatprep.subr.mxu0 0.0
        %846 = vmatpush1.msra.mxu0 0.0
        %847 = vmatprep.subr.mxu0 0.0
        %848 = vmatpush1.msra.mxu0 0.0
        %849 = vmatprep.subr.mxu0 0.0
        %850 = vmatpush1.msra.mxu0 0.0
        %851 = vmatprep.subr.mxu0 0.0
        %852 = vmatpush1.msra.mxu0 0.0
        %853 = vmatprep.subr.mxu0 0.0
        %854 = vmatpush1.msra.mxu0 0.0
        %855 = vmatprep.subr.mxu0 0.0
        %856 = vmatpush1.msra.mxu0 0.0
        %857 = vmatprep.subr.mxu0 0.0
        %858 = vmatpush1.msra.mxu0 0.0
        %859 = vmatprep.subr.mxu0 0.0
        %860 = vmatpush1.msra.mxu0 0.0
        %861 = vmatprep.subr.mxu0 0.0
        %862 = vmatpush1.msra.mxu0 0.0
        %863 = vmatprep.subr.mxu0 0.0
        %864 = vmatpush1.msra.mxu0 0.0
        %865 = vmatprep.subr.mxu0 0.0
        %866 = vmatpush1.msra.mxu0 0.0
        %867 = vmatprep.subr.mxu0 0.0
        %868 = vmatpush1.msra.mxu0 0.0
        %869 = vmatprep.subr.mxu0 0.0
        %870 = vmatpush1.msra.mxu0 0.0
        %871 = vmatprep.subr.mxu0 0.0
        %872 = vmatpush1.msra.mxu0 0.0
        %873 = vmatprep.subr.mxu0 0.0
        %874 = vmatpush1.msra.mxu0 0.0
        %875 = vmatprep.subr.mxu0 0.0
        %876 = vmatpush1.msra.mxu0 0.0
        %877 = vmatprep.subr.mxu0 0.0
        %878 = vmatpush1.msra.mxu0 0.0
        %879 = vmatprep.subr.mxu0 0.0
        %880 = vmatpush1.msra.mxu0 0.0
        %881 = vmatprep.subr.mxu0 0.0
        %882 = vmatpush1.msra.mxu0 0.0
        %883 = vmatprep.subr.mxu0 0.0
        %884 = vmatpush1.msra.mxu0 0.0
        %885 = vmatprep.mubr.f32.mxu0 0.0
        %v886 = vand.u32 %v451, 4294901760
        %v887 = vsub.f32 %v451, %v886
        %v888 = vand.u32 %v887, 4294901760
        %889 = vmatmul.mubr.f32.gmra.mrb[0].mxu0 %v888
        %v890 = vpop.f32.mrb[0].mxu0
        %v891 = vadd.f32 %v789, %v890
        %v892 = vpop.f32.mrb[0].mxu0
        %893 = vmatprep.mubr.f32.mxu0 0.0
        %v894 = vand.u32 %v454, 4294901760
        %v895 = vsub.f32 %v454, %v894
        %v896 = vand.u32 %v895, 4294901760
        %897 = vmatmul.mubr.f32.gmra.mrb[0].mxu0 %v896
        %v898 = vpop.f32.mrb[0].mxu0
        %v899 = vadd.f32 %v796, %v898
        %v900 = vpop.f32.mrb[0].mxu0
        %901 = vmatprep.mubr.f32.mxu0 0.0
        %v902 = vand.u32 %v457, 4294901760
        %v903 = vsub.f32 %v457, %v902
        %v904 = vand.u32 %v903, 4294901760
        %905 = vmatmul.mubr.f32.gmra.mrb[0].mxu0 %v904
        %v906 = vpop.f32.mrb[0].mxu0
        %v907 = vadd.f32 %v803, %v906
        %v908 = vpop.f32.mrb[0].mxu0
        %909 = vmatprep.mubr.f32.mxu0 0.0
        %v910 = vand.u32 %v460, 4294901760
        %v911 = vsub.f32 %v460, %v910
        %v912 = vand.u32 %v911, 4294901760
        %913 = vmatmul.mubr.f32.gmra.mrb[0].mxu0 %v912
        %v914 = vpop.f32.mrb[0].mxu0
        %v915 = vadd.f32 %v810, %v914
        %v916 = vpop.f32.mrb[0].mxu0
        %917 = vdwg.mxu0
        %918 = vmatprep.subr.mxu0 0.0
        %v919 = vand.u32 %v441, 4294901760
        %v920 = vsub.f32 %v441, %v919
        %v921 = vand.u32 %v920, 4294901760
        %922 = vmatpush1.msra.mxu0 %v921
        %923 = vmatprep.subr.mxu0 0.0
        %v924 = vand.u32 %v442, 4294901760
        %v925 = vsub.f32 %v442, %v924
        %v926 = vand.u32 %v925, 4294901760
        %927 = vmatpush1.msra.mxu0 %v926
        %928 = vmatprep.subr.mxu0 0.0
        %v929 = vand.u32 %v443, 4294901760
        %v930 = vsub.f32 %v443, %v929
        %v931 = vand.u32 %v930, 4294901760
        %932 = vmatpush1.msra.mxu0 %v931
        %933 = vmatprep.subr.mxu0 0.0
        %v934 = vand.u32 %v444, 4294901760
        %v935 = vsub.f32 %v444, %v934
        %v936 = vand.u32 %v935, 4294901760
        %937 = vmatpush1.msra.mxu0 %v936
        %938 = vmatprep.subr.mxu0 0.0
        %v939 = vand.u32 %v445, 4294901760
        %v940 = vsub.f32 %v445, %v939
        %v941 = vand.u32 %v940, 4294901760
        %942 = vmatpush1.msra.mxu0 %v941
        %943 = vmatprep.subr.mxu0 0.0
        %v944 = vand.u32 %v446, 4294901760
        %v945 = vsub.f32 %v446, %v944
        %v946 = vand.u32 %v945, 4294901760
        %947 = vmatpush1.msra.mxu0 %v946
        %948 = vmatprep.subr.mxu0 0.0
        %v949 = vand.u32 %v447, 4294901760
        %v950 = vsub.f32 %v447, %v949
        %v951 = vand.u32 %v950, 4294901760
        %952 = vmatpush1.msra.mxu0 %v951
        %953 = vmatprep.subr.mxu0 0.0
        %v954 = vand.u32 %v448, 4294901760
        %v955 = vsub.f32 %v448, %v954
        %v956 = vand.u32 %v955, 4294901760
        %957 = vmatpush1.msra.mxu0 %v956
        %958 = vmatprep.subr.mxu0 0.0
        %959 = vmatpush1.msra.mxu0 0.0
        %960 = vmatprep.subr.mxu0 0.0
        %961 = vmatpush1.msra.mxu0 0.0
        %962 = vmatprep.subr.mxu0 0.0
        %963 = vmatpush1.msra.mxu0 0.0
        %964 = vmatprep.subr.mxu0 0.0
        %965 = vmatpush1.msra.mxu0 0.0
        %966 = vmatprep.subr.mxu0 0.0
        %967 = vmatpush1.msra.mxu0 0.0
        %968 = vmatprep.subr.mxu0 0.0
        %969 = vmatpush1.msra.mxu0 0.0
        %970 = vmatprep.subr.mxu0 0.0
        %971 = vmatpush1.msra.mxu0 0.0
        %972 = vmatprep.subr.mxu0 0.0
        %973 = vmatpush1.msra.mxu0 0.0
        %974 = vmatprep.subr.mxu0 0.0
        %975 = vmatpush1.msra.mxu0 0.0
        %976 = vmatprep.subr.mxu0 0.0
        %977 = vmatpush1.msra.mxu0 0.0
        %978 = vmatprep.subr.mxu0 0.0
        %979 = vmatpush1.msra.mxu0 0.0
        %980 = vmatprep.subr.mxu0 0.0
        %981 = vmatpush1.msra.mxu0 0.0
        %982 = vmatprep.subr.mxu0 0.0
        %983 = vmatpush1.msra.mxu0 0.0
        %984 = vmatprep.subr.mxu0 0.0
        %985 = vmatpush1.msra.mxu0 0.0
        %986 = vmatprep.subr.mxu0 0.0
        %987 = vmatpush1.msra.mxu0 0.0
        %988 = vmatprep.subr.mxu0 0.0
        %989 = vmatpush1.msra.mxu0 0.0
        %990 = vmatprep.subr.mxu0 0.0
        %991 = vmatpush1.msra.mxu0 0.0
        %992 = vmatprep.subr.mxu0 0.0
        %993 = vmatpush1.msra.mxu0 0.0
        %994 = vmatprep.subr.mxu0 0.0
        %995 = vmatpush1.msra.mxu0 0.0
        %996 = vmatprep.subr.mxu0 0.0
        %997 = vmatpush1.msra.mxu0 0.0
        %998 = vmatprep.subr.mxu0 0.0
        %999 = vmatpush1.msra.mxu0 0.0
        %1000 = vmatprep.subr.mxu0 0.0
        %1001 = vmatpush1.msra.mxu0 0.0
        %1002 = vmatprep.subr.mxu0 0.0
        %1003 = vmatpush1.msra.mxu0 0.0
        %1004 = vmatprep.subr.mxu0 0.0
        %1005 = vmatpush1.msra.mxu0 0.0
        %1006 = vmatprep.mubr.f32.mxu0 0.0
        %v1007 = vand.u32 %v451, 4294901760
        %1008 = vmatmul.mubr.f32.gmra.mrb[0].mxu0 %v1007
        %v1009 = vpop.f32.mrb[0].mxu0
        %v1010 = vadd.f32 %v891, %v1009
        %v1011 = vpop.f32.mrb[0].mxu0
        %1012 = vmatprep.mubr.f32.mxu0 0.0
        %v1013 = vand.u32 %v454, 4294901760
        %1014 = vmatmul.mubr.f32.gmra.mrb[0].mxu0 %v1013
        %v1015 = vpop.f32.mrb[0].mxu0
        %v1016 = vadd.f32 %v899, %v1015
        %v1017 = vpop.f32.mrb[0].mxu0
        %1018 = vmatprep.mubr.f32.mxu0 0.0
        %v1019 = vand.u32 %v457, 4294901760
        %1020 = vmatmul.mubr.f32.gmra.mrb[0].mxu0 %v1019
        %v1021 = vpop.f32.mrb[0].mxu0
        %v1022 = vadd.f32 %v907, %v1021
        %v1023 = vpop.f32.mrb[0].mxu0
        %1024 = vmatprep.mubr.f32.mxu0 0.0
        %v1025 = vand.u32 %v460, 4294901760
        %1026 = vmatmul.mubr.f32.gmra.mrb[0].mxu0 %v1025
        %v1027 = vpop.f32.mrb[0].mxu0
        %v1028 = vadd.f32 %v915, %v1027
        %v1029 = vpop.f32.mrb[0].mxu0
        %1030 = vdwg.mxu0
        %1031 = vmatprep.subr.mxu0 0.0
        %v1032 = vand.u32 %v441, 4294901760
        %1033 = vmatpush1.msra.mxu0 %v1032
        %1034 = vmatprep.subr.mxu0 0.0
        %v1035 = vand.u32 %v442, 4294901760
        %1036 = vmatpush1.msra.mxu0 %v1035
        %1037 = vmatprep.subr.mxu0 0.0
        %v1038 = vand.u32 %v443, 4294901760
        %1039 = vmatpush1.msra.mxu0 %v1038
        %1040 = vmatprep.subr.mxu0 0.0
        %v1041 = vand.u32 %v444, 4294901760
        %1042 = vmatpush1.msra.mxu0 %v1041
        %1043 = vmatprep.subr.mxu0 0.0
        %v1044 = vand.u32 %v445, 4294901760
        %1045 = vmatpush1.msra.mxu0 %v1044
        %1046 = vmatprep.subr.mxu0 0.0
        %v1047 = vand.u32 %v446, 4294901760
        %1048 = vmatpush1.msra.mxu0 %v1047
        %1049 = vmatprep.subr.mxu0 0.0
        %v1050 = vand.u32 %v447, 4294901760
        %1051 = vmatpush1.msra.mxu0 %v1050
        %1052 = vmatprep.subr.mxu0 0.0
        %v1053 = vand.u32 %v448, 4294901760
        %1054 = vmatpush1.msra.mxu0 %v1053
        %1055 = vmatprep.subr.mxu0 0.0
        %1056 = vmatpush1.msra.mxu0 0.0
        %1057 = vmatprep.subr.mxu0 0.0
        %1058 = vmatpush1.msra.mxu0 0.0
        %1059 = vmatprep.subr.mxu0 0.0
        %1060 = vmatpush1.msra.mxu0 0.0
        %1061 = vmatprep.subr.mxu0 0.0
        %1062 = vmatpush1.msra.mxu0 0.0
        %1063 = vmatprep.subr.mxu0 0.0
        %1064 = vmatpush1.msra.mxu0 0.0
        %1065 = vmatprep.subr.mxu0 0.0
        %1066 = vmatpush1.msra.mxu0 0.0
        %1067 = vmatprep.subr.mxu0 0.0
        %1068 = vmatpush1.msra.mxu0 0.0
        %1069 = vmatprep.subr.mxu0 0.0
        %1070 = vmatpush1.msra.mxu0 0.0
        %1071 = vmatprep.subr.mxu0 0.0
        %1072 = vmatpush1.msra.mxu0 0.0
        %1073 = vmatprep.subr.mxu0 0.0
        %1074 = vmatpush1.msra.mxu0 0.0
        %1075 = vmatprep.subr.mxu0 0.0
        %1076 = vmatpush1.msra.mxu0 0.0
        %1077 = vmatprep.subr.mxu0 0.0
        %1078 = vmatpush1.msra.mxu0 0.0
        %1079 = vmatprep.subr.mxu0 0.0
        %1080 = vmatpush1.msra.mxu0 0.0
        %1081 = vmatprep.subr.mxu0 0.0
        %1082 = vmatpush1.msra.mxu0 0.0
        %1083 = vmatprep.subr.mxu0 0.0
        %1084 = vmatpush1.msra.mxu0 0.0
        %1085 = vmatprep.subr.mxu0 0.0
        %1086 = vmatpush1.msra.mxu0 0.0
        %1087 = vmatprep.subr.mxu0 0.0
        %1088 = vmatpush1.msra.mxu0 0.0
        %1089 = vmatprep.subr.mxu0 0.0
        %1090 = vmatpush1.msra.mxu0 0.0
        %1091 = vmatprep.subr.mxu0 0.0
        %1092 = vmatpush1.msra.mxu0 0.0
        %1093 = vmatprep.subr.mxu0 0.0
        %1094 = vmatpush1.msra.mxu0 0.0
        %1095 = vmatprep.subr.mxu0 0.0
        %1096 = vmatpush1.msra.mxu0 0.0
        %1097 = vmatprep.subr.mxu0 0.0
        %1098 = vmatpush1.msra.mxu0 0.0
        %1099 = vmatprep.subr.mxu0 0.0
        %1100 = vmatpush1.msra.mxu0 0.0
        %1101 = vmatprep.subr.mxu0 0.0
        %1102 = vmatpush1.msra.mxu0 0.0
        %1103 = vmatprep.mubr.f32.mxu0 0.0
        %v1104 = vand.u32 %v451, 4294901760
        %1105 = vmatmul.mubr.f32.gmra.mrb[0].mxu0 %v1104
        %v1106 = vpop.f32.mrb[0].mxu0
        %v1107 = vadd.f32 %v1010, %v1106
        %v1108 = vpop.f32.mrb[0].mxu0
        %1109 = vmatprep.mubr.f32.mxu0 0.0
        %v1110 = vand.u32 %v454, 4294901760
        %1111 = vmatmul.mubr.f32.gmra.mrb[0].mxu0 %v1110
        %v1112 = vpop.f32.mrb[0].mxu0
        %v1113 = vadd.f32 %v1016, %v1112
        %v1114 = vpop.f32.mrb[0].mxu0
        %1115 = vmatprep.mubr.f32.mxu0 0.0
        %v1116 = vand.u32 %v457, 4294901760
        %1117 = vmatmul.mubr.f32.gmra.mrb[0].mxu0 %v1116
        %v1118 = vpop.f32.mrb[0].mxu0
        %v1119 = vadd.f32 %v1022, %v1118
        %v1120 = vpop.f32.mrb[0].mxu0
        %1121 = vmatprep.mubr.f32.mxu0 0.0
        %v1122 = vand.u32 %v460, 4294901760
        %1123 = vmatmul.mubr.f32.gmra.mrb[0].mxu0 %v1122
        %v1124 = vpop.f32.mrb[0].mxu0
        %v1125 = vadd.f32 %v1028, %v1124
        %v1126 = vpop.f32.mrb[0].mxu0
        %1127 = vdwg.mxu0
        %v1128 = vld [vmem:[%s353] sm:$0xff]
        %v1129 = vld [vmem:[%s353 + $0x8] sm:$0xff]
        %v1130 = vld [vmem:[%s353 + $0x10] sm:$0xff]
        %v1131 = vld [vmem:[%s353 + $0x18] sm:$0xff]
        %1132 = vmatprep.subr.mxu0 0.0
        %v1133 = vand.u32 %v413, 4294901760
        %1134 = vmatpush1.msra.mxu0 %v1133
        %1135 = vmatprep.subr.mxu0 0.0
        %v1136 = vand.u32 %v414, 4294901760
        %1137 = vmatpush1.msra.mxu0 %v1136
        %1138 = vmatprep.subr.mxu0 0.0
        %v1139 = vand.u32 %v415, 4294901760
        %1140 = vmatpush1.msra.mxu0 %v1139
        %1141 = vmatprep.subr.mxu0 0.0
        %v1142 = vand.u32 %v416, 4294901760
        %1143 = vmatpush1.msra.mxu0 %v1142
        %1144 = vmatprep.subr.mxu0 0.0
        %v1145 = vand.u32 %v417, 4294901760
        %1146 = vmatpush1.msra.mxu0 %v1145
        %1147 = vmatprep.subr.mxu0 0.0
        %v1148 = vand.u32 %v418, 4294901760
        %1149 = vmatpush1.msra.mxu0 %v1148
        %1150 = vmatprep.subr.mxu0 0.0
        %v1151 = vand.u32 %v419, 4294901760
        %1152 = vmatpush1.msra.mxu0 %v1151
        %1153 = vmatprep.subr.mxu0 0.0
        %v1154 = vand.u32 %v420, 4294901760
        %1155 = vmatpush1.msra.mxu0 %v1154
        %1156 = vmatprep.subr.mxu0 0.0
        %v1157 = vand.u32 %v421, 4294901760
        %1158 = vmatpush1.msra.mxu0 %v1157
        %1159 = vmatprep.subr.mxu0 0.0
        %v1160 = vand.u32 %v422, 4294901760
        %1161 = vmatpush1.msra.mxu0 %v1160
        %1162 = vmatprep.subr.mxu0 0.0
        %v1163 = vand.u32 %v423, 4294901760
        %1164 = vmatpush1.msra.mxu0 %v1163
        %1165 = vmatprep.subr.mxu0 0.0
        %v1166 = vand.u32 %v424, 4294901760
        %1167 = vmatpush1.msra.mxu0 %v1166
        %1168 = vmatprep.subr.mxu0 0.0
        %v1169 = vand.u32 %v425, 4294901760
        %1170 = vmatpush1.msra.mxu0 %v1169
        %1171 = vmatprep.subr.mxu0 0.0
        %v1172 = vand.u32 %v426, 4294901760
        %1173 = vmatpush1.msra.mxu0 %v1172
        %1174 = vmatprep.subr.mxu0 0.0
        %v1175 = vand.u32 %v427, 4294901760
        %1176 = vmatpush1.msra.mxu0 %v1175
        %1177 = vmatprep.subr.mxu0 0.0
        %v1178 = vand.u32 %v428, 4294901760
        %1179 = vmatpush1.msra.mxu0 %v1178
        %1180 = vmatprep.subr.mxu0 0.0
        %1181 = vmatpush1.msra.mxu0 0.0
        %1182 = vmatprep.subr.mxu0 0.0
        %1183 = vmatpush1.msra.mxu0 0.0
        %1184 = vmatprep.subr.mxu0 0.0
        %1185 = vmatpush1.msra.mxu0 0.0
        %1186 = vmatprep.subr.mxu0 0.0
        %1187 = vmatpush1.msra.mxu0 0.0
        %1188 = vmatprep.subr.mxu0 0.0
        %1189 = vmatpush1.msra.mxu0 0.0
        %1190 = vmatprep.subr.mxu0 0.0
        %1191 = vmatpush1.msra.mxu0 0.0
        %1192 = vmatprep.subr.mxu0 0.0
        %1193 = vmatpush1.msra.mxu0 0.0
        %1194 = vmatprep.subr.mxu0 0.0
        %1195 = vmatpush1.msra.mxu0 0.0
        %1196 = vmatprep.subr.mxu0 0.0
        %1197 = vmatpush1.msra.mxu0 0.0
        %1198 = vmatprep.subr.mxu0 0.0
        %1199 = vmatpush1.msra.mxu0 0.0
        %1200 = vmatprep.subr.mxu0 0.0
        %1201 = vmatpush1.msra.mxu0 0.0
        %1202 = vmatprep.subr.mxu0 0.0
        %1203 = vmatpush1.msra.mxu0 0.0
        %1204 = vmatprep.subr.mxu0 0.0
        %1205 = vmatpush1.msra.mxu0 0.0
        %1206 = vmatprep.subr.mxu0 0.0
        %1207 = vmatpush1.msra.mxu0 0.0
        %1208 = vmatprep.subr.mxu0 0.0
        %1209 = vmatpush1.msra.mxu0 0.0
        %1210 = vmatprep.subr.mxu0 0.0
        %1211 = vmatpush1.msra.mxu0 0.0
        %1212 = vmatprep.mubr.f32.mxu0 0.0
        %v1213 = vand.u32 %v1107, 4294901760
        %v1214 = vsub.f32 %v1107, %v1213
        %v1215 = vand.u32 %v1214, 4294901760
        %v1216 = vsub.f32 %v1214, %v1215
        %v1217 = vand.u32 %v1216, 4294901760
        %1218 = vmatmul.mubr.f32.gmra.mrb[0].mxu0 %v1217
        %v1219 = vpop.f32.mrb[0].mxu0
        %v1220 = vadd.f32 %v1128, %v1219
        %v1221 = vpop.f32.mrb[0].mxu0
        %1222 = vmatprep.mubr.f32.mxu0 0.0
        %v1223 = vand.u32 %v1113, 4294901760
        %v1224 = vsub.f32 %v1113, %v1223
        %v1225 = vand.u32 %v1224, 4294901760
        %v1226 = vsub.f32 %v1224, %v1225
        %v1227 = vand.u32 %v1226, 4294901760
        %1228 = vmatmul.mubr.f32.gmra.mrb[0].mxu0 %v1227
        %v1229 = vpop.f32.mrb[0].mxu0
        %v1230 = vadd.f32 %v1129, %v1229
        %v1231 = vpop.f32.mrb[0].mxu0
        %1232 = vmatprep.mubr.f32.mxu0 0.0
        %v1233 = vand.u32 %v1119, 4294901760
        %v1234 = vsub.f32 %v1119, %v1233
        %v1235 = vand.u32 %v1234, 4294901760
        %v1236 = vsub.f32 %v1234, %v1235
        %v1237 = vand.u32 %v1236, 4294901760
        %1238 = vmatmul.mubr.f32.gmra.mrb[0].mxu0 %v1237
        %v1239 = vpop.f32.mrb[0].mxu0
        %v1240 = vadd.f32 %v1130, %v1239
        %v1241 = vpop.f32.mrb[0].mxu0
        %1242 = vmatprep.mubr.f32.mxu0 0.0
        %v1243 = vand.u32 %v1125, 4294901760
        %v1244 = vsub.f32 %v1125, %v1243
        %v1245 = vand.u32 %v1244, 4294901760
        %v1246 = vsub.f32 %v1244, %v1245
        %v1247 = vand.u32 %v1246, 4294901760
        %1248 = vmatmul.mubr.f32.gmra.mrb[0].mxu0 %v1247
        %v1249 = vpop.f32.mrb[0].mxu0
        %v1250 = vadd.f32 %v1131, %v1249
        %v1251 = vpop.f32.mrb[0].mxu0
        %1252 = vdwg.mxu0
        %1253 = vmatprep.subr.mxu0 0.0
        %v1254 = vand.u32 %v413, 4294901760
        %v1255 = vsub.f32 %v413, %v1254
        %v1256 = vand.u32 %v1255, 4294901760
        %v1257 = vsub.f32 %v1255, %v1256
        %v1258 = vand.u32 %v1257, 4294901760
        %1259 = vmatpush1.msra.mxu0 %v1258
        %1260 = vmatprep.subr.mxu0 0.0
        %v1261 = vand.u32 %v414, 4294901760
        %v1262 = vsub.f32 %v414, %v1261
        %v1263 = vand.u32 %v1262, 4294901760
        %v1264 = vsub.f32 %v1262, %v1263
        %v1265 = vand.u32 %v1264, 4294901760
        %1266 = vmatpush1.msra.mxu0 %v1265
        %1267 = vmatprep.subr.mxu0 0.0
        %v1268 = vand.u32 %v415, 4294901760
        %v1269 = vsub.f32 %v415, %v1268
        %v1270 = vand.u32 %v1269, 4294901760
        %v1271 = vsub.f32 %v1269, %v1270
        %v1272 = vand.u32 %v1271, 4294901760
        %1273 = vmatpush1.msra.mxu0 %v1272
        %1274 = vmatprep.subr.mxu0 0.0
        %v1275 = vand.u32 %v416, 4294901760
        %v1276 = vsub.f32 %v416, %v1275
        %v1277 = vand.u32 %v1276, 4294901760
        %v1278 = vsub.f32 %v1276, %v1277
        %v1279 = vand.u32 %v1278, 4294901760
        %1280 = vmatpush1.msra.mxu0 %v1279
        %1281 = vmatprep.subr.mxu0 0.0
        %v1282 = vand.u32 %v417, 4294901760
        %v1283 = vsub.f32 %v417, %v1282
        %v1284 = vand.u32 %v1283, 4294901760
        %v1285 = vsub.f32 %v1283, %v1284
        %v1286 = vand.u32 %v1285, 4294901760
        %1287 = vmatpush1.msra.mxu0 %v1286
        %1288 = vmatprep.subr.mxu0 0.0
        %v1289 = vand.u32 %v418, 4294901760
        %v1290 = vsub.f32 %v418, %v1289
        %v1291 = vand.u32 %v1290, 4294901760
        %v1292 = vsub.f32 %v1290, %v1291
        %v1293 = vand.u32 %v1292, 4294901760
        %1294 = vmatpush1.msra.mxu0 %v1293
        %1295 = vmatprep.subr.mxu0 0.0
        %v1296 = vand.u32 %v419, 4294901760
        %v1297 = vsub.f32 %v419, %v1296
        %v1298 = vand.u32 %v1297, 4294901760
        %v1299 = vsub.f32 %v1297, %v1298
        %v1300 = vand.u32 %v1299, 4294901760
        %1301 = vmatpush1.msra.mxu0 %v1300
        %1302 = vmatprep.subr.mxu0 0.0
        %v1303 = vand.u32 %v420, 4294901760
        %v1304 = vsub.f32 %v420, %v1303
        %v1305 = vand.u32 %v1304, 4294901760
        %v1306 = vsub.f32 %v1304, %v1305
        %v1307 = vand.u32 %v1306, 4294901760
        %1308 = vmatpush1.msra.mxu0 %v1307
        %1309 = vmatprep.subr.mxu0 0.0
        %v1310 = vand.u32 %v421, 4294901760
        %v1311 = vsub.f32 %v421, %v1310
        %v1312 = vand.u32 %v1311, 4294901760
        %v1313 = vsub.f32 %v1311, %v1312
        %v1314 = vand.u32 %v1313, 4294901760
        %1315 = vmatpush1.msra.mxu0 %v1314
        %1316 = vmatprep.subr.mxu0 0.0
        %v1317 = vand.u32 %v422, 4294901760
        %v1318 = vsub.f32 %v422, %v1317
        %v1319 = vand.u32 %v1318, 4294901760
        %v1320 = vsub.f32 %v1318, %v1319
        %v1321 = vand.u32 %v1320, 4294901760
        %1322 = vmatpush1.msra.mxu0 %v1321
        %1323 = vmatprep.subr.mxu0 0.0
        %v1324 = vand.u32 %v423, 4294901760
        %v1325 = vsub.f32 %v423, %v1324
        %v1326 = vand.u32 %v1325, 4294901760
        %v1327 = vsub.f32 %v1325, %v1326
        %v1328 = vand.u32 %v1327, 4294901760
        %1329 = vmatpush1.msra.mxu0 %v1328
        %1330 = vmatprep.subr.mxu0 0.0
        %v1331 = vand.u32 %v424, 4294901760
        %v1332 = vsub.f32 %v424, %v1331
        %v1333 = vand.u32 %v1332, 4294901760
        %v1334 = vsub.f32 %v1332, %v1333
        %v1335 = vand.u32 %v1334, 4294901760
        %1336 = vmatpush1.msra.mxu0 %v1335
        %1337 = vmatprep.subr.mxu0 0.0
        %v1338 = vand.u32 %v425, 4294901760
        %v1339 = vsub.f32 %v425, %v1338
        %v1340 = vand.u32 %v1339, 4294901760
        %v1341 = vsub.f32 %v1339, %v1340
        %v1342 = vand.u32 %v1341, 4294901760
        %1343 = vmatpush1.msra.mxu0 %v1342
        %1344 = vmatprep.subr.mxu0 0.0
        %v1345 = vand.u32 %v426, 4294901760
        %v1346 = vsub.f32 %v426, %v1345
        %v1347 = vand.u32 %v1346, 4294901760
        %v1348 = vsub.f32 %v1346, %v1347
        %v1349 = vand.u32 %v1348, 4294901760
        %1350 = vmatpush1.msra.mxu0 %v1349
        %1351 = vmatprep.subr.mxu0 0.0
        %v1352 = vand.u32 %v427, 4294901760
        %v1353 = vsub.f32 %v427, %v1352
        %v1354 = vand.u32 %v1353, 4294901760
        %v1355 = vsub.f32 %v1353, %v1354
        %v1356 = vand.u32 %v1355, 4294901760
        %1357 = vmatpush1.msra.mxu0 %v1356
        %1358 = vmatprep.subr.mxu0 0.0
        %v1359 = vand.u32 %v428, 4294901760
        %v1360 = vsub.f32 %v428, %v1359
        %v1361 = vand.u32 %v1360, 4294901760
        %v1362 = vsub.f32 %v1360, %v1361
        %v1363 = vand.u32 %v1362, 4294901760
        %1364 = vmatpush1.msra.mxu0 %v1363
        %1365 = vmatprep.subr.mxu0 0.0
        %1366 = vmatpush1.msra.mxu0 0.0
        %1367 = vmatprep.subr.mxu0 0.0
        %1368 = vmatpush1.msra.mxu0 0.0
        %1369 = vmatprep.subr.mxu0 0.0
        %1370 = vmatpush1.msra.mxu0 0.0
        %1371 = vmatprep.subr.mxu0 0.0
        %1372 = vmatpush1.msra.mxu0 0.0
        %1373 = vmatprep.subr.mxu0 0.0
        %1374 = vmatpush1.msra.mxu0 0.0
        %1375 = vmatprep.subr.mxu0 0.0
        %1376 = vmatpush1.msra.mxu0 0.0
        %1377 = vmatprep.subr.mxu0 0.0
        %1378 = vmatpush1.msra.mxu0 0.0
        %1379 = vmatprep.subr.mxu0 0.0
        %1380 = vmatpush1.msra.mxu0 0.0
        %1381 = vmatprep.subr.mxu0 0.0
        %1382 = vmatpush1.msra.mxu0 0.0
        %1383 = vmatprep.subr.mxu0 0.0
        %1384 = vmatpush1.msra.mxu0 0.0
        %1385 = vmatprep.subr.mxu0 0.0
        %1386 = vmatpush1.msra.mxu0 0.0
        %1387 = vmatprep.subr.mxu0 0.0
        %1388 = vmatpush1.msra.mxu0 0.0
        %1389 = vmatprep.subr.mxu0 0.0
        %1390 = vmatpush1.msra.mxu0 0.0
        %1391 = vmatprep.subr.mxu0 0.0
        %1392 = vmatpush1.msra.mxu0 0.0
        %1393 = vmatprep.subr.mxu0 0.0
        %1394 = vmatpush1.msra.mxu0 0.0
        %1395 = vmatprep.subr.mxu0 0.0
        %1396 = vmatpush1.msra.mxu0 0.0
        %1397 = vmatprep.mubr.f32.mxu0 0.0
        %v1398 = vand.u32 %v1107, 4294901760
        %1399 = vmatmul.mubr.f32.gmra.mrb[0].mxu0 %v1398
        %v1400 = vpop.f32.mrb[0].mxu0
        %v1401 = vadd.f32 %v1220, %v1400
        %v1402 = vpop.f32.mrb[0].mxu0
        %1403 = vmatprep.mubr.f32.mxu0 0.0
        %v1404 = vand.u32 %v1113, 4294901760
        %1405 = vmatmul.mubr.f32.gmra.mrb[0].mxu0 %v1404
        %v1406 = vpop.f32.mrb[0].mxu0
        %v1407 = vadd.f32 %v1230, %v1406
        %v1408 = vpop.f32.mrb[0].mxu0
        %1409 = vmatprep.mubr.f32.mxu0 0.0
        %v1410 = vand.u32 %v1119, 4294901760
        %1411 = vmatmul.mubr.f32.gmra.mrb[0].mxu0 %v1410
        %v1412 = vpop.f32.mrb[0].mxu0
        %v1413 = vadd.f32 %v1240, %v1412
        %v1414 = vpop.f32.mrb[0].mxu0
        %1415 = vmatprep.mubr.f32.mxu0 0.0
        %v1416 = vand.u32 %v1125, 4294901760
        %1417 = vmatmul.mubr.f32.gmra.mrb[0].mxu0 %v1416
        %v1418 = vpop.f32.mrb[0].mxu0
        %v1419 = vadd.f32 %v1250, %v1418
        %v1420 = vpop.f32.mrb[0].mxu0
        %1421 = vdwg.mxu0
        %1422 = vmatprep.subr.mxu0 0.0
        %v1423 = vand.u32 %v413, 4294901760
        %v1424 = vsub.f32 %v413, %v1423
        %1425 = vmatpush1.msra.mxu0 %v1424
        %1426 = vmatprep.subr.mxu0 0.0
        %v1427 = vand.u32 %v414, 4294901760
        %v1428 = vsub.f32 %v414, %v1427
        %1429 = vmatpush1.msra.mxu0 %v1428
        %1430 = vmatprep.subr.mxu0 0.0
        %v1431 = vand.u32 %v415, 4294901760
        %v1432 = vsub.f32 %v415, %v1431
        %1433 = vmatpush1.msra.mxu0 %v1432
        %1434 = vmatprep.subr.mxu0 0.0
        %v1435 = vand.u32 %v416, 4294901760
        %v1436 = vsub.f32 %v416, %v1435
        %1437 = vmatpush1.msra.mxu0 %v1436
        %1438 = vmatprep.subr.mxu0 0.0
        %v1439 = vand.u32 %v417, 4294901760
        %v1440 = vsub.f32 %v417, %v1439
        %1441 = vmatpush1.msra.mxu0 %v1440
        %1442 = vmatprep.subr.mxu0 0.0
        %v1443 = vand.u32 %v418, 4294901760
        %v1444 = vsub.f32 %v418, %v1443
        %1445 = vmatpush1.msra.mxu0 %v1444
        %1446 = vmatprep.subr.mxu0 0.0
        %v1447 = vand.u32 %v419, 4294901760
        %v1448 = vsub.f32 %v419, %v1447
        %1449 = vmatpush1.msra.mxu0 %v1448
        %1450 = vmatprep.subr.mxu0 0.0
        %v1451 = vand.u32 %v420, 4294901760
        %v1452 = vsub.f32 %v420, %v1451
        %1453 = vmatpush1.msra.mxu0 %v1452
        %1454 = vmatprep.subr.mxu0 0.0
        %v1455 = vand.u32 %v421, 4294901760
        %v1456 = vsub.f32 %v421, %v1455
        %1457 = vmatpush1.msra.mxu0 %v1456
        %1458 = vmatprep.subr.mxu0 0.0
        %v1459 = vand.u32 %v422, 4294901760
        %v1460 = vsub.f32 %v422, %v1459
        %1461 = vmatpush1.msra.mxu0 %v1460
        %1462 = vmatprep.subr.mxu0 0.0
        %v1463 = vand.u32 %v423, 4294901760
        %v1464 = vsub.f32 %v423, %v1463
        %1465 = vmatpush1.msra.mxu0 %v1464
        %1466 = vmatprep.subr.mxu0 0.0
        %v1467 = vand.u32 %v424, 4294901760
        %v1468 = vsub.f32 %v424, %v1467
        %1469 = vmatpush1.msra.mxu0 %v1468
        %1470 = vmatprep.subr.mxu0 0.0
        %v1471 = vand.u32 %v425, 4294901760
        %v1472 = vsub.f32 %v425, %v1471
        %1473 = vmatpush1.msra.mxu0 %v1472
        %1474 = vmatprep.subr.mxu0 0.0
        %v1475 = vand.u32 %v426, 4294901760
        %v1476 = vsub.f32 %v426, %v1475
        %1477 = vmatpush1.msra.mxu0 %v1476
        %1478 = vmatprep.subr.mxu0 0.0
        %v1479 = vand.u32 %v427, 4294901760
        %v1480 = vsub.f32 %v427, %v1479
        %1481 = vmatpush1.msra.mxu0 %v1480
        %1482 = vmatprep.subr.mxu0 0.0
        %v1483 = vand.u32 %v428, 4294901760
        %v1484 = vsub.f32 %v428, %v1483
        %1485 = vmatpush1.msra.mxu0 %v1484
        %1486 = vmatprep.subr.mxu0 0.0
        %1487 = vmatpush1.msra.mxu0 0.0
        %1488 = vmatprep.subr.mxu0 0.0
        %1489 = vmatpush1.msra.mxu0 0.0
        %1490 = vmatprep.subr.mxu0 0.0
        %1491 = vmatpush1.msra.mxu0 0.0
        %1492 = vmatprep.subr.mxu0 0.0
        %1493 = vmatpush1.msra.mxu0 0.0
        %1494 = vmatprep.subr.mxu0 0.0
        %1495 = vmatpush1.msra.mxu0 0.0
        %1496 = vmatprep.subr.mxu0 0.0
        %1497 = vmatpush1.msra.mxu0 0.0
        %1498 = vmatprep.subr.mxu0 0.0
        %1499 = vmatpush1.msra.mxu0 0.0
        %1500 = vmatprep.subr.mxu0 0.0
        %1501 = vmatpush1.msra.mxu0 0.0
        %1502 = vmatprep.subr.mxu0 0.0
        %1503 = vmatpush1.msra.mxu0 0.0
        %1504 = vmatprep.subr.mxu0 0.0
        %1505 = vmatpush1.msra.mxu0 0.0
        %1506 = vmatprep.subr.mxu0 0.0
        %1507 = vmatpush1.msra.mxu0 0.0
        %1508 = vmatprep.subr.mxu0 0.0
        %1509 = vmatpush1.msra.mxu0 0.0
        %1510 = vmatprep.subr.mxu0 0.0
        %1511 = vmatpush1.msra.mxu0 0.0
        %1512 = vmatprep.subr.mxu0 0.0
        %1513 = vmatpush1.msra.mxu0 0.0
        %1514 = vmatprep.subr.mxu0 0.0
        %1515 = vmatpush1.msra.mxu0 0.0
        %1516 = vmatprep.subr.mxu0 0.0
        %1517 = vmatpush1.msra.mxu0 0.0
        %1518 = vmatprep.mubr.f32.mxu0 0.0
        %v1519 = vand.u32 %v1107, 4294901760
        %v1520 = vsub.f32 %v1107, %v1519
        %1521 = vmatmul.mubr.f32.gmra.mrb[0].mxu0 %v1520
        %v1522 = vpop.f32.mrb[0].mxu0
        %v1523 = vadd.f32 %v1401, %v1522
        %v1524 = vpop.f32.mrb[0].mxu0
        %1525 = vmatprep.mubr.f32.mxu0 0.0
        %v1526 = vand.u32 %v1113, 4294901760
        %v1527 = vsub.f32 %v1113, %v1526
        %1528 = vmatmul.mubr.f32.gmra.mrb[0].mxu0 %v1527
        %v1529 = vpop.f32.mrb[0].mxu0
        %v1530 = vadd.f32 %v1407, %v1529
        %v1531 = vpop.f32.mrb[0].mxu0
        %1532 = vmatprep.mubr.f32.mxu0 0.0
        %v1533 = vand.u32 %v1119, 4294901760
        %v1534 = vsub.f32 %v1119, %v1533
        %1535 = vmatmul.mubr.f32.gmra.mrb[0].mxu0 %v1534
        %v1536 = vpop.f32.mrb[0].mxu0
        %v1537 = vadd.f32 %v1413, %v1536
        %v1538 = vpop.f32.mrb[0].mxu0
        %1539 = vmatprep.mubr.f32.mxu0 0.0
        %v1540 = vand.u32 %v1125, 4294901760
        %v1541 = vsub.f32 %v1125, %v1540
        %1542 = vmatmul.mubr.f32.gmra.mrb[0].mxu0 %v1541
        %v1543 = vpop.f32.mrb[0].mxu0
        %v1544 = vadd.f32 %v1419, %v1543
        %v1545 = vpop.f32.mrb[0].mxu0
        %1546 = vdwg.mxu0
        %1547 = vmatprep.subr.mxu0 0.0
        %v1548 = vand.u32 %v413, 4294901760
        %1549 = vmatpush1.msra.mxu0 %v1548
        %1550 = vmatprep.subr.mxu0 0.0
        %v1551 = vand.u32 %v414, 4294901760
        %1552 = vmatpush1.msra.mxu0 %v1551
        %1553 = vmatprep.subr.mxu0 0.0
        %v1554 = vand.u32 %v415, 4294901760
        %1555 = vmatpush1.msra.mxu0 %v1554
        %1556 = vmatprep.subr.mxu0 0.0
        %v1557 = vand.u32 %v416, 4294901760
        %1558 = vmatpush1.msra.mxu0 %v1557
        %1559 = vmatprep.subr.mxu0 0.0
        %v1560 = vand.u32 %v417, 4294901760
        %1561 = vmatpush1.msra.mxu0 %v1560
        %1562 = vmatprep.subr.mxu0 0.0
        %v1563 = vand.u32 %v418, 4294901760
        %1564 = vmatpush1.msra.mxu0 %v1563
        %1565 = vmatprep.subr.mxu0 0.0
        %v1566 = vand.u32 %v419, 4294901760
        %1567 = vmatpush1.msra.mxu0 %v1566
        %1568 = vmatprep.subr.mxu0 0.0
        %v1569 = vand.u32 %v420, 4294901760
        %1570 = vmatpush1.msra.mxu0 %v1569
        %1571 = vmatprep.subr.mxu0 0.0
        %v1572 = vand.u32 %v421, 4294901760
        %1573 = vmatpush1.msra.mxu0 %v1572
        %1574 = vmatprep.subr.mxu0 0.0
        %v1575 = vand.u32 %v422, 4294901760
        %1576 = vmatpush1.msra.mxu0 %v1575
        %1577 = vmatprep.subr.mxu0 0.0
        %v1578 = vand.u32 %v423, 4294901760
        %1579 = vmatpush1.msra.mxu0 %v1578
        %1580 = vmatprep.subr.mxu0 0.0
        %v1581 = vand.u32 %v424, 4294901760
        %1582 = vmatpush1.msra.mxu0 %v1581
        %1583 = vmatprep.subr.mxu0 0.0
        %v1584 = vand.u32 %v425, 4294901760
        %1585 = vmatpush1.msra.mxu0 %v1584
        %1586 = vmatprep.subr.mxu0 0.0
        %v1587 = vand.u32 %v426, 4294901760
        %1588 = vmatpush1.msra.mxu0 %v1587
        %1589 = vmatprep.subr.mxu0 0.0
        %v1590 = vand.u32 %v427, 4294901760
        %1591 = vmatpush1.msra.mxu0 %v1590
        %1592 = vmatprep.subr.mxu0 0.0
        %v1593 = vand.u32 %v428, 4294901760
        %1594 = vmatpush1.msra.mxu0 %v1593
        %1595 = vmatprep.subr.mxu0 0.0
        %1596 = vmatpush1.msra.mxu0 0.0
        %1597 = vmatprep.subr.mxu0 0.0
        %1598 = vmatpush1.msra.mxu0 0.0
        %1599 = vmatprep.subr.mxu0 0.0
        %1600 = vmatpush1.msra.mxu0 0.0
        %1601 = vmatprep.subr.mxu0 0.0
        %1602 = vmatpush1.msra.mxu0 0.0
        %1603 = vmatprep.subr.mxu0 0.0
        %1604 = vmatpush1.msra.mxu0 0.0
        %1605 = vmatprep.subr.mxu0 0.0
        %1606 = vmatpush1.msra.mxu0 0.0
        %1607 = vmatprep.subr.mxu0 0.0
        %1608 = vmatpush1.msra.mxu0 0.0
        %1609 = vmatprep.subr.mxu0 0.0
        %1610 = vmatpush1.msra.mxu0 0.0
        %1611 = vmatprep.subr.mxu0 0.0
        %1612 = vmatpush1.msra.mxu0 0.0
        %1613 = vmatprep.subr.mxu0 0.0
        %1614 = vmatpush1.msra.mxu0 0.0
        %1615 = vmatprep.subr.mxu0 0.0
        %1616 = vmatpush1.msra.mxu0 0.0
        %1617 = vmatprep.subr.mxu0 0.0
        %1618 = vmatpush1.msra.mxu0 0.0
        %1619 = vmatprep.subr.mxu0 0.0
        %1620 = vmatpush1.msra.mxu0 0.0
        %1621 = vmatprep.subr.mxu0 0.0
        %1622 = vmatpush1.msra.mxu0 0.0
        %1623 = vmatprep.subr.mxu0 0.0
        %1624 = vmatpush1.msra.mxu0 0.0
        %1625 = vmatprep.subr.mxu0 0.0
        %1626 = vmatpush1.msra.mxu0 0.0
        %1627 = vmatprep.mubr.f32.mxu0 0.0
        %v1628 = vand.u32 %v1107, 4294901760
        %v1629 = vsub.f32 %v1107, %v1628
        %v1630 = vand.u32 %v1629, 4294901760
        %1631 = vmatmul.mubr.f32.gmra.mrb[0].mxu0 %v1630
        %v1632 = vpop.f32.mrb[0].mxu0
        %v1633 = vadd.f32 %v1523, %v1632
        %v1634 = vpop.f32.mrb[0].mxu0
        %1635 = vmatprep.mubr.f32.mxu0 0.0
        %v1636 = vand.u32 %v1113, 4294901760
        %v1637 = vsub.f32 %v1113, %v1636
        %v1638 = vand.u32 %v1637, 4294901760
        %1639 = vmatmul.mubr.f32.gmra.mrb[0].mxu0 %v1638
        %v1640 = vpop.f32.mrb[0].mxu0
        %v1641 = vadd.f32 %v1530, %v1640
        %v1642 = vpop.f32.mrb[0].mxu0
        %1643 = vmatprep.mubr.f32.mxu0 0.0
        %v1644 = vand.u32 %v1119, 4294901760
        %v1645 = vsub.f32 %v1119, %v1644
        %v1646 = vand.u32 %v1645, 4294901760
        %1647 = vmatmul.mubr.f32.gmra.mrb[0].mxu0 %v1646
        %v1648 = vpop.f32.mrb[0].mxu0
        %v1649 = vadd.f32 %v1537, %v1648
        %v1650 = vpop.f32.mrb[0].mxu0
        %1651 = vmatprep.mubr.f32.mxu0 0.0
        %v1652 = vand.u32 %v1125, 4294901760
        %v1653 = vsub.f32 %v1125, %v1652
        %v1654 = vand.u32 %v1653, 4294901760
        %1655 = vmatmul.mubr.f32.gmra.mrb[0].mxu0 %v1654
        %v1656 = vpop.f32.mrb[0].mxu0
        %v1657 = vadd.f32 %v1544, %v1656
        %v1658 = vpop.f32.mrb[0].mxu0
        %1659 = vdwg.mxu0
        %1660 = vmatprep.subr.mxu0 0.0
        %v1661 = vand.u32 %v413, 4294901760
        %v1662 = vsub.f32 %v413, %v1661
        %v1663 = vand.u32 %v1662, 4294901760
        %1664 = vmatpush1.msra.mxu0 %v1663
        %1665 = vmatprep.subr.mxu0 0.0
        %v1666 = vand.u32 %v414, 4294901760
        %v1667 = vsub.f32 %v414, %v1666
        %v1668 = vand.u32 %v1667, 4294901760
        %1669 = vmatpush1.msra.mxu0 %v1668
        %1670 = vmatprep.subr.mxu0 0.0
        %v1671 = vand.u32 %v415, 4294901760
        %v1672 = vsub.f32 %v415, %v1671
        %v1673 = vand.u32 %v1672, 4294901760
        %1674 = vmatpush1.msra.mxu0 %v1673
        %1675 = vmatprep.subr.mxu0 0.0
        %v1676 = vand.u32 %v416, 4294901760
        %v1677 = vsub.f32 %v416, %v1676
        %v1678 = vand.u32 %v1677, 4294901760
        %1679 = vmatpush1.msra.mxu0 %v1678
        %1680 = vmatprep.subr.mxu0 0.0
        %v1681 = vand.u32 %v417, 4294901760
        %v1682 = vsub.f32 %v417, %v1681
        %v1683 = vand.u32 %v1682, 4294901760
        %1684 = vmatpush1.msra.mxu0 %v1683
        %1685 = vmatprep.subr.mxu0 0.0
        %v1686 = vand.u32 %v418, 4294901760
        %v1687 = vsub.f32 %v418, %v1686
        %v1688 = vand.u32 %v1687, 4294901760
        %1689 = vmatpush1.msra.mxu0 %v1688
        %1690 = vmatprep.subr.mxu0 0.0
        %v1691 = vand.u32 %v419, 4294901760
        %v1692 = vsub.f32 %v419, %v1691
        %v1693 = vand.u32 %v1692, 4294901760
        %1694 = vmatpush1.msra.mxu0 %v1693
        %1695 = vmatprep.subr.mxu0 0.0
        %v1696 = vand.u32 %v420, 4294901760
        %v1697 = vsub.f32 %v420, %v1696
        %v1698 = vand.u32 %v1697, 4294901760
        %1699 = vmatpush1.msra.mxu0 %v1698
        %1700 = vmatprep.subr.mxu0 0.0
        %v1701 = vand.u32 %v421, 4294901760
        %v1702 = vsub.f32 %v421, %v1701
        %v1703 = vand.u32 %v1702, 4294901760
        %1704 = vmatpush1.msra.mxu0 %v1703
        %1705 = vmatprep.subr.mxu0 0.0
        %v1706 = vand.u32 %v422, 4294901760
        %v1707 = vsub.f32 %v422, %v1706
        %v1708 = vand.u32 %v1707, 4294901760
        %1709 = vmatpush1.msra.mxu0 %v1708
        %1710 = vmatprep.subr.mxu0 0.0
        %v1711 = vand.u32 %v423, 4294901760
        %v1712 = vsub.f32 %v423, %v1711
        %v1713 = vand.u32 %v1712, 4294901760
        %1714 = vmatpush1.msra.mxu0 %v1713
        %1715 = vmatprep.subr.mxu0 0.0
        %v1716 = vand.u32 %v424, 4294901760
        %v1717 = vsub.f32 %v424, %v1716
        %v1718 = vand.u32 %v1717, 4294901760
        %1719 = vmatpush1.msra.mxu0 %v1718
        %1720 = vmatprep.subr.mxu0 0.0
        %v1721 = vand.u32 %v425, 4294901760
        %v1722 = vsub.f32 %v425, %v1721
        %v1723 = vand.u32 %v1722, 4294901760
        %1724 = vmatpush1.msra.mxu0 %v1723
        %1725 = vmatprep.subr.mxu0 0.0
        %v1726 = vand.u32 %v426, 4294901760
        %v1727 = vsub.f32 %v426, %v1726
        %v1728 = vand.u32 %v1727, 4294901760
        %1729 = vmatpush1.msra.mxu0 %v1728
        %1730 = vmatprep.subr.mxu0 0.0
        %v1731 = vand.u32 %v427, 4294901760
        %v1732 = vsub.f32 %v427, %v1731
        %v1733 = vand.u32 %v1732, 4294901760
        %1734 = vmatpush1.msra.mxu0 %v1733
        %1735 = vmatprep.subr.mxu0 0.0
        %v1736 = vand.u32 %v428, 4294901760
        %v1737 = vsub.f32 %v428, %v1736
        %v1738 = vand.u32 %v1737, 4294901760
        %1739 = vmatpush1.msra.mxu0 %v1738
        %1740 = vmatprep.subr.mxu0 0.0
        %1741 = vmatpush1.msra.mxu0 0.0
        %1742 = vmatprep.subr.mxu0 0.0
        %1743 = vmatpush1.msra.mxu0 0.0
        %1744 = vmatprep.subr.mxu0 0.0
        %1745 = vmatpush1.msra.mxu0 0.0
        %1746 = vmatprep.subr.mxu0 0.0
        %1747 = vmatpush1.msra.mxu0 0.0
        %1748 = vmatprep.subr.mxu0 0.0
        %1749 = vmatpush1.msra.mxu0 0.0
        %1750 = vmatprep.subr.mxu0 0.0
        %1751 = vmatpush1.msra.mxu0 0.0
        %1752 = vmatprep.subr.mxu0 0.0
        %1753 = vmatpush1.msra.mxu0 0.0
        %1754 = vmatprep.subr.mxu0 0.0
        %1755 = vmatpush1.msra.mxu0 0.0
        %1756 = vmatprep.subr.mxu0 0.0
        %1757 = vmatpush1.msra.mxu0 0.0
        %1758 = vmatprep.subr.mxu0 0.0
        %1759 = vmatpush1.msra.mxu0 0.0
        %1760 = vmatprep.subr.mxu0 0.0
        %1761 = vmatpush1.msra.mxu0 0.0
        %1762 = vmatprep.subr.mxu0 0.0
        %1763 = vmatpush1.msra.mxu0 0.0
        %1764 = vmatprep.subr.mxu0 0.0
        %1765 = vmatpush1.msra.mxu0 0.0
        %1766 = vmatprep.subr.mxu0 0.0
        %1767 = vmatpush1.msra.mxu0 0.0
        %1768 = vmatprep.subr.mxu0 0.0
        %1769 = vmatpush1.msra.mxu0 0.0
        %1770 = vmatprep.subr.mxu0 0.0
        %1771 = vmatpush1.msra.mxu0 0.0
        %1772 = vmatprep.mubr.f32.mxu0 0.0
        %v1773 = vand.u32 %v1107, 4294901760
        %1774 = vmatmul.mubr.f32.gmra.mrb[0].mxu0 %v1773
        %v1775 = vpop.f32.mrb[0].mxu0
        %v1776 = vadd.f32 %v1633, %v1775
        %v1777 = vpop.f32.mrb[0].mxu0
        %1778 = vmatprep.mubr.f32.mxu0 0.0
        %v1779 = vand.u32 %v1113, 4294901760
        %1780 = vmatmul.mubr.f32.gmra.mrb[0].mxu0 %v1779
        %v1781 = vpop.f32.mrb[0].mxu0
        %v1782 = vadd.f32 %v1641, %v1781
        %v1783 = vpop.f32.mrb[0].mxu0
        %1784 = vmatprep.mubr.f32.mxu0 0.0
        %v1785 = vand.u32 %v1119, 4294901760
        %1786 = vmatmul.mubr.f32.gmra.mrb[0].mxu0 %v1785
        %v1787 = vpop.f32.mrb[0].mxu0
        %v1788 = vadd.f32 %v1649, %v1787
        %v1789 = vpop.f32.mrb[0].mxu0
        %1790 = vmatprep.mubr.f32.mxu0 0.0
        %v1791 = vand.u32 %v1125, 4294901760
        %1792 = vmatmul.mubr.f32.gmra.mrb[0].mxu0 %v1791
        %v1793 = vpop.f32.mrb[0].mxu0
        %v1794 = vadd.f32 %v1657, %v1793
        %v1795 = vpop.f32.mrb[0].mxu0
        %1796 = vdwg.mxu0
        %1797 = vmatprep.subr.mxu0 0.0
        %v1798 = vand.u32 %v413, 4294901760
        %1799 = vmatpush1.msra.mxu0 %v1798
        %1800 = vmatprep.subr.mxu0 0.0
        %v1801 = vand.u32 %v414, 4294901760
        %1802 = vmatpush1.msra.mxu0 %v1801
        %1803 = vmatprep.subr.mxu0 0.0
        %v1804 = vand.u32 %v415, 4294901760
        %1805 = vmatpush1.msra.mxu0 %v1804
        %1806 = vmatprep.subr.mxu0 0.0
        %v1807 = vand.u32 %v416, 4294901760
        %1808 = vmatpush1.msra.mxu0 %v1807
        %1809 = vmatprep.subr.mxu0 0.0
        %v1810 = vand.u32 %v417, 4294901760
        %1811 = vmatpush1.msra.mxu0 %v1810
        %1812 = vmatprep.subr.mxu0 0.0
        %v1813 = vand.u32 %v418, 4294901760
        %1814 = vmatpush1.msra.mxu0 %v1813
        %1815 = vmatprep.subr.mxu0 0.0
        %v1816 = vand.u32 %v419, 4294901760
        %1817 = vmatpush1.msra.mxu0 %v1816
        %1818 = vmatprep.subr.mxu0 0.0
        %v1819 = vand.u32 %v420, 4294901760
        %1820 = vmatpush1.msra.mxu0 %v1819
        %1821 = vmatprep.subr.mxu0 0.0
        %v1822 = vand.u32 %v421, 4294901760
        %1823 = vmatpush1.msra.mxu0 %v1822
        %1824 = vmatprep.subr.mxu0 0.0
        %v1825 = vand.u32 %v422, 4294901760
        %1826 = vmatpush1.msra.mxu0 %v1825
        %1827 = vmatprep.subr.mxu0 0.0
        %v1828 = vand.u32 %v423, 4294901760
        %1829 = vmatpush1.msra.mxu0 %v1828
        %1830 = vmatprep.subr.mxu0 0.0
        %v1831 = vand.u32 %v424, 4294901760
        %1832 = vmatpush1.msra.mxu0 %v1831
        %1833 = vmatprep.subr.mxu0 0.0
        %v1834 = vand.u32 %v425, 4294901760
        %1835 = vmatpush1.msra.mxu0 %v1834
        %1836 = vmatprep.subr.mxu0 0.0
        %v1837 = vand.u32 %v426, 4294901760
        %1838 = vmatpush1.msra.mxu0 %v1837
        %1839 = vmatprep.subr.mxu0 0.0
        %v1840 = vand.u32 %v427, 4294901760
        %1841 = vmatpush1.msra.mxu0 %v1840
        %1842 = vmatprep.subr.mxu0 0.0
        %v1843 = vand.u32 %v428, 4294901760
        %1844 = vmatpush1.msra.mxu0 %v1843
        %1845 = vmatprep.subr.mxu0 0.0
        %1846 = vmatpush1.msra.mxu0 0.0
        %1847 = vmatprep.subr.mxu0 0.0
        %1848 = vmatpush1.msra.mxu0 0.0
        %1849 = vmatprep.subr.mxu0 0.0
        %1850 = vmatpush1.msra.mxu0 0.0
        %1851 = vmatprep.subr.mxu0 0.0
        %1852 = vmatpush1.msra.mxu0 0.0
        %1853 = vmatprep.subr.mxu0 0.0
        %1854 = vmatpush1.msra.mxu0 0.0
        %1855 = vmatprep.subr.mxu0 0.0
        %1856 = vmatpush1.msra.mxu0 0.0
        %1857 = vmatprep.subr.mxu0 0.0
        %1858 = vmatpush1.msra.mxu0 0.0
        %1859 = vmatprep.subr.mxu0 0.0
        %1860 = vmatpush1.msra.mxu0 0.0
        %1861 = vmatprep.subr.mxu0 0.0
        %1862 = vmatpush1.msra.mxu0 0.0
        %1863 = vmatprep.subr.mxu0 0.0
        %1864 = vmatpush1.msra.mxu0 0.0
        %1865 = vmatprep.subr.mxu0 0.0
        %1866 = vmatpush1.msra.mxu0 0.0
        %1867 = vmatprep.subr.mxu0 0.0
        %1868 = vmatpush1.msra.mxu0 0.0
        %1869 = vmatprep.subr.mxu0 0.0
        %1870 = vmatpush1.msra.mxu0 0.0
        %1871 = vmatprep.subr.mxu0 0.0
        %1872 = vmatpush1.msra.mxu0 0.0
        %1873 = vmatprep.subr.mxu0 0.0
        %1874 = vmatpush1.msra.mxu0 0.0
        %1875 = vmatprep.subr.mxu0 0.0
        %1876 = vmatpush1.msra.mxu0 0.0
        %1877 = vmatprep.mubr.f32.mxu0 0.0
        %v1878 = vand.u32 %v1107, 4294901760
        %1879 = vmatmul.mubr.f32.gmra.mrb[0].mxu0 %v1878
        %v1880 = vpop.f32.mrb[0].mxu0
        %v1881 = vadd.f32 %v1776, %v1880
        %v1882 = vpop.f32.mrb[0].mxu0
        %1883 = vmatprep.mubr.f32.mxu0 0.0
        %v1884 = vand.u32 %v1113, 4294901760
        %1885 = vmatmul.mubr.f32.gmra.mrb[0].mxu0 %v1884
        %v1886 = vpop.f32.mrb[0].mxu0
        %v1887 = vadd.f32 %v1782, %v1886
        %v1888 = vpop.f32.mrb[0].mxu0
        %1889 = vmatprep.mubr.f32.mxu0 0.0
        %v1890 = vand.u32 %v1119, 4294901760
        %1891 = vmatmul.mubr.f32.gmra.mrb[0].mxu0 %v1890
        %v1892 = vpop.f32.mrb[0].mxu0
        %v1893 = vadd.f32 %v1788, %v1892
        %v1894 = vpop.f32.mrb[0].mxu0
        %1895 = vmatprep.mubr.f32.mxu0 0.0
        %v1896 = vand.u32 %v1125, 4294901760
        %1897 = vmatmul.mubr.f32.gmra.mrb[0].mxu0 %v1896
        %v1898 = vpop.f32.mrb[0].mxu0
        %v1899 = vadd.f32 %v1794, %v1898
        %v1900 = vpop.f32.mrb[0].mxu0
        %1901 = vdwg.mxu0
        %v1902 = vmax.f32 %v1881, -1.0
        %v1903 = vmax.f32 %v1887, -1.0
        %v1904 = vmax.f32 %v1893, -1.0
        %v1905 = vmax.f32 %v1899, -1.0
        %v1906 = vmin.f32 %v1902, 1.0
        %v1907 = vmin.f32 %v1903, 1.0
        %v1908 = vmin.f32 %v1904, 1.0
        %v1909 = vmin.f32 %v1905, 1.0
        %vm1910 = vcmask 261120
        %v1912 = vsel %vm1910, %v1906, 0
        %v1915 = vsel %vm1910, %v1907, 0
        %v1918 = vsel %vm1910, %v1908, 0
        %v1921 = vsel %vm1910, %v1909, 0
        %1923 = vmatprep.subr.mxu0 0.0
        %v1924 = vand.u32 %v437, 4294901760
        %1925 = vmatpush1.msra.mxu0 %v1924
        %1926 = vmatprep.subr.mxu0 0.0
        %v1927 = vand.u32 %v438, 4294901760
        %1928 = vmatpush1.msra.mxu0 %v1927
        %1929 = vmatprep.subr.mxu0 0.0
        %v1930 = vand.u32 %v439, 4294901760
        %1931 = vmatpush1.msra.mxu0 %v1930
        %1932 = vmatprep.subr.mxu0 0.0
        %v1933 = vand.u32 %v440, 4294901760
        %1934 = vmatpush1.msra.mxu0 %v1933
        %1935 = vmatprep.subr.mxu0 0.0
        %1936 = vmatpush1.msra.mxu0 0.0
        %1937 = vmatprep.subr.mxu0 0.0
        %1938 = vmatpush1.msra.mxu0 0.0
        %1939 = vmatprep.subr.mxu0 0.0
        %1940 = vmatpush1.msra.mxu0 0.0
        %1941 = vmatprep.subr.mxu0 0.0
        %1942 = vmatpush1.msra.mxu0 0.0
        %1943 = vmatprep.subr.mxu0 0.0
        %1944 = vmatpush1.msra.mxu0 0.0
        %1945 = vmatprep.subr.mxu0 0.0
        %1946 = vmatpush1.msra.mxu0 0.0
        %1947 = vmatprep.subr.mxu0 0.0
        %1948 = vmatpush1.msra.mxu0 0.0
        %1949 = vmatprep.subr.mxu0 0.0
        %1950 = vmatpush1.msra.mxu0 0.0
        %1951 = vmatprep.subr.mxu0 0.0
        %1952 = vmatpush1.msra.mxu0 0.0
        %1953 = vmatprep.subr.mxu0 0.0
        %1954 = vmatpush1.msra.mxu0 0.0
        %1955 = vmatprep.subr.mxu0 0.0
        %1956 = vmatpush1.msra.mxu0 0.0
        %1957 = vmatprep.subr.mxu0 0.0
        %1958 = vmatpush1.msra.mxu0 0.0
        %1959 = vmatprep.subr.mxu0 0.0
        %1960 = vmatpush1.msra.mxu0 0.0
        %1961 = vmatprep.subr.mxu0 0.0
        %1962 = vmatpush1.msra.mxu0 0.0
        %1963 = vmatprep.subr.mxu0 0.0
        %1964 = vmatpush1.msra.mxu0 0.0
        %1965 = vmatprep.subr.mxu0 0.0
        %1966 = vmatpush1.msra.mxu0 0.0
        %1967 = vmatprep.subr.mxu0 0.0
        %1968 = vmatpush1.msra.mxu0 0.0
        %1969 = vmatprep.subr.mxu0 0.0
        %1970 = vmatpush1.msra.mxu0 0.0
        %1971 = vmatprep.subr.mxu0 0.0
        %1972 = vmatpush1.msra.mxu0 0.0
        %1973 = vmatprep.subr.mxu0 0.0
        %1974 = vmatpush1.msra.mxu0 0.0
        %1975 = vmatprep.subr.mxu0 0.0
        %1976 = vmatpush1.msra.mxu0 0.0
        %1977 = vmatprep.subr.mxu0 0.0
        %1978 = vmatpush1.msra.mxu0 0.0
        %1979 = vmatprep.subr.mxu0 0.0
        %1980 = vmatpush1.msra.mxu0 0.0
        %1981 = vmatprep.subr.mxu0 0.0
        %1982 = vmatpush1.msra.mxu0 0.0
        %1983 = vmatprep.subr.mxu0 0.0
        %1984 = vmatpush1.msra.mxu0 0.0
        %1985 = vmatprep.subr.mxu0 0.0
        %1986 = vmatpush1.msra.mxu0 0.0
        %1987 = vmatprep.subr.mxu0 0.0
        %1988 = vmatpush1.msra.mxu0 0.0
        %1989 = vmatprep.subr.mxu0 0.0
        %1990 = vmatpush1.msra.mxu0 0.0
        %1991 = vmatprep.mubr.f32.mxu0 0.0
        %v1992 = vand.u32 %v1912, 4294901760
        %v1993 = vsub.f32 %v1912, %v1992
        %v1994 = vand.u32 %v1993, 4294901760
        %v1995 = vsub.f32 %v1993, %v1994
        %v1996 = vand.u32 %v1995, 4294901760
        %1997 = vmatmul.mubr.f32.gmra.mrb[0].mxu0 %v1996
        %v1998 = vpop.f32.mrb[0].mxu0
        %v1999 = vadd.f32 0.0, %v1998
        %v2000 = vpop.f32.mrb[0].mxu0
        %2001 = vmatprep.mubr.f32.mxu0 0.0
        %v2002 = vand.u32 %v1915, 4294901760
        %v2003 = vsub.f32 %v1915, %v2002
        %v2004 = vand.u32 %v2003, 4294901760
        %v2005 = vsub.f32 %v2003, %v2004
        %v2006 = vand.u32 %v2005, 4294901760
        %2007 = vmatmul.mubr.f32.gmra.mrb[0].mxu0 %v2006
        %v2008 = vpop.f32.mrb[0].mxu0
        %v2009 = vadd.f32 0.0, %v2008
        %v2010 = vpop.f32.mrb[0].mxu0
        %2011 = vmatprep.mubr.f32.mxu0 0.0
        %v2012 = vand.u32 %v1918, 4294901760
        %v2013 = vsub.f32 %v1918, %v2012
        %v2014 = vand.u32 %v2013, 4294901760
        %v2015 = vsub.f32 %v2013, %v2014
        %v2016 = vand.u32 %v2015, 4294901760
        %2017 = vmatmul.mubr.f32.gmra.mrb[0].mxu0 %v2016
        %v2018 = vpop.f32.mrb[0].mxu0
        %v2019 = vadd.f32 0.0, %v2018
        %v2020 = vpop.f32.mrb[0].mxu0
        %2021 = vmatprep.mubr.f32.mxu0 0.0
        %v2022 = vand.u32 %v1921, 4294901760
        %v2023 = vsub.f32 %v1921, %v2022
        %v2024 = vand.u32 %v2023, 4294901760
        %v2025 = vsub.f32 %v2023, %v2024
        %v2026 = vand.u32 %v2025, 4294901760
        %2027 = vmatmul.mubr.f32.gmra.mrb[0].mxu0 %v2026
        %v2028 = vpop.f32.mrb[0].mxu0
        %v2029 = vadd.f32 0.0, %v2028
        %v2030 = vpop.f32.mrb[0].mxu0
        %2031 = vdwg.mxu0
        %2032 = vmatprep.subr.mxu0 0.0
        %v2033 = vand.u32 %v437, 4294901760
        %v2034 = vsub.f32 %v437, %v2033
        %v2035 = vand.u32 %v2034, 4294901760
        %v2036 = vsub.f32 %v2034, %v2035
        %v2037 = vand.u32 %v2036, 4294901760
        %2038 = vmatpush1.msra.mxu0 %v2037
        %2039 = vmatprep.subr.mxu0 0.0
        %v2040 = vand.u32 %v438, 4294901760
        %v2041 = vsub.f32 %v438, %v2040
        %v2042 = vand.u32 %v2041, 4294901760
        %v2043 = vsub.f32 %v2041, %v2042
        %v2044 = vand.u32 %v2043, 4294901760
        %2045 = vmatpush1.msra.mxu0 %v2044
        %2046 = vmatprep.subr.mxu0 0.0
        %v2047 = vand.u32 %v439, 4294901760
        %v2048 = vsub.f32 %v439, %v2047
        %v2049 = vand.u32 %v2048, 4294901760
        %v2050 = vsub.f32 %v2048, %v2049
        %v2051 = vand.u32 %v2050, 4294901760
        %2052 = vmatpush1.msra.mxu0 %v2051
        %2053 = vmatprep.subr.mxu0 0.0
        %v2054 = vand.u32 %v440, 4294901760
        %v2055 = vsub.f32 %v440, %v2054
        %v2056 = vand.u32 %v2055, 4294901760
        %v2057 = vsub.f32 %v2055, %v2056
        %v2058 = vand.u32 %v2057, 4294901760
        %2059 = vmatpush1.msra.mxu0 %v2058
        %2060 = vmatprep.subr.mxu0 0.0
        %2061 = vmatpush1.msra.mxu0 0.0
        %2062 = vmatprep.subr.mxu0 0.0
        %2063 = vmatpush1.msra.mxu0 0.0
        %2064 = vmatprep.subr.mxu0 0.0
        %2065 = vmatpush1.msra.mxu0 0.0
        %2066 = vmatprep.subr.mxu0 0.0
        %2067 = vmatpush1.msra.mxu0 0.0
        %2068 = vmatprep.subr.mxu0 0.0
        %2069 = vmatpush1.msra.mxu0 0.0
        %2070 = vmatprep.subr.mxu0 0.0
        %2071 = vmatpush1.msra.mxu0 0.0
        %2072 = vmatprep.subr.mxu0 0.0
        %2073 = vmatpush1.msra.mxu0 0.0
        %2074 = vmatprep.subr.mxu0 0.0
        %2075 = vmatpush1.msra.mxu0 0.0
        %2076 = vmatprep.subr.mxu0 0.0
        %2077 = vmatpush1.msra.mxu0 0.0
        %2078 = vmatprep.subr.mxu0 0.0
        %2079 = vmatpush1.msra.mxu0 0.0
        %2080 = vmatprep.subr.mxu0 0.0
        %2081 = vmatpush1.msra.mxu0 0.0
        %2082 = vmatprep.subr.mxu0 0.0
        %2083 = vmatpush1.msra.mxu0 0.0
        %2084 = vmatprep.subr.mxu0 0.0
        %2085 = vmatpush1.msra.mxu0 0.0
        %2086 = vmatprep.subr.mxu0 0.0
        %2087 = vmatpush1.msra.mxu0 0.0
        %2088 = vmatprep.subr.mxu0 0.0
        %2089 = vmatpush1.msra.mxu0 0.0
        %2090 = vmatprep.subr.mxu0 0.0
        %2091 = vmatpush1.msra.mxu0 0.0
        %2092 = vmatprep.subr.mxu0 0.0
        %2093 = vmatpush1.msra.mxu0 0.0
        %2094 = vmatprep.subr.mxu0 0.0
        %2095 = vmatpush1.msra.mxu0 0.0
        %2096 = vmatprep.subr.mxu0 0.0
        %2097 = vmatpush1.msra.mxu0 0.0
        %2098 = vmatprep.subr.mxu0 0.0
        %2099 = vmatpush1.msra.mxu0 0.0
        %2100 = vmatprep.subr.mxu0 0.0
        %2101 = vmatpush1.msra.mxu0 0.0
        %2102 = vmatprep.subr.mxu0 0.0
        %2103 = vmatpush1.msra.mxu0 0.0
        %2104 = vmatprep.subr.mxu0 0.0
        %2105 = vmatpush1.msra.mxu0 0.0
        %2106 = vmatprep.subr.mxu0 0.0
        %2107 = vmatpush1.msra.mxu0 0.0
        %2108 = vmatprep.subr.mxu0 0.0
        %2109 = vmatpush1.msra.mxu0 0.0
        %2110 = vmatprep.subr.mxu0 0.0
        %2111 = vmatpush1.msra.mxu0 0.0
        %2112 = vmatprep.subr.mxu0 0.0
        %2113 = vmatpush1.msra.mxu0 0.0
        %2114 = vmatprep.subr.mxu0 0.0
        %2115 = vmatpush1.msra.mxu0 0.0
        %2116 = vmatprep.mubr.f32.mxu0 0.0
        %v2117 = vand.u32 %v1912, 4294901760
        %2118 = vmatmul.mubr.f32.gmra.mrb[0].mxu0 %v2117
        %v2119 = vpop.f32.mrb[0].mxu0
        %v2120 = vadd.f32 %v1999, %v2119
        %v2121 = vpop.f32.mrb[0].mxu0
        %2122 = vmatprep.mubr.f32.mxu0 0.0
        %v2123 = vand.u32 %v1915, 4294901760
        %2124 = vmatmul.mubr.f32.gmra.mrb[0].mxu0 %v2123
        %v2125 = vpop.f32.mrb[0].mxu0
        %v2126 = vadd.f32 %v2009, %v2125
        %v2127 = vpop.f32.mrb[0].mxu0
        %2128 = vmatprep.mubr.f32.mxu0 0.0
        %v2129 = vand.u32 %v1918, 4294901760
        %2130 = vmatmul.mubr.f32.gmra.mrb[0].mxu0 %v2129
        %v2131 = vpop.f32.mrb[0].mxu0
        %v2132 = vadd.f32 %v2019, %v2131
        %v2133 = vpop.f32.mrb[0].mxu0
        %2134 = vmatprep.mubr.f32.mxu0 0.0
        %v2135 = vand.u32 %v1921, 4294901760
        %2136 = vmatmul.mubr.f32.gmra.mrb[0].mxu0 %v2135
        %v2137 = vpop.f32.mrb[0].mxu0
        %v2138 = vadd.f32 %v2029, %v2137
        %v2139 = vpop.f32.mrb[0].mxu0
        %2140 = vdwg.mxu0
        %2141 = vmatprep.subr.mxu0 0.0
        %v2142 = vand.u32 %v437, 4294901760
        %v2143 = vsub.f32 %v437, %v2142
        %2144 = vmatpush1.msra.mxu0 %v2143
        %2145 = vmatprep.subr.mxu0 0.0
        %v2146 = vand.u32 %v438, 4294901760
        %v2147 = vsub.f32 %v438, %v2146
        %2148 = vmatpush1.msra.mxu0 %v2147
        %2149 = vmatprep.subr.mxu0 0.0
        %v2150 = vand.u32 %v439, 4294901760
        %v2151 = vsub.f32 %v439, %v2150
        %2152 = vmatpush1.msra.mxu0 %v2151
        %2153 = vmatprep.subr.mxu0 0.0
        %v2154 = vand.u32 %v440, 4294901760
        %v2155 = vsub.f32 %v440, %v2154
        %2156 = vmatpush1.msra.mxu0 %v2155
        %2157 = vmatprep.subr.mxu0 0.0
        %2158 = vmatpush1.msra.mxu0 0.0
        %2159 = vmatprep.subr.mxu0 0.0
        %2160 = vmatpush1.msra.mxu0 0.0
        %2161 = vmatprep.subr.mxu0 0.0
        %2162 = vmatpush1.msra.mxu0 0.0
        %2163 = vmatprep.subr.mxu0 0.0
        %2164 = vmatpush1.msra.mxu0 0.0
        %2165 = vmatprep.subr.mxu0 0.0
        %2166 = vmatpush1.msra.mxu0 0.0
        %2167 = vmatprep.subr.mxu0 0.0
        %2168 = vmatpush1.msra.mxu0 0.0
        %2169 = vmatprep.subr.mxu0 0.0
        %2170 = vmatpush1.msra.mxu0 0.0
        %2171 = vmatprep.subr.mxu0 0.0
        %2172 = vmatpush1.msra.mxu0 0.0
        %2173 = vmatprep.subr.mxu0 0.0
        %2174 = vmatpush1.msra.mxu0 0.0
        %2175 = vmatprep.subr.mxu0 0.0
        %2176 = vmatpush1.msra.mxu0 0.0
        %2177 = vmatprep.subr.mxu0 0.0
        %2178 = vmatpush1.msra.mxu0 0.0
        %2179 = vmatprep.subr.mxu0 0.0
        %2180 = vmatpush1.msra.mxu0 0.0
        %2181 = vmatprep.subr.mxu0 0.0
        %2182 = vmatpush1.msra.mxu0 0.0
        %2183 = vmatprep.subr.mxu0 0.0
        %2184 = vmatpush1.msra.mxu0 0.0
        %2185 = vmatprep.subr.mxu0 0.0
        %2186 = vmatpush1.msra.mxu0 0.0
        %2187 = vmatprep.subr.mxu0 0.0
        %2188 = vmatpush1.msra.mxu0 0.0
        %2189 = vmatprep.subr.mxu0 0.0
        %2190 = vmatpush1.msra.mxu0 0.0
        %2191 = vmatprep.subr.mxu0 0.0
        %2192 = vmatpush1.msra.mxu0 0.0
        %2193 = vmatprep.subr.mxu0 0.0
        %2194 = vmatpush1.msra.mxu0 0.0
        %2195 = vmatprep.subr.mxu0 0.0
        %2196 = vmatpush1.msra.mxu0 0.0
        %2197 = vmatprep.subr.mxu0 0.0
        %2198 = vmatpush1.msra.mxu0 0.0
        %2199 = vmatprep.subr.mxu0 0.0
        %2200 = vmatpush1.msra.mxu0 0.0
        %2201 = vmatprep.subr.mxu0 0.0
        %2202 = vmatpush1.msra.mxu0 0.0
        %2203 = vmatprep.subr.mxu0 0.0
        %2204 = vmatpush1.msra.mxu0 0.0
        %2205 = vmatprep.subr.mxu0 0.0
        %2206 = vmatpush1.msra.mxu0 0.0
        %2207 = vmatprep.subr.mxu0 0.0
        %2208 = vmatpush1.msra.mxu0 0.0
        %2209 = vmatprep.subr.mxu0 0.0
        %2210 = vmatpush1.msra.mxu0 0.0
        %2211 = vmatprep.subr.mxu0 0.0
        %2212 = vmatpush1.msra.mxu0 0.0
        %2213 = vmatprep.mubr.f32.mxu0 0.0
        %v2214 = vand.u32 %v1912, 4294901760
        %v2215 = vsub.f32 %v1912, %v2214
        %2216 = vmatmul.mubr.f32.gmra.mrb[0].mxu0 %v2215
        %v2217 = vpop.f32.mrb[0].mxu0
        %v2218 = vadd.f32 %v2120, %v2217
        %v2219 = vpop.f32.mrb[0].mxu0
        %2220 = vmatprep.mubr.f32.mxu0 0.0
        %v2221 = vand.u32 %v1915, 4294901760
        %v2222 = vsub.f32 %v1915, %v2221
        %2223 = vmatmul.mubr.f32.gmra.mrb[0].mxu0 %v2222
        %v2224 = vpop.f32.mrb[0].mxu0
        %v2225 = vadd.f32 %v2126, %v2224
        %v2226 = vpop.f32.mrb[0].mxu0
        %2227 = vmatprep.mubr.f32.mxu0 0.0
        %v2228 = vand.u32 %v1918, 4294901760
        %v2229 = vsub.f32 %v1918, %v2228
        %2230 = vmatmul.mubr.f32.gmra.mrb[0].mxu0 %v2229
        %v2231 = vpop.f32.mrb[0].mxu0
        %v2232 = vadd.f32 %v2132, %v2231
        %v2233 = vpop.f32.mrb[0].mxu0
        %2234 = vmatprep.mubr.f32.mxu0 0.0
        %v2235 = vand.u32 %v1921, 4294901760
        %v2236 = vsub.f32 %v1921, %v2235
        %2237 = vmatmul.mubr.f32.gmra.mrb[0].mxu0 %v2236
        %v2238 = vpop.f32.mrb[0].mxu0
        %v2239 = vadd.f32 %v2138, %v2238
        %v2240 = vpop.f32.mrb[0].mxu0
        %2241 = vdwg.mxu0
        %2242 = vmatprep.subr.mxu0 0.0
        %v2243 = vand.u32 %v437, 4294901760
        %2244 = vmatpush1.msra.mxu0 %v2243
        %2245 = vmatprep.subr.mxu0 0.0
        %v2246 = vand.u32 %v438, 4294901760
        %2247 = vmatpush1.msra.mxu0 %v2246
        %2248 = vmatprep.subr.mxu0 0.0
        %v2249 = vand.u32 %v439, 4294901760
        %2250 = vmatpush1.msra.mxu0 %v2249
        %2251 = vmatprep.subr.mxu0 0.0
        %v2252 = vand.u32 %v440, 4294901760
        %2253 = vmatpush1.msra.mxu0 %v2252
        %2254 = vmatprep.subr.mxu0 0.0
        %2255 = vmatpush1.msra.mxu0 0.0
        %2256 = vmatprep.subr.mxu0 0.0
        %2257 = vmatpush1.msra.mxu0 0.0
        %2258 = vmatprep.subr.mxu0 0.0
        %2259 = vmatpush1.msra.mxu0 0.0
        %2260 = vmatprep.subr.mxu0 0.0
        %2261 = vmatpush1.msra.mxu0 0.0
        %2262 = vmatprep.subr.mxu0 0.0
        %2263 = vmatpush1.msra.mxu0 0.0
        %2264 = vmatprep.subr.mxu0 0.0
        %2265 = vmatpush1.msra.mxu0 0.0
        %2266 = vmatprep.subr.mxu0 0.0
        %2267 = vmatpush1.msra.mxu0 0.0
        %2268 = vmatprep.subr.mxu0 0.0
        %2269 = vmatpush1.msra.mxu0 0.0
        %2270 = vmatprep.subr.mxu0 0.0
        %2271 = vmatpush1.msra.mxu0 0.0
        %2272 = vmatprep.subr.mxu0 0.0
        %2273 = vmatpush1.msra.mxu0 0.0
        %2274 = vmatprep.subr.mxu0 0.0
        %2275 = vmatpush1.msra.mxu0 0.0
        %2276 = vmatprep.subr.mxu0 0.0
        %2277 = vmatpush1.msra.mxu0 0.0
        %2278 = vmatprep.subr.mxu0 0.0
        %2279 = vmatpush1.msra.mxu0 0.0
        %2280 = vmatprep.subr.mxu0 0.0
        %2281 = vmatpush1.msra.mxu0 0.0
        %2282 = vmatprep.subr.mxu0 0.0
        %2283 = vmatpush1.msra.mxu0 0.0
        %2284 = vmatprep.subr.mxu0 0.0
        %2285 = vmatpush1.msra.mxu0 0.0
        %2286 = vmatprep.subr.mxu0 0.0
        %2287 = vmatpush1.msra.mxu0 0.0
        %2288 = vmatprep.subr.mxu0 0.0
        %2289 = vmatpush1.msra.mxu0 0.0
        %2290 = vmatprep.subr.mxu0 0.0
        %2291 = vmatpush1.msra.mxu0 0.0
        %2292 = vmatprep.subr.mxu0 0.0
        %2293 = vmatpush1.msra.mxu0 0.0
        %2294 = vmatprep.subr.mxu0 0.0
        %2295 = vmatpush1.msra.mxu0 0.0
        %2296 = vmatprep.subr.mxu0 0.0
        %2297 = vmatpush1.msra.mxu0 0.0
        %2298 = vmatprep.subr.mxu0 0.0
        %2299 = vmatpush1.msra.mxu0 0.0
        %2300 = vmatprep.subr.mxu0 0.0
        %2301 = vmatpush1.msra.mxu0 0.0
        %2302 = vmatprep.subr.mxu0 0.0
        %2303 = vmatpush1.msra.mxu0 0.0
        %2304 = vmatprep.subr.mxu0 0.0
        %2305 = vmatpush1.msra.mxu0 0.0
        %2306 = vmatprep.subr.mxu0 0.0
        %2307 = vmatpush1.msra.mxu0 0.0
        %2308 = vmatprep.subr.mxu0 0.0
        %2309 = vmatpush1.msra.mxu0 0.0
        %2310 = vmatprep.mubr.f32.mxu0 0.0
        %v2311 = vand.u32 %v1912, 4294901760
        %v2312 = vsub.f32 %v1912, %v2311
        %v2313 = vand.u32 %v2312, 4294901760
        %2314 = vmatmul.mubr.f32.gmra.mrb[0].mxu0 %v2313
        %v2315 = vpop.f32.mrb[0].mxu0
        %v2316 = vadd.f32 %v2218, %v2315
        %v2317 = vpop.f32.mrb[0].mxu0
        %2318 = vmatprep.mubr.f32.mxu0 0.0
        %v2319 = vand.u32 %v1915, 4294901760
        %v2320 = vsub.f32 %v1915, %v2319
        %v2321 = vand.u32 %v2320, 4294901760
        %2322 = vmatmul.mubr.f32.gmra.mrb[0].mxu0 %v2321
        %v2323 = vpop.f32.mrb[0].mxu0
        %v2324 = vadd.f32 %v2225, %v2323
        %v2325 = vpop.f32.mrb[0].mxu0
        %2326 = vmatprep.mubr.f32.mxu0 0.0
        %v2327 = vand.u32 %v1918, 4294901760
        %v2328 = vsub.f32 %v1918, %v2327
        %v2329 = vand.u32 %v2328, 4294901760
        %2330 = vmatmul.mubr.f32.gmra.mrb[0].mxu0 %v2329
        %v2331 = vpop.f32.mrb[0].mxu0
        %v2332 = vadd.f32 %v2232, %v2331
        %v2333 = vpop.f32.mrb[0].mxu0
        %2334 = vmatprep.mubr.f32.mxu0 0.0
        %v2335 = vand.u32 %v1921, 4294901760
        %v2336 = vsub.f32 %v1921, %v2335
        %v2337 = vand.u32 %v2336, 4294901760
        %2338 = vmatmul.mubr.f32.gmra.mrb[0].mxu0 %v2337
        %v2339 = vpop.f32.mrb[0].mxu0
        %v2340 = vadd.f32 %v2239, %v2339
        %v2341 = vpop.f32.mrb[0].mxu0
        %2342 = vdwg.mxu0
        %2343 = vmatprep.subr.mxu0 0.0
        %v2344 = vand.u32 %v437, 4294901760
        %v2345 = vsub.f32 %v437, %v2344
        %v2346 = vand.u32 %v2345, 4294901760
        %2347 = vmatpush1.msra.mxu0 %v2346
        %2348 = vmatprep.subr.mxu0 0.0
        %v2349 = vand.u32 %v438, 4294901760
        %v2350 = vsub.f32 %v438, %v2349
        %v2351 = vand.u32 %v2350, 4294901760
        %2352 = vmatpush1.msra.mxu0 %v2351
        %2353 = vmatprep.subr.mxu0 0.0
        %v2354 = vand.u32 %v439, 4294901760
        %v2355 = vsub.f32 %v439, %v2354
        %v2356 = vand.u32 %v2355, 4294901760
        %2357 = vmatpush1.msra.mxu0 %v2356
        %2358 = vmatprep.subr.mxu0 0.0
        %v2359 = vand.u32 %v440, 4294901760
        %v2360 = vsub.f32 %v440, %v2359
        %v2361 = vand.u32 %v2360, 4294901760
        %2362 = vmatpush1.msra.mxu0 %v2361
        %2363 = vmatprep.subr.mxu0 0.0
        %2364 = vmatpush1.msra.mxu0 0.0
        %2365 = vmatprep.subr.mxu0 0.0
        %2366 = vmatpush1.msra.mxu0 0.0
        %2367 = vmatprep.subr.mxu0 0.0
        %2368 = vmatpush1.msra.mxu0 0.0
        %2369 = vmatprep.subr.mxu0 0.0
        %2370 = vmatpush1.msra.mxu0 0.0
        %2371 = vmatprep.subr.mxu0 0.0
        %2372 = vmatpush1.msra.mxu0 0.0
        %2373 = vmatprep.subr.mxu0 0.0
        %2374 = vmatpush1.msra.mxu0 0.0
        %2375 = vmatprep.subr.mxu0 0.0
        %2376 = vmatpush1.msra.mxu0 0.0
        %2377 = vmatprep.subr.mxu0 0.0
        %2378 = vmatpush1.msra.mxu0 0.0
        %2379 = vmatprep.subr.mxu0 0.0
        %2380 = vmatpush1.msra.mxu0 0.0
        %2381 = vmatprep.subr.mxu0 0.0
        %2382 = vmatpush1.msra.mxu0 0.0
        %2383 = vmatprep.subr.mxu0 0.0
        %2384 = vmatpush1.msra.mxu0 0.0
        %2385 = vmatprep.subr.mxu0 0.0
        %2386 = vmatpush1.msra.mxu0 0.0
        %2387 = vmatprep.subr.mxu0 0.0
        %2388 = vmatpush1.msra.mxu0 0.0
        %2389 = vmatprep.subr.mxu0 0.0
        %2390 = vmatpush1.msra.mxu0 0.0
        %2391 = vmatprep.subr.mxu0 0.0
        %2392 = vmatpush1.msra.mxu0 0.0
        %2393 = vmatprep.subr.mxu0 0.0
        %2394 = vmatpush1.msra.mxu0 0.0
        %2395 = vmatprep.subr.mxu0 0.0
        %2396 = vmatpush1.msra.mxu0 0.0
        %2397 = vmatprep.subr.mxu0 0.0
        %2398 = vmatpush1.msra.mxu0 0.0
        %2399 = vmatprep.subr.mxu0 0.0
        %2400 = vmatpush1.msra.mxu0 0.0
        %2401 = vmatprep.subr.mxu0 0.0
        %2402 = vmatpush1.msra.mxu0 0.0
        %2403 = vmatprep.subr.mxu0 0.0
        %2404 = vmatpush1.msra.mxu0 0.0
        %2405 = vmatprep.subr.mxu0 0.0
        %2406 = vmatpush1.msra.mxu0 0.0
        %2407 = vmatprep.subr.mxu0 0.0
        %2408 = vmatpush1.msra.mxu0 0.0
        %2409 = vmatprep.subr.mxu0 0.0
        %2410 = vmatpush1.msra.mxu0 0.0
        %2411 = vmatprep.subr.mxu0 0.0
        %2412 = vmatpush1.msra.mxu0 0.0
        %2413 = vmatprep.subr.mxu0 0.0
        %2414 = vmatpush1.msra.mxu0 0.0
        %2415 = vmatprep.subr.mxu0 0.0
        %2416 = vmatpush1.msra.mxu0 0.0
        %2417 = vmatprep.subr.mxu0 0.0
        %2418 = vmatpush1.msra.mxu0 0.0
        %2419 = vmatprep.mubr.f32.mxu0 0.0
        %v2420 = vand.u32 %v1912, 4294901760
        %2421 = vmatmul.mubr.f32.gmra.mrb[0].mxu0 %v2420
        %v2422 = vpop.f32.mrb[0].mxu0
        %v2423 = vadd.f32 %v2316, %v2422
        %v2424 = vpop.f32.mrb[0].mxu0
        %2425 = vmatprep.mubr.f32.mxu0 0.0
        %v2426 = vand.u32 %v1915, 4294901760
        %2427 = vmatmul.mubr.f32.gmra.mrb[0].mxu0 %v2426
        %v2428 = vpop.f32.mrb[0].mxu0
        %v2429 = vadd.f32 %v2324, %v2428
        %v2430 = vpop.f32.mrb[0].mxu0
        %2431 = vmatprep.mubr.f32.mxu0 0.0
        %v2432 = vand.u32 %v1918, 4294901760
        %2433 = vmatmul.mubr.f32.gmra.mrb[0].mxu0 %v2432
        %v2434 = vpop.f32.mrb[0].mxu0
        %v2435 = vadd.f32 %v2332, %v2434
        %v2436 = vpop.f32.mrb[0].mxu0
        %2437 = vmatprep.mubr.f32.mxu0 0.0
        %v2438 = vand.u32 %v1921, 4294901760
        %2439 = vmatmul.mubr.f32.gmra.mrb[0].mxu0 %v2438
        %v2440 = vpop.f32.mrb[0].mxu0
        %v2441 = vadd.f32 %v2340, %v2440
        %v2442 = vpop.f32.mrb[0].mxu0
        %2443 = vdwg.mxu0
        %2444 = vmatprep.subr.mxu0 0.0
        %v2445 = vand.u32 %v437, 4294901760
        %2446 = vmatpush1.msra.mxu0 %v2445
        %2447 = vmatprep.subr.mxu0 0.0
        %v2448 = vand.u32 %v438, 4294901760
        %2449 = vmatpush1.msra.mxu0 %v2448
        %2450 = vmatprep.subr.mxu0 0.0
        %v2451 = vand.u32 %v439, 4294901760
        %2452 = vmatpush1.msra.mxu0 %v2451
        %2453 = vmatprep.subr.mxu0 0.0
        %v2454 = vand.u32 %v440, 4294901760
        %2455 = vmatpush1.msra.mxu0 %v2454
        %2456 = vmatprep.subr.mxu0 0.0
        %2457 = vmatpush1.msra.mxu0 0.0
        %2458 = vmatprep.subr.mxu0 0.0
        %2459 = vmatpush1.msra.mxu0 0.0
        %2460 = vmatprep.subr.mxu0 0.0
        %2461 = vmatpush1.msra.mxu0 0.0
        %2462 = vmatprep.subr.mxu0 0.0
        %2463 = vmatpush1.msra.mxu0 0.0
        %2464 = vmatprep.subr.mxu0 0.0
        %2465 = vmatpush1.msra.mxu0 0.0
        %2466 = vmatprep.subr.mxu0 0.0
        %2467 = vmatpush1.msra.mxu0 0.0
        %2468 = vmatprep.subr.mxu0 0.0
        %2469 = vmatpush1.msra.mxu0 0.0
        %2470 = vmatprep.subr.mxu0 0.0
        %2471 = vmatpush1.msra.mxu0 0.0
        %2472 = vmatprep.subr.mxu0 0.0
        %2473 = vmatpush1.msra.mxu0 0.0
        %2474 = vmatprep.subr.mxu0 0.0
        %2475 = vmatpush1.msra.mxu0 0.0
        %2476 = vmatprep.subr.mxu0 0.0
        %2477 = vmatpush1.msra.mxu0 0.0
        %2478 = vmatprep.subr.mxu0 0.0
        %2479 = vmatpush1.msra.mxu0 0.0
        %2480 = vmatprep.subr.mxu0 0.0
        %2481 = vmatpush1.msra.mxu0 0.0
        %2482 = vmatprep.subr.mxu0 0.0
        %2483 = vmatpush1.msra.mxu0 0.0
        %2484 = vmatprep.subr.mxu0 0.0
        %2485 = vmatpush1.msra.mxu0 0.0
        %2486 = vmatprep.subr.mxu0 0.0
        %2487 = vmatpush1.msra.mxu0 0.0
        %2488 = vmatprep.subr.mxu0 0.0
        %2489 = vmatpush1.msra.mxu0 0.0
        %2490 = vmatprep.subr.mxu0 0.0
        %2491 = vmatpush1.msra.mxu0 0.0
        %2492 = vmatprep.subr.mxu0 0.0
        %2493 = vmatpush1.msra.mxu0 0.0
        %2494 = vmatprep.subr.mxu0 0.0
        %2495 = vmatpush1.msra.mxu0 0.0
        %2496 = vmatprep.subr.mxu0 0.0
        %2497 = vmatpush1.msra.mxu0 0.0
        %2498 = vmatprep.subr.mxu0 0.0
        %2499 = vmatpush1.msra.mxu0 0.0
        %2500 = vmatprep.subr.mxu0 0.0
        %2501 = vmatpush1.msra.mxu0 0.0
        %2502 = vmatprep.subr.mxu0 0.0
        %2503 = vmatpush1.msra.mxu0 0.0
        %2504 = vmatprep.subr.mxu0 0.0
        %2505 = vmatpush1.msra.mxu0 0.0
        %2506 = vmatprep.subr.mxu0 0.0
        %2507 = vmatpush1.msra.mxu0 0.0
        %2508 = vmatprep.subr.mxu0 0.0
        %2509 = vmatpush1.msra.mxu0 0.0
        %2510 = vmatprep.subr.mxu0 0.0
        %2511 = vmatpush1.msra.mxu0 0.0
        %2512 = vmatprep.mubr.f32.mxu0 0.0
        %v2513 = vand.u32 %v1912, 4294901760
        %2514 = vmatmul.mubr.f32.gmra.mrb[0].mxu0 %v2513
        %v2515 = vpop.f32.mrb[0].mxu0
        %v2516 = vadd.f32 %v2423, %v2515
        %v2517 = vpop.f32.mrb[0].mxu0
        %2518 = vmatprep.mubr.f32.mxu0 0.0
        %v2519 = vand.u32 %v1915, 4294901760
        %2520 = vmatmul.mubr.f32.gmra.mrb[0].mxu0 %v2519
        %v2521 = vpop.f32.mrb[0].mxu0
        %v2522 = vadd.f32 %v2429, %v2521
        %v2523 = vpop.f32.mrb[0].mxu0
        %2524 = vmatprep.mubr.f32.mxu0 0.0
        %v2525 = vand.u32 %v1918, 4294901760
        %2526 = vmatmul.mubr.f32.gmra.mrb[0].mxu0 %v2525
        %v2527 = vpop.f32.mrb[0].mxu0
        %v2528 = vadd.f32 %v2435, %v2527
        %v2529 = vpop.f32.mrb[0].mxu0
        %2530 = vmatprep.mubr.f32.mxu0 0.0
        %v2531 = vand.u32 %v1921, 4294901760
        %2532 = vmatmul.mubr.f32.gmra.mrb[0].mxu0 %v2531
        %v2533 = vpop.f32.mrb[0].mxu0
        %v2534 = vadd.f32 %v2441, %v2533
        %v2535 = vpop.f32.mrb[0].mxu0
        %2536 = vdwg.mxu0
        %v2538 = vsel %vm1910, %v429, 0
        %v2541 = vsel %vm1910, %v430, 0
        %v2544 = vsel %vm1910, %v431, 0
        %v2547 = vsel %vm1910, %v432, 0
        %v2550 = vsel %vm1910, %v433, 0
        %v2553 = vsel %vm1910, %v434, 0
        %v2556 = vsel %vm1910, %v435, 0
        %v2559 = vsel %vm1910, %v436, 0
        %2561 = vmatprep.subr.mxu0 0.0
        %v2562 = vand.u32 %v2516, 4294901760
        %2563 = vmatpush1.msra.mxu0 %v2562
        %2564 = vmatprep.subr.mxu0 0.0
        %v2565 = vand.u32 %v2522, 4294901760
        %2566 = vmatpush1.msra.mxu0 %v2565
        %2567 = vmatprep.subr.mxu0 0.0
        %v2568 = vand.u32 %v2528, 4294901760
        %2569 = vmatpush1.msra.mxu0 %v2568
        %2570 = vmatprep.subr.mxu0 0.0
        %v2571 = vand.u32 %v2534, 4294901760
        %2572 = vmatpush1.msra.mxu0 %v2571
        %2573 = vmatprep.subr.mxu0 0.0
        %2574 = vmatpush1.msra.mxu0 0.0
        %2575 = vmatprep.subr.mxu0 0.0
        %2576 = vmatpush1.msra.mxu0 0.0
        %2577 = vmatprep.subr.mxu0 0.0
        %2578 = vmatpush1.msra.mxu0 0.0
        %2579 = vmatprep.subr.mxu0 0.0
        %2580 = vmatpush1.msra.mxu0 0.0
        %2581 = vmatprep.subr.mxu0 0.0
        %2582 = vmatpush1.msra.mxu0 0.0
        %2583 = vmatprep.subr.mxu0 0.0
        %2584 = vmatpush1.msra.mxu0 0.0
        %2585 = vmatprep.subr.mxu0 0.0
        %2586 = vmatpush1.msra.mxu0 0.0
        %2587 = vmatprep.subr.mxu0 0.0
        %2588 = vmatpush1.msra.mxu0 0.0
        %2589 = vmatprep.subr.mxu0 0.0
        %2590 = vmatpush1.msra.mxu0 0.0
        %2591 = vmatprep.subr.mxu0 0.0
        %2592 = vmatpush1.msra.mxu0 0.0
        %2593 = vmatprep.subr.mxu0 0.0
        %2594 = vmatpush1.msra.mxu0 0.0
        %2595 = vmatprep.subr.mxu0 0.0
        %2596 = vmatpush1.msra.mxu0 0.0
        %2597 = vmatprep.subr.mxu0 0.0
        %2598 = vmatpush1.msra.mxu0 0.0
        %2599 = vmatprep.subr.mxu0 0.0
        %2600 = vmatpush1.msra.mxu0 0.0
        %2601 = vmatprep.subr.mxu0 0.0
        %2602 = vmatpush1.msra.mxu0 0.0
        %2603 = vmatprep.subr.mxu0 0.0
        %2604 = vmatpush1.msra.mxu0 0.0
        %2605 = vmatprep.subr.mxu0 0.0
        %2606 = vmatpush1.msra.mxu0 0.0
        %2607 = vmatprep.subr.mxu0 0.0
        %2608 = vmatpush1.msra.mxu0 0.0
        %2609 = vmatprep.subr.mxu0 0.0
        %2610 = vmatpush1.msra.mxu0 0.0
        %2611 = vmatprep.subr.mxu0 0.0
        %2612 = vmatpush1.msra.mxu0 0.0
        %2613 = vmatprep.subr.mxu0 0.0
        %2614 = vmatpush1.msra.mxu0 0.0
        %2615 = vmatprep.subr.mxu0 0.0
        %2616 = vmatpush1.msra.mxu0 0.0
        %2617 = vmatprep.subr.mxu0 0.0
        %2618 = vmatpush1.msra.mxu0 0.0
        %2619 = vmatprep.subr.mxu0 0.0
        %2620 = vmatpush1.msra.mxu0 0.0
        %2621 = vmatprep.subr.mxu0 0.0
        %2622 = vmatpush1.msra.mxu0 0.0
        %2623 = vmatprep.subr.mxu0 0.0
        %2624 = vmatpush1.msra.mxu0 0.0
        %2625 = vmatprep.subr.mxu0 0.0
        %2626 = vmatpush1.msra.mxu0 0.0
        %2627 = vmatprep.subr.mxu0 0.0
        %2628 = vmatpush1.msra.mxu0 0.0
        %2629 = vmatprep.mubr.f32.mxu0 0.0
        %v2630 = vand.u32 %v2538, 4294901760
        %v2631 = vsub.f32 %v2538, %v2630
        %v2632 = vand.u32 %v2631, 4294901760
        %v2633 = vsub.f32 %v2631, %v2632
        %v2634 = vand.u32 %v2633, 4294901760
        %2635 = vmatmul.mubr.f32.gmra.mrb[0].mxu0 %v2634
        %v2636 = vpop.f32.mrb[0].mxu0
        %v2637 = vadd.f32 0.0, %v2636
        %v2638 = vpop.f32.mrb[0].mxu0
        %2639 = vmatprep.mubr.f32.mxu0 0.0
        %v2640 = vand.u32 %v2541, 4294901760
        %v2641 = vsub.f32 %v2541, %v2640
        %v2642 = vand.u32 %v2641, 4294901760
        %v2643 = vsub.f32 %v2641, %v2642
        %v2644 = vand.u32 %v2643, 4294901760
        %2645 = vmatmul.mubr.f32.gmra.mrb[0].mxu0 %v2644
        %v2646 = vpop.f32.mrb[0].mxu0
        %v2647 = vadd.f32 0.0, %v2646
        %v2648 = vpop.f32.mrb[0].mxu0
        %2649 = vmatprep.mubr.f32.mxu0 0.0
        %v2650 = vand.u32 %v2544, 4294901760
        %v2651 = vsub.f32 %v2544, %v2650
        %v2652 = vand.u32 %v2651, 4294901760
        %v2653 = vsub.f32 %v2651, %v2652
        %v2654 = vand.u32 %v2653, 4294901760
        %2655 = vmatmul.mubr.f32.gmra.mrb[0].mxu0 %v2654
        %v2656 = vpop.f32.mrb[0].mxu0
        %v2657 = vadd.f32 0.0, %v2656
        %v2658 = vpop.f32.mrb[0].mxu0
        %2659 = vmatprep.mubr.f32.mxu0 0.0
        %v2660 = vand.u32 %v2547, 4294901760
        %v2661 = vsub.f32 %v2547, %v2660
        %v2662 = vand.u32 %v2661, 4294901760
        %v2663 = vsub.f32 %v2661, %v2662
        %v2664 = vand.u32 %v2663, 4294901760
        %2665 = vmatmul.mubr.f32.gmra.mrb[0].mxu0 %v2664
        %v2666 = vpop.f32.mrb[0].mxu0
        %v2667 = vadd.f32 0.0, %v2666
        %v2668 = vpop.f32.mrb[0].mxu0
        %2669 = vmatprep.mubr.f32.mxu0 0.0
        %v2670 = vand.u32 %v2550, 4294901760
        %v2671 = vsub.f32 %v2550, %v2670
        %v2672 = vand.u32 %v2671, 4294901760
        %v2673 = vsub.f32 %v2671, %v2672
        %v2674 = vand.u32 %v2673, 4294901760
        %2675 = vmatmul.mubr.f32.gmra.mrb[0].mxu0 %v2674
        %v2676 = vpop.f32.mrb[0].mxu0
        %v2677 = vadd.f32 0.0, %v2676
        %v2678 = vpop.f32.mrb[0].mxu0
        %2679 = vmatprep.mubr.f32.mxu0 0.0
        %v2680 = vand.u32 %v2553, 4294901760
        %v2681 = vsub.f32 %v2553, %v2680
        %v2682 = vand.u32 %v2681, 4294901760
        %v2683 = vsub.f32 %v2681, %v2682
        %v2684 = vand.u32 %v2683, 4294901760
        %2685 = vmatmul.mubr.f32.gmra.mrb[0].mxu0 %v2684
        %v2686 = vpop.f32.mrb[0].mxu0
        %v2687 = vadd.f32 0.0, %v2686
        %v2688 = vpop.f32.mrb[0].mxu0
        %2689 = vmatprep.mubr.f32.mxu0 0.0
        %v2690 = vand.u32 %v2556, 4294901760
        %v2691 = vsub.f32 %v2556, %v2690
        %v2692 = vand.u32 %v2691, 4294901760
        %v2693 = vsub.f32 %v2691, %v2692
        %v2694 = vand.u32 %v2693, 4294901760
        %2695 = vmatmul.mubr.f32.gmra.mrb[0].mxu0 %v2694
        %v2696 = vpop.f32.mrb[0].mxu0
        %v2697 = vadd.f32 0.0, %v2696
        %v2698 = vpop.f32.mrb[0].mxu0
        %2699 = vmatprep.mubr.f32.mxu0 0.0
        %v2700 = vand.u32 %v2559, 4294901760
        %v2701 = vsub.f32 %v2559, %v2700
        %v2702 = vand.u32 %v2701, 4294901760
        %v2703 = vsub.f32 %v2701, %v2702
        %v2704 = vand.u32 %v2703, 4294901760
        %2705 = vmatmul.mubr.f32.gmra.mrb[0].mxu0 %v2704
        %v2706 = vpop.f32.mrb[0].mxu0
        %v2707 = vadd.f32 0.0, %v2706
        %v2708 = vpop.f32.mrb[0].mxu0
        %2709 = vdwg.mxu0
        %2710 = vmatprep.subr.mxu0 0.0
        %v2711 = vand.u32 %v2516, 4294901760
        %v2712 = vsub.f32 %v2516, %v2711
        %v2713 = vand.u32 %v2712, 4294901760
        %v2714 = vsub.f32 %v2712, %v2713
        %v2715 = vand.u32 %v2714, 4294901760
        %2716 = vmatpush1.msra.mxu0 %v2715
        %2717 = vmatprep.subr.mxu0 0.0
        %v2718 = vand.u32 %v2522, 4294901760
        %v2719 = vsub.f32 %v2522, %v2718
        %v2720 = vand.u32 %v2719, 4294901760
        %v2721 = vsub.f32 %v2719, %v2720
        %v2722 = vand.u32 %v2721, 4294901760
        %2723 = vmatpush1.msra.mxu0 %v2722
        %2724 = vmatprep.subr.mxu0 0.0
        %v2725 = vand.u32 %v2528, 4294901760
        %v2726 = vsub.f32 %v2528, %v2725
        %v2727 = vand.u32 %v2726, 4294901760
        %v2728 = vsub.f32 %v2726, %v2727
        %v2729 = vand.u32 %v2728, 4294901760
        %2730 = vmatpush1.msra.mxu0 %v2729
        %2731 = vmatprep.subr.mxu0 0.0
        %v2732 = vand.u32 %v2534, 4294901760
        %v2733 = vsub.f32 %v2534, %v2732
        %v2734 = vand.u32 %v2733, 4294901760
        %v2735 = vsub.f32 %v2733, %v2734
        %v2736 = vand.u32 %v2735, 4294901760
        %2737 = vmatpush1.msra.mxu0 %v2736
        %2738 = vmatprep.subr.mxu0 0.0
        %2739 = vmatpush1.msra.mxu0 0.0
        %2740 = vmatprep.subr.mxu0 0.0
        %2741 = vmatpush1.msra.mxu0 0.0
        %2742 = vmatprep.subr.mxu0 0.0
        %2743 = vmatpush1.msra.mxu0 0.0
        %2744 = vmatprep.subr.mxu0 0.0
        %2745 = vmatpush1.msra.mxu0 0.0
        %2746 = vmatprep.subr.mxu0 0.0
        %2747 = vmatpush1.msra.mxu0 0.0
        %2748 = vmatprep.subr.mxu0 0.0
        %2749 = vmatpush1.msra.mxu0 0.0
        %2750 = vmatprep.subr.mxu0 0.0
        %2751 = vmatpush1.msra.mxu0 0.0
        %2752 = vmatprep.subr.mxu0 0.0
        %2753 = vmatpush1.msra.mxu0 0.0
        %2754 = vmatprep.subr.mxu0 0.0
        %2755 = vmatpush1.msra.mxu0 0.0
        %2756 = vmatprep.subr.mxu0 0.0
        %2757 = vmatpush1.msra.mxu0 0.0
        %2758 = vmatprep.subr.mxu0 0.0
        %2759 = vmatpush1.msra.mxu0 0.0
        %2760 = vmatprep.subr.mxu0 0.0
        %2761 = vmatpush1.msra.mxu0 0.0
        %2762 = vmatprep.subr.mxu0 0.0
        %2763 = vmatpush1.msra.mxu0 0.0
        %2764 = vmatprep.subr.mxu0 0.0
        %2765 = vmatpush1.msra.mxu0 0.0
        %2766 = vmatprep.subr.mxu0 0.0
        %2767 = vmatpush1.msra.mxu0 0.0
        %2768 = vmatprep.subr.mxu0 0.0
        %2769 = vmatpush1.msra.mxu0 0.0
        %2770 = vmatprep.subr.mxu0 0.0
        %2771 = vmatpush1.msra.mxu0 0.0
        %2772 = vmatprep.subr.mxu0 0.0
        %2773 = vmatpush1.msra.mxu0 0.0
        %2774 = vmatprep.subr.mxu0 0.0
        %2775 = vmatpush1.msra.mxu0 0.0
        %2776 = vmatprep.subr.mxu0 0.0
        %2777 = vmatpush1.msra.mxu0 0.0
        %2778 = vmatprep.subr.mxu0 0.0
        %2779 = vmatpush1.msra.mxu0 0.0
        %2780 = vmatprep.subr.mxu0 0.0
        %2781 = vmatpush1.msra.mxu0 0.0
        %2782 = vmatprep.subr.mxu0 0.0
        %2783 = vmatpush1.msra.mxu0 0.0
        %2784 = vmatprep.subr.mxu0 0.0
        %2785 = vmatpush1.msra.mxu0 0.0
        %2786 = vmatprep.subr.mxu0 0.0
        %2787 = vmatpush1.msra.mxu0 0.0
        %2788 = vmatprep.subr.mxu0 0.0
        %2789 = vmatpush1.msra.mxu0 0.0
        %2790 = vmatprep.subr.mxu0 0.0
        %2791 = vmatpush1.msra.mxu0 0.0
        %2792 = vmatprep.subr.mxu0 0.0
        %2793 = vmatpush1.msra.mxu0 0.0
        %2794 = vmatprep.mubr.f32.mxu0 0.0
        %v2795 = vand.u32 %v2538, 4294901760
        %2796 = vmatmul.mubr.f32.gmra.mrb[0].mxu0 %v2795
        %v2797 = vpop.f32.mrb[0].mxu0
        %v2798 = vadd.f32 %v2637, %v2797
        %v2799 = vpop.f32.mrb[0].mxu0
        %2800 = vmatprep.mubr.f32.mxu0 0.0
        %v2801 = vand.u32 %v2541, 4294901760
        %2802 = vmatmul.mubr.f32.gmra.mrb[0].mxu0 %v2801
        %v2803 = vpop.f32.mrb[0].mxu0
        %v2804 = vadd.f32 %v2647, %v2803
        %v2805 = vpop.f32.mrb[0].mxu0
        %2806 = vmatprep.mubr.f32.mxu0 0.0
        %v2807 = vand.u32 %v2544, 4294901760
        %2808 = vmatmul.mubr.f32.gmra.mrb[0].mxu0 %v2807
        %v2809 = vpop.f32.mrb[0].mxu0
        %v2810 = vadd.f32 %v2657, %v2809
        %v2811 = vpop.f32.mrb[0].mxu0
        %2812 = vmatprep.mubr.f32.mxu0 0.0
        %v2813 = vand.u32 %v2547, 4294901760
        %2814 = vmatmul.mubr.f32.gmra.mrb[0].mxu0 %v2813
        %v2815 = vpop.f32.mrb[0].mxu0
        %v2816 = vadd.f32 %v2667, %v2815
        %v2817 = vpop.f32.mrb[0].mxu0
        %2818 = vmatprep.mubr.f32.mxu0 0.0
        %v2819 = vand.u32 %v2550, 4294901760
        %2820 = vmatmul.mubr.f32.gmra.mrb[0].mxu0 %v2819
        %v2821 = vpop.f32.mrb[0].mxu0
        %v2822 = vadd.f32 %v2677, %v2821
        %v2823 = vpop.f32.mrb[0].mxu0
        %2824 = vmatprep.mubr.f32.mxu0 0.0
        %v2825 = vand.u32 %v2553, 4294901760
        %2826 = vmatmul.mubr.f32.gmra.mrb[0].mxu0 %v2825
        %v2827 = vpop.f32.mrb[0].mxu0
        %v2828 = vadd.f32 %v2687, %v2827
        %v2829 = vpop.f32.mrb[0].mxu0
        %2830 = vmatprep.mubr.f32.mxu0 0.0
        %v2831 = vand.u32 %v2556, 4294901760
        %2832 = vmatmul.mubr.f32.gmra.mrb[0].mxu0 %v2831
        %v2833 = vpop.f32.mrb[0].mxu0
        %v2834 = vadd.f32 %v2697, %v2833
        %v2835 = vpop.f32.mrb[0].mxu0
        %2836 = vmatprep.mubr.f32.mxu0 0.0
        %v2837 = vand.u32 %v2559, 4294901760
        %2838 = vmatmul.mubr.f32.gmra.mrb[0].mxu0 %v2837
        %v2839 = vpop.f32.mrb[0].mxu0
        %v2840 = vadd.f32 %v2707, %v2839
        %v2841 = vpop.f32.mrb[0].mxu0
        %2842 = vdwg.mxu0
        %2843 = vmatprep.subr.mxu0 0.0
        %v2844 = vand.u32 %v2516, 4294901760
        %v2845 = vsub.f32 %v2516, %v2844
        %2846 = vmatpush1.msra.mxu0 %v2845
        %2847 = vmatprep.subr.mxu0 0.0
        %v2848 = vand.u32 %v2522, 4294901760
        %v2849 = vsub.f32 %v2522, %v2848
        %2850 = vmatpush1.msra.mxu0 %v2849
        %2851 = vmatprep.subr.mxu0 0.0
        %v2852 = vand.u32 %v2528, 4294901760
        %v2853 = vsub.f32 %v2528, %v2852
        %2854 = vmatpush1.msra.mxu0 %v2853
        %2855 = vmatprep.subr.mxu0 0.0
        %v2856 = vand.u32 %v2534, 4294901760
        %v2857 = vsub.f32 %v2534, %v2856
        %2858 = vmatpush1.msra.mxu0 %v2857
        %2859 = vmatprep.subr.mxu0 0.0
        %2860 = vmatpush1.msra.mxu0 0.0
        %2861 = vmatprep.subr.mxu0 0.0
        %2862 = vmatpush1.msra.mxu0 0.0
        %2863 = vmatprep.subr.mxu0 0.0
        %2864 = vmatpush1.msra.mxu0 0.0
        %2865 = vmatprep.subr.mxu0 0.0
        %2866 = vmatpush1.msra.mxu0 0.0
        %2867 = vmatprep.subr.mxu0 0.0
        %2868 = vmatpush1.msra.mxu0 0.0
        %2869 = vmatprep.subr.mxu0 0.0
        %2870 = vmatpush1.msra.mxu0 0.0
        %2871 = vmatprep.subr.mxu0 0.0
        %2872 = vmatpush1.msra.mxu0 0.0
        %2873 = vmatprep.subr.mxu0 0.0
        %2874 = vmatpush1.msra.mxu0 0.0
        %2875 = vmatprep.subr.mxu0 0.0
        %2876 = vmatpush1.msra.mxu0 0.0
        %2877 = vmatprep.subr.mxu0 0.0
        %2878 = vmatpush1.msra.mxu0 0.0
        %2879 = vmatprep.subr.mxu0 0.0
        %2880 = vmatpush1.msra.mxu0 0.0
        %2881 = vmatprep.subr.mxu0 0.0
        %2882 = vmatpush1.msra.mxu0 0.0
        %2883 = vmatprep.subr.mxu0 0.0
        %2884 = vmatpush1.msra.mxu0 0.0
        %2885 = vmatprep.subr.mxu0 0.0
        %2886 = vmatpush1.msra.mxu0 0.0
        %2887 = vmatprep.subr.mxu0 0.0
        %2888 = vmatpush1.msra.mxu0 0.0
        %2889 = vmatprep.subr.mxu0 0.0
        %2890 = vmatpush1.msra.mxu0 0.0
        %2891 = vmatprep.subr.mxu0 0.0
        %2892 = vmatpush1.msra.mxu0 0.0
        %2893 = vmatprep.subr.mxu0 0.0
        %2894 = vmatpush1.msra.mxu0 0.0
        %2895 = vmatprep.subr.mxu0 0.0
        %2896 = vmatpush1.msra.mxu0 0.0
        %2897 = vmatprep.subr.mxu0 0.0
        %2898 = vmatpush1.msra.mxu0 0.0
        %2899 = vmatprep.subr.mxu0 0.0
        %2900 = vmatpush1.msra.mxu0 0.0
        %2901 = vmatprep.subr.mxu0 0.0
        %2902 = vmatpush1.msra.mxu0 0.0
        %2903 = vmatprep.subr.mxu0 0.0
        %2904 = vmatpush1.msra.mxu0 0.0
        %2905 = vmatprep.subr.mxu0 0.0
        %2906 = vmatpush1.msra.mxu0 0.0
        %2907 = vmatprep.subr.mxu0 0.0
        %2908 = vmatpush1.msra.mxu0 0.0
        %2909 = vmatprep.subr.mxu0 0.0
        %2910 = vmatpush1.msra.mxu0 0.0
        %2911 = vmatprep.subr.mxu0 0.0
        %2912 = vmatpush1.msra.mxu0 0.0
        %2913 = vmatprep.subr.mxu0 0.0
        %2914 = vmatpush1.msra.mxu0 0.0
        %2915 = vmatprep.mubr.f32.mxu0 0.0
        %v2916 = vand.u32 %v2538, 4294901760
        %v2917 = vsub.f32 %v2538, %v2916
        %2918 = vmatmul.mubr.f32.gmra.mrb[0].mxu0 %v2917
        %v2919 = vpop.f32.mrb[0].mxu0
        %v2920 = vadd.f32 %v2798, %v2919
        %v2921 = vpop.f32.mrb[0].mxu0
        %2922 = vmatprep.mubr.f32.mxu0 0.0
        %v2923 = vand.u32 %v2541, 4294901760
        %v2924 = vsub.f32 %v2541, %v2923
        %2925 = vmatmul.mubr.f32.gmra.mrb[0].mxu0 %v2924
        %v2926 = vpop.f32.mrb[0].mxu0
        %v2927 = vadd.f32 %v2804, %v2926
        %v2928 = vpop.f32.mrb[0].mxu0
        %2929 = vmatprep.mubr.f32.mxu0 0.0
        %v2930 = vand.u32 %v2544, 4294901760
        %v2931 = vsub.f32 %v2544, %v2930
        %2932 = vmatmul.mubr.f32.gmra.mrb[0].mxu0 %v2931
        %v2933 = vpop.f32.mrb[0].mxu0
        %v2934 = vadd.f32 %v2810, %v2933
        %v2935 = vpop.f32.mrb[0].mxu0
        %2936 = vmatprep.mubr.f32.mxu0 0.0
        %v2937 = vand.u32 %v2547, 4294901760
        %v2938 = vsub.f32 %v2547, %v2937
        %2939 = vmatmul.mubr.f32.gmra.mrb[0].mxu0 %v2938
        %v2940 = vpop.f32.mrb[0].mxu0
        %v2941 = vadd.f32 %v2816, %v2940
        %v2942 = vpop.f32.mrb[0].mxu0
        %2943 = vmatprep.mubr.f32.mxu0 0.0
        %v2944 = vand.u32 %v2550, 4294901760
        %v2945 = vsub.f32 %v2550, %v2944
        %2946 = vmatmul.mubr.f32.gmra.mrb[0].mxu0 %v2945
        %v2947 = vpop.f32.mrb[0].mxu0
        %v2948 = vadd.f32 %v2822, %v2947
        %v2949 = vpop.f32.mrb[0].mxu0
        %2950 = vmatprep.mubr.f32.mxu0 0.0
        %v2951 = vand.u32 %v2553, 4294901760
        %v2952 = vsub.f32 %v2553, %v2951
        %2953 = vmatmul.mubr.f32.gmra.mrb[0].mxu0 %v2952
        %v2954 = vpop.f32.mrb[0].mxu0
        %v2955 = vadd.f32 %v2828, %v2954
        %v2956 = vpop.f32.mrb[0].mxu0
        %2957 = vmatprep.mubr.f32.mxu0 0.0
        %v2958 = vand.u32 %v2556, 4294901760
        %v2959 = vsub.f32 %v2556, %v2958
        %2960 = vmatmul.mubr.f32.gmra.mrb[0].mxu0 %v2959
        %v2961 = vpop.f32.mrb[0].mxu0
        %v2962 = vadd.f32 %v2834, %v2961
        %v2963 = vpop.f32.mrb[0].mxu0
        %2964 = vmatprep.mubr.f32.mxu0 0.0
        %v2965 = vand.u32 %v2559, 4294901760
        %v2966 = vsub.f32 %v2559, %v2965
        %2967 = vmatmul.mubr.f32.gmra.mrb[0].mxu0 %v2966
        %v2968 = vpop.f32.mrb[0].mxu0
        %v2969 = vadd.f32 %v2840, %v2968
        %v2970 = vpop.f32.mrb[0].mxu0
        %2971 = vdwg.mxu0
        %2972 = vmatprep.subr.mxu0 0.0
        %v2973 = vand.u32 %v2516, 4294901760
        %2974 = vmatpush1.msra.mxu0 %v2973
        %2975 = vmatprep.subr.mxu0 0.0
        %v2976 = vand.u32 %v2522, 4294901760
        %2977 = vmatpush1.msra.mxu0 %v2976
        %2978 = vmatprep.subr.mxu0 0.0
        %v2979 = vand.u32 %v2528, 4294901760
        %2980 = vmatpush1.msra.mxu0 %v2979
        %2981 = vmatprep.subr.mxu0 0.0
        %v2982 = vand.u32 %v2534, 4294901760
        %2983 = vmatpush1.msra.mxu0 %v2982
        %2984 = vmatprep.subr.mxu0 0.0
        %2985 = vmatpush1.msra.mxu0 0.0
        %2986 = vmatprep.subr.mxu0 0.0
        %2987 = vmatpush1.msra.mxu0 0.0
        %2988 = vmatprep.subr.mxu0 0.0
        %2989 = vmatpush1.msra.mxu0 0.0
        %2990 = vmatprep.subr.mxu0 0.0
        %2991 = vmatpush1.msra.mxu0 0.0
        %2992 = vmatprep.subr.mxu0 0.0
        %2993 = vmatpush1.msra.mxu0 0.0
        %2994 = vmatprep.subr.mxu0 0.0
        %2995 = vmatpush1.msra.mxu0 0.0
        %2996 = vmatprep.subr.mxu0 0.0
        %2997 = vmatpush1.msra.mxu0 0.0
        %2998 = vmatprep.subr.mxu0 0.0
        %2999 = vmatpush1.msra.mxu0 0.0
        %3000 = vmatprep.subr.mxu0 0.0
        %3001 = vmatpush1.msra.mxu0 0.0
        %3002 = vmatprep.subr.mxu0 0.0
        %3003 = vmatpush1.msra.mxu0 0.0
        %3004 = vmatprep.subr.mxu0 0.0
        %3005 = vmatpush1.msra.mxu0 0.0
        %3006 = vmatprep.subr.mxu0 0.0
        %3007 = vmatpush1.msra.mxu0 0.0
        %3008 = vmatprep.subr.mxu0 0.0
        %3009 = vmatpush1.msra.mxu0 0.0
        %3010 = vmatprep.subr.mxu0 0.0
        %3011 = vmatpush1.msra.mxu0 0.0
        %3012 = vmatprep.subr.mxu0 0.0
        %3013 = vmatpush1.msra.mxu0 0.0
        %3014 = vmatprep.subr.mxu0 0.0
        %3015 = vmatpush1.msra.mxu0 0.0
        %3016 = vmatprep.subr.mxu0 0.0
        %3017 = vmatpush1.msra.mxu0 0.0
        %3018 = vmatprep.subr.mxu0 0.0
        %3019 = vmatpush1.msra.mxu0 0.0
        %3020 = vmatprep.subr.mxu0 0.0
        %3021 = vmatpush1.msra.mxu0 0.0
        %3022 = vmatprep.subr.mxu0 0.0
        %3023 = vmatpush1.msra.mxu0 0.0
        %3024 = vmatprep.subr.mxu0 0.0
        %3025 = vmatpush1.msra.mxu0 0.0
        %3026 = vmatprep.subr.mxu0 0.0
        %3027 = vmatpush1.msra.mxu0 0.0
        %3028 = vmatprep.subr.mxu0 0.0
        %3029 = vmatpush1.msra.mxu0 0.0
        %3030 = vmatprep.subr.mxu0 0.0
        %3031 = vmatpush1.msra.mxu0 0.0
        %3032 = vmatprep.subr.mxu0 0.0
        %3033 = vmatpush1.msra.mxu0 0.0
        %3034 = vmatprep.subr.mxu0 0.0
        %3035 = vmatpush1.msra.mxu0 0.0
        %3036 = vmatprep.subr.mxu0 0.0
        %3037 = vmatpush1.msra.mxu0 0.0
        %3038 = vmatprep.subr.mxu0 0.0
        %3039 = vmatpush1.msra.mxu0 0.0
        %3040 = vmatprep.mubr.f32.mxu0 0.0
        %v3041 = vand.u32 %v2538, 4294901760
        %v3042 = vsub.f32 %v2538, %v3041
        %v3043 = vand.u32 %v3042, 4294901760
        %3044 = vmatmul.mubr.f32.gmra.mrb[0].mxu0 %v3043
        %v3045 = vpop.f32.mrb[0].mxu0
        %v3046 = vadd.f32 %v2920, %v3045
        %v3047 = vpop.f32.mrb[0].mxu0
        %3048 = vmatprep.mubr.f32.mxu0 0.0
        %v3049 = vand.u32 %v2541, 4294901760
        %v3050 = vsub.f32 %v2541, %v3049
        %v3051 = vand.u32 %v3050, 4294901760
        %3052 = vmatmul.mubr.f32.gmra.mrb[0].mxu0 %v3051
        %v3053 = vpop.f32.mrb[0].mxu0
        %v3054 = vadd.f32 %v2927, %v3053
        %v3055 = vpop.f32.mrb[0].mxu0
        %3056 = vmatprep.mubr.f32.mxu0 0.0
        %v3057 = vand.u32 %v2544, 4294901760
        %v3058 = vsub.f32 %v2544, %v3057
        %v3059 = vand.u32 %v3058, 4294901760
        %3060 = vmatmul.mubr.f32.gmra.mrb[0].mxu0 %v3059
        %v3061 = vpop.f32.mrb[0].mxu0
        %v3062 = vadd.f32 %v2934, %v3061
        %v3063 = vpop.f32.mrb[0].mxu0
        %3064 = vmatprep.mubr.f32.mxu0 0.0
        %v3065 = vand.u32 %v2547, 4294901760
        %v3066 = vsub.f32 %v2547, %v3065
        %v3067 = vand.u32 %v3066, 4294901760
        %3068 = vmatmul.mubr.f32.gmra.mrb[0].mxu0 %v3067
        %v3069 = vpop.f32.mrb[0].mxu0
        %v3070 = vadd.f32 %v2941, %v3069
        %v3071 = vpop.f32.mrb[0].mxu0
        %3072 = vmatprep.mubr.f32.mxu0 0.0
        %v3073 = vand.u32 %v2550, 4294901760
        %v3074 = vsub.f32 %v2550, %v3073
        %v3075 = vand.u32 %v3074, 4294901760
        %3076 = vmatmul.mubr.f32.gmra.mrb[0].mxu0 %v3075
        %v3077 = vpop.f32.mrb[0].mxu0
        %v3078 = vadd.f32 %v2948, %v3077
        %v3079 = vpop.f32.mrb[0].mxu0
        %3080 = vmatprep.mubr.f32.mxu0 0.0
        %v3081 = vand.u32 %v2553, 4294901760
        %v3082 = vsub.f32 %v2553, %v3081
        %v3083 = vand.u32 %v3082, 4294901760
        %3084 = vmatmul.mubr.f32.gmra.mrb[0].mxu0 %v3083
        %v3085 = vpop.f32.mrb[0].mxu0
        %v3086 = vadd.f32 %v2955, %v3085
        %v3087 = vpop.f32.mrb[0].mxu0
        %3088 = vmatprep.mubr.f32.mxu0 0.0
        %v3089 = vand.u32 %v2556, 4294901760
        %v3090 = vsub.f32 %v2556, %v3089
        %v3091 = vand.u32 %v3090, 4294901760
        %3092 = vmatmul.mubr.f32.gmra.mrb[0].mxu0 %v3091
        %v3093 = vpop.f32.mrb[0].mxu0
        %v3094 = vadd.f32 %v2962, %v3093
        %v3095 = vpop.f32.mrb[0].mxu0
        %3096 = vmatprep.mubr.f32.mxu0 0.0
        %v3097 = vand.u32 %v2559, 4294901760
        %v3098 = vsub.f32 %v2559, %v3097
        %v3099 = vand.u32 %v3098, 4294901760
        %3100 = vmatmul.mubr.f32.gmra.mrb[0].mxu0 %v3099
        %v3101 = vpop.f32.mrb[0].mxu0
        %v3102 = vadd.f32 %v2969, %v3101
        %v3103 = vpop.f32.mrb[0].mxu0
        %3104 = vdwg.mxu0
        %3105 = vmatprep.subr.mxu0 0.0
        %v3106 = vand.u32 %v2516, 4294901760
        %v3107 = vsub.f32 %v2516, %v3106
        %v3108 = vand.u32 %v3107, 4294901760
        %3109 = vmatpush1.msra.mxu0 %v3108
        %3110 = vmatprep.subr.mxu0 0.0
        %v3111 = vand.u32 %v2522, 4294901760
        %v3112 = vsub.f32 %v2522, %v3111
        %v3113 = vand.u32 %v3112, 4294901760
        %3114 = vmatpush1.msra.mxu0 %v3113
        %3115 = vmatprep.subr.mxu0 0.0
        %v3116 = vand.u32 %v2528, 4294901760
        %v3117 = vsub.f32 %v2528, %v3116
        %v3118 = vand.u32 %v3117, 4294901760
        %3119 = vmatpush1.msra.mxu0 %v3118
        %3120 = vmatprep.subr.mxu0 0.0
        %v3121 = vand.u32 %v2534, 4294901760
        %v3122 = vsub.f32 %v2534, %v3121
        %v3123 = vand.u32 %v3122, 4294901760
        %3124 = vmatpush1.msra.mxu0 %v3123
        %3125 = vmatprep.subr.mxu0 0.0
        %3126 = vmatpush1.msra.mxu0 0.0
        %3127 = vmatprep.subr.mxu0 0.0
        %3128 = vmatpush1.msra.mxu0 0.0
        %3129 = vmatprep.subr.mxu0 0.0
        %3130 = vmatpush1.msra.mxu0 0.0
        %3131 = vmatprep.subr.mxu0 0.0
        %3132 = vmatpush1.msra.mxu0 0.0
        %3133 = vmatprep.subr.mxu0 0.0
        %3134 = vmatpush1.msra.mxu0 0.0
        %3135 = vmatprep.subr.mxu0 0.0
        %3136 = vmatpush1.msra.mxu0 0.0
        %3137 = vmatprep.subr.mxu0 0.0
        %3138 = vmatpush1.msra.mxu0 0.0
        %3139 = vmatprep.subr.mxu0 0.0
        %3140 = vmatpush1.msra.mxu0 0.0
        %3141 = vmatprep.subr.mxu0 0.0
        %3142 = vmatpush1.msra.mxu0 0.0
        %3143 = vmatprep.subr.mxu0 0.0
        %3144 = vmatpush1.msra.mxu0 0.0
        %3145 = vmatprep.subr.mxu0 0.0
        %3146 = vmatpush1.msra.mxu0 0.0
        %3147 = vmatprep.subr.mxu0 0.0
        %3148 = vmatpush1.msra.mxu0 0.0
        %3149 = vmatprep.subr.mxu0 0.0
        %3150 = vmatpush1.msra.mxu0 0.0
        %3151 = vmatprep.subr.mxu0 0.0
        %3152 = vmatpush1.msra.mxu0 0.0
        %3153 = vmatprep.subr.mxu0 0.0
        %3154 = vmatpush1.msra.mxu0 0.0
        %3155 = vmatprep.subr.mxu0 0.0
        %3156 = vmatpush1.msra.mxu0 0.0
        %3157 = vmatprep.subr.mxu0 0.0
        %3158 = vmatpush1.msra.mxu0 0.0
        %3159 = vmatprep.subr.mxu0 0.0
        %3160 = vmatpush1.msra.mxu0 0.0
        %3161 = vmatprep.subr.mxu0 0.0
        %3162 = vmatpush1.msra.mxu0 0.0
        %3163 = vmatprep.subr.mxu0 0.0
        %3164 = vmatpush1.msra.mxu0 0.0
        %3165 = vmatprep.subr.mxu0 0.0
        %3166 = vmatpush1.msra.mxu0 0.0
        %3167 = vmatprep.subr.mxu0 0.0
        %3168 = vmatpush1.msra.mxu0 0.0
        %3169 = vmatprep.subr.mxu0 0.0
        %3170 = vmatpush1.msra.mxu0 0.0
        %3171 = vmatprep.subr.mxu0 0.0
        %3172 = vmatpush1.msra.mxu0 0.0
        %3173 = vmatprep.subr.mxu0 0.0
        %3174 = vmatpush1.msra.mxu0 0.0
        %3175 = vmatprep.subr.mxu0 0.0
        %3176 = vmatpush1.msra.mxu0 0.0
        %3177 = vmatprep.subr.mxu0 0.0
        %3178 = vmatpush1.msra.mxu0 0.0
        %3179 = vmatprep.subr.mxu0 0.0
        %3180 = vmatpush1.msra.mxu0 0.0
        %3181 = vmatprep.mubr.f32.mxu0 0.0
        %v3182 = vand.u32 %v2538, 4294901760
        %3183 = vmatmul.mubr.f32.gmra.mrb[0].mxu0 %v3182
        %v3184 = vpop.f32.mrb[0].mxu0
        %v3185 = vadd.f32 %v3046, %v3184
        %v3186 = vpop.f32.mrb[0].mxu0
        %3187 = vmatprep.mubr.f32.mxu0 0.0
        %v3188 = vand.u32 %v2541, 4294901760
        %3189 = vmatmul.mubr.f32.gmra.mrb[0].mxu0 %v3188
        %v3190 = vpop.f32.mrb[0].mxu0
        %v3191 = vadd.f32 %v3054, %v3190
        %v3192 = vpop.f32.mrb[0].mxu0
        %3193 = vmatprep.mubr.f32.mxu0 0.0
        %v3194 = vand.u32 %v2544, 4294901760
        %3195 = vmatmul.mubr.f32.gmra.mrb[0].mxu0 %v3194
        %v3196 = vpop.f32.mrb[0].mxu0
        %v3197 = vadd.f32 %v3062, %v3196
        %v3198 = vpop.f32.mrb[0].mxu0
        %3199 = vmatprep.mubr.f32.mxu0 0.0
        %v3200 = vand.u32 %v2547, 4294901760
        %3201 = vmatmul.mubr.f32.gmra.mrb[0].mxu0 %v3200
        %v3202 = vpop.f32.mrb[0].mxu0
        %v3203 = vadd.f32 %v3070, %v3202
        %v3204 = vpop.f32.mrb[0].mxu0
        %3205 = vmatprep.mubr.f32.mxu0 0.0
        %v3206 = vand.u32 %v2550, 4294901760
        %3207 = vmatmul.mubr.f32.gmra.mrb[0].mxu0 %v3206
        %v3208 = vpop.f32.mrb[0].mxu0
        %v3209 = vadd.f32 %v3078, %v3208
        %v3210 = vpop.f32.mrb[0].mxu0
        %3211 = vmatprep.mubr.f32.mxu0 0.0
        %v3212 = vand.u32 %v2553, 4294901760
        %3213 = vmatmul.mubr.f32.gmra.mrb[0].mxu0 %v3212
        %v3214 = vpop.f32.mrb[0].mxu0
        %v3215 = vadd.f32 %v3086, %v3214
        %v3216 = vpop.f32.mrb[0].mxu0
        %3217 = vmatprep.mubr.f32.mxu0 0.0
        %v3218 = vand.u32 %v2556, 4294901760
        %3219 = vmatmul.mubr.f32.gmra.mrb[0].mxu0 %v3218
        %v3220 = vpop.f32.mrb[0].mxu0
        %v3221 = vadd.f32 %v3094, %v3220
        %v3222 = vpop.f32.mrb[0].mxu0
        %3223 = vmatprep.mubr.f32.mxu0 0.0
        %v3224 = vand.u32 %v2559, 4294901760
        %3225 = vmatmul.mubr.f32.gmra.mrb[0].mxu0 %v3224
        %v3226 = vpop.f32.mrb[0].mxu0
        %v3227 = vadd.f32 %v3102, %v3226
        %v3228 = vpop.f32.mrb[0].mxu0
        %3229 = vdwg.mxu0
        %3230 = vmatprep.subr.mxu0 0.0
        %v3231 = vand.u32 %v2516, 4294901760
        %3232 = vmatpush1.msra.mxu0 %v3231
        %3233 = vmatprep.subr.mxu0 0.0
        %v3234 = vand.u32 %v2522, 4294901760
        %3235 = vmatpush1.msra.mxu0 %v3234
        %3236 = vmatprep.subr.mxu0 0.0
        %v3237 = vand.u32 %v2528, 4294901760
        %3238 = vmatpush1.msra.mxu0 %v3237
        %3239 = vmatprep.subr.mxu0 0.0
        %v3240 = vand.u32 %v2534, 4294901760
        %3241 = vmatpush1.msra.mxu0 %v3240
        %3242 = vmatprep.subr.mxu0 0.0
        %3243 = vmatpush1.msra.mxu0 0.0
        %3244 = vmatprep.subr.mxu0 0.0
        %3245 = vmatpush1.msra.mxu0 0.0
        %3246 = vmatprep.subr.mxu0 0.0
        %3247 = vmatpush1.msra.mxu0 0.0
        %3248 = vmatprep.subr.mxu0 0.0
        %3249 = vmatpush1.msra.mxu0 0.0
        %3250 = vmatprep.subr.mxu0 0.0
        %3251 = vmatpush1.msra.mxu0 0.0
        %3252 = vmatprep.subr.mxu0 0.0
        %3253 = vmatpush1.msra.mxu0 0.0
        %3254 = vmatprep.subr.mxu0 0.0
        %3255 = vmatpush1.msra.mxu0 0.0
        %3256 = vmatprep.subr.mxu0 0.0
        %3257 = vmatpush1.msra.mxu0 0.0
        %3258 = vmatprep.subr.mxu0 0.0
        %3259 = vmatpush1.msra.mxu0 0.0
        %3260 = vmatprep.subr.mxu0 0.0
        %3261 = vmatpush1.msra.mxu0 0.0
        %3262 = vmatprep.subr.mxu0 0.0
        %3263 = vmatpush1.msra.mxu0 0.0
        %3264 = vmatprep.subr.mxu0 0.0
        %3265 = vmatpush1.msra.mxu0 0.0
        %3266 = vmatprep.subr.mxu0 0.0
        %3267 = vmatpush1.msra.mxu0 0.0
        %3268 = vmatprep.subr.mxu0 0.0
        %3269 = vmatpush1.msra.mxu0 0.0
        %3270 = vmatprep.subr.mxu0 0.0
        %3271 = vmatpush1.msra.mxu0 0.0
        %3272 = vmatprep.subr.mxu0 0.0
        %3273 = vmatpush1.msra.mxu0 0.0
        %3274 = vmatprep.subr.mxu0 0.0
        %3275 = vmatpush1.msra.mxu0 0.0
        %3276 = vmatprep.subr.mxu0 0.0
        %3277 = vmatpush1.msra.mxu0 0.0
        %3278 = vmatprep.subr.mxu0 0.0
        %3279 = vmatpush1.msra.mxu0 0.0
        %3280 = vmatprep.subr.mxu0 0.0
        %3281 = vmatpush1.msra.mxu0 0.0
        %3282 = vmatprep.subr.mxu0 0.0
        %3283 = vmatpush1.msra.mxu0 0.0
        %3284 = vmatprep.subr.mxu0 0.0
        %3285 = vmatpush1.msra.mxu0 0.0
        %3286 = vmatprep.subr.mxu0 0.0
        %3287 = vmatpush1.msra.mxu0 0.0
        %3288 = vmatprep.subr.mxu0 0.0
        %3289 = vmatpush1.msra.mxu0 0.0
        %3290 = vmatprep.subr.mxu0 0.0
        %3291 = vmatpush1.msra.mxu0 0.0
        %3292 = vmatprep.subr.mxu0 0.0
        %3293 = vmatpush1.msra.mxu0 0.0
        %3294 = vmatprep.subr.mxu0 0.0
        %3295 = vmatpush1.msra.mxu0 0.0
        %3296 = vmatprep.subr.mxu0 0.0
        %3297 = vmatpush1.msra.mxu0 0.0
        %3298 = vmatprep.mubr.f32.mxu0 0.0
        %v3299 = vand.u32 %v2538, 4294901760
        %3300 = vmatmul.mubr.f32.gmra.mrb[0].mxu0 %v3299
        %v3301 = vpop.f32.mrb[0].mxu0
        %v3302 = vadd.f32 %v3185, %v3301
        %v3303 = vpop.f32.mrb[0].mxu0
        %3304 = vmatprep.mubr.f32.mxu0 0.0
        %v3305 = vand.u32 %v2541, 4294901760
        %3306 = vmatmul.mubr.f32.gmra.mrb[0].mxu0 %v3305
        %v3307 = vpop.f32.mrb[0].mxu0
        %v3308 = vadd.f32 %v3191, %v3307
        %v3309 = vpop.f32.mrb[0].mxu0
        %3310 = vmatprep.mubr.f32.mxu0 0.0
        %v3311 = vand.u32 %v2544, 4294901760
        %3312 = vmatmul.mubr.f32.gmra.mrb[0].mxu0 %v3311
        %v3313 = vpop.f32.mrb[0].mxu0
        %v3314 = vadd.f32 %v3197, %v3313
        %v3315 = vpop.f32.mrb[0].mxu0
        %3316 = vmatprep.mubr.f32.mxu0 0.0
        %v3317 = vand.u32 %v2547, 4294901760
        %3318 = vmatmul.mubr.f32.gmra.mrb[0].mxu0 %v3317
        %v3319 = vpop.f32.mrb[0].mxu0
        %v3320 = vadd.f32 %v3203, %v3319
        %v3321 = vpop.f32.mrb[0].mxu0
        %3322 = vmatprep.mubr.f32.mxu0 0.0
        %v3323 = vand.u32 %v2550, 4294901760
        %3324 = vmatmul.mubr.f32.gmra.mrb[0].mxu0 %v3323
        %v3325 = vpop.f32.mrb[0].mxu0
        %v3326 = vadd.f32 %v3209, %v3325
        %v3327 = vpop.f32.mrb[0].mxu0
        %3328 = vmatprep.mubr.f32.mxu0 0.0
        %v3329 = vand.u32 %v2553, 4294901760
        %3330 = vmatmul.mubr.f32.gmra.mrb[0].mxu0 %v3329
        %v3331 = vpop.f32.mrb[0].mxu0
        %v3332 = vadd.f32 %v3215, %v3331
        %v3333 = vpop.f32.mrb[0].mxu0
        %3334 = vmatprep.mubr.f32.mxu0 0.0
        %v3335 = vand.u32 %v2556, 4294901760
        %3336 = vmatmul.mubr.f32.gmra.mrb[0].mxu0 %v3335
        %v3337 = vpop.f32.mrb[0].mxu0
        %v3338 = vadd.f32 %v3221, %v3337
        %v3339 = vpop.f32.mrb[0].mxu0
        %3340 = vmatprep.mubr.f32.mxu0 0.0
        %v3341 = vand.u32 %v2559, 4294901760
        %3342 = vmatmul.mubr.f32.gmra.mrb[0].mxu0 %v3341
        %v3343 = vpop.f32.mrb[0].mxu0
        %v3344 = vadd.f32 %v3227, %v3343
        %v3345 = vpop.f32.mrb[0].mxu0
        %3346 = vdwg.mxu0
        %3347 = vst [vmem:[%s402] sm:$0xff] %v3302
        %3348 = vst [vmem:[%s402 + $0x8] sm:$0xff] %v3308
        %3349 = vst [vmem:[%s402 + $0x10] sm:$0xff] %v3314
        %3350 = vst [vmem:[%s402 + $0x18] sm:$0xff] %v3320
        %3351 = vst [vmem:[%s402 + $0x20] sm:$0xff] %v3326
        %3352 = vst [vmem:[%s402 + $0x28] sm:$0xff] %v3332
        %3353 = vst [vmem:[%s402 + $0x30] sm:$0xff] %v3338
        %3354 = vst [vmem:[%s402 + $0x38] sm:$0xff] %v3344
        %s3355 = scalar_lea.vmem %s344, 64 [#allocation2]
        %v3356 = vld [vmem:[%s3355] sm:$0xff]
        %v3357 = vld [vmem:[%s3355 + $0x8] sm:$0xff]
        %v3358 = vld [vmem:[%s3355 + $0x10] sm:$0xff]
        %v3359 = vld [vmem:[%s3355 + $0x18] sm:$0xff]
        %v3360 = vld [vmem:[%s3355 + $0x20] sm:$0xff]
        %v3361 = vld [vmem:[%s3355 + $0x28] sm:$0xff]
        %v3362 = vld [vmem:[%s3355 + $0x30] sm:$0xff]
        %v3363 = vld [vmem:[%s3355 + $0x38] sm:$0xff]
        %3364 = vmatprep.subr.mxu0 0.0
        %v3365 = vand.u32 %v3356, 4294901760
        %3366 = vmatpush1.msra.mxu0 %v3365
        %3367 = vmatprep.subr.mxu0 0.0
        %v3368 = vand.u32 %v3357, 4294901760
        %3369 = vmatpush1.msra.mxu0 %v3368
        %3370 = vmatprep.subr.mxu0 0.0
        %v3371 = vand.u32 %v3358, 4294901760
        %3372 = vmatpush1.msra.mxu0 %v3371
        %3373 = vmatprep.subr.mxu0 0.0
        %v3374 = vand.u32 %v3359, 4294901760
        %3375 = vmatpush1.msra.mxu0 %v3374
        %3376 = vmatprep.subr.mxu0 0.0
        %v3377 = vand.u32 %v3360, 4294901760
        %3378 = vmatpush1.msra.mxu0 %v3377
        %3379 = vmatprep.subr.mxu0 0.0
        %v3380 = vand.u32 %v3361, 4294901760
        %3381 = vmatpush1.msra.mxu0 %v3380
        %3382 = vmatprep.subr.mxu0 0.0
        %v3383 = vand.u32 %v3362, 4294901760
        %3384 = vmatpush1.msra.mxu0 %v3383
        %3385 = vmatprep.subr.mxu0 0.0
        %v3386 = vand.u32 %v3363, 4294901760
        %3387 = vmatpush1.msra.mxu0 %v3386
        %3388 = vmatprep.subr.mxu0 0.0
        %3389 = vmatpush1.msra.mxu0 0.0
        %3390 = vmatprep.subr.mxu0 0.0
        %3391 = vmatpush1.msra.mxu0 0.0
        %3392 = vmatprep.subr.mxu0 0.0
        %3393 = vmatpush1.msra.mxu0 0.0
        %3394 = vmatprep.subr.mxu0 0.0
        %3395 = vmatpush1.msra.mxu0 0.0
        %3396 = vmatprep.subr.mxu0 0.0
        %3397 = vmatpush1.msra.mxu0 0.0
        %3398 = vmatprep.subr.mxu0 0.0
        %3399 = vmatpush1.msra.mxu0 0.0
        %3400 = vmatprep.subr.mxu0 0.0
        %3401 = vmatpush1.msra.mxu0 0.0
        %3402 = vmatprep.subr.mxu0 0.0
        %3403 = vmatpush1.msra.mxu0 0.0
        %3404 = vmatprep.subr.mxu0 0.0
        %3405 = vmatpush1.msra.mxu0 0.0
        %3406 = vmatprep.subr.mxu0 0.0
        %3407 = vmatpush1.msra.mxu0 0.0
        %3408 = vmatprep.subr.mxu0 0.0
        %3409 = vmatpush1.msra.mxu0 0.0
        %3410 = vmatprep.subr.mxu0 0.0
        %3411 = vmatpush1.msra.mxu0 0.0
        %3412 = vmatprep.subr.mxu0 0.0
        %3413 = vmatpush1.msra.mxu0 0.0
        %3414 = vmatprep.subr.mxu0 0.0
        %3415 = vmatpush1.msra.mxu0 0.0
        %3416 = vmatprep.subr.mxu0 0.0
        %3417 = vmatpush1.msra.mxu0 0.0
        %3418 = vmatprep.subr.mxu0 0.0
        %3419 = vmatpush1.msra.mxu0 0.0
        %3420 = vmatprep.subr.mxu0 0.0
        %3421 = vmatpush1.msra.mxu0 0.0
        %3422 = vmatprep.subr.mxu0 0.0
        %3423 = vmatpush1.msra.mxu0 0.0
        %3424 = vmatprep.subr.mxu0 0.0
        %3425 = vmatpush1.msra.mxu0 0.0
        %3426 = vmatprep.subr.mxu0 0.0
        %3427 = vmatpush1.msra.mxu0 0.0
        %3428 = vmatprep.subr.mxu0 0.0
        %3429 = vmatpush1.msra.mxu0 0.0
        %3430 = vmatprep.subr.mxu0 0.0
        %3431 = vmatpush1.msra.mxu0 0.0
        %3432 = vmatprep.subr.mxu0 0.0
        %3433 = vmatpush1.msra.mxu0 0.0
        %3434 = vmatprep.subr.mxu0 0.0
        %3435 = vmatpush1.msra.mxu0 0.0
        %3436 = vmatprep.mubr.f32.mxu0 0.0
        %v3437 = vand.u32 %v451, 4294901760
        %v3438 = vsub.f32 %v451, %v3437
        %v3439 = vand.u32 %v3438, 4294901760
        %v3440 = vsub.f32 %v3438, %v3439
        %v3441 = vand.u32 %v3440, 4294901760
        %3442 = vmatmul.mubr.f32.gmra.mrb[0].mxu0 %v3441
        %v3443 = vpop.f32.mrb[0].mxu0
        %v3444 = vadd.f32 0.0, %v3443
        %v3445 = vpop.f32.mrb[0].mxu0
        %3446 = vmatprep.mubr.f32.mxu0 0.0
        %v3447 = vand.u32 %v454, 4294901760
        %v3448 = vsub.f32 %v454, %v3447
        %v3449 = vand.u32 %v3448, 4294901760
        %v3450 = vsub.f32 %v3448, %v3449
        %v3451 = vand.u32 %v3450, 4294901760
        %3452 = vmatmul.mubr.f32.gmra.mrb[0].mxu0 %v3451
        %v3453 = vpop.f32.mrb[0].mxu0
        %v3454 = vadd.f32 0.0, %v3453
        %v3455 = vpop.f32.mrb[0].mxu0
        %3456 = vmatprep.mubr.f32.mxu0 0.0
        %v3457 = vand.u32 %v457, 4294901760
        %v3458 = vsub.f32 %v457, %v3457
        %v3459 = vand.u32 %v3458, 4294901760
        %v3460 = vsub.f32 %v3458, %v3459
        %v3461 = vand.u32 %v3460, 4294901760
        %3462 = vmatmul.mubr.f32.gmra.mrb[0].mxu0 %v3461
        %v3463 = vpop.f32.mrb[0].mxu0
        %v3464 = vadd.f32 0.0, %v3463
        %v3465 = vpop.f32.mrb[0].mxu0
        %3466 = vmatprep.mubr.f32.mxu0 0.0
        %v3467 = vand.u32 %v460, 4294901760
        %v3468 = vsub.f32 %v460, %v3467
        %v3469 = vand.u32 %v3468, 4294901760
        %v3470 = vsub.f32 %v3468, %v3469
        %v3471 = vand.u32 %v3470, 4294901760
        %3472 = vmatmul.mubr.f32.gmra.mrb[0].mxu0 %v3471
        %v3473 = vpop.f32.mrb[0].mxu0
        %v3474 = vadd.f32 0.0, %v3473
        %v3475 = vpop.f32.mrb[0].mxu0
        %3476 = vdwg.mxu0
        %3477 = vmatprep.subr.mxu0 0.0
        %v3478 = vand.u32 %v3356, 4294901760
        %v3479 = vsub.f32 %v3356, %v3478
        %v3480 = vand.u32 %v3479, 4294901760
        %v3481 = vsub.f32 %v3479, %v3480
        %v3482 = vand.u32 %v3481, 4294901760
        %3483 = vmatpush1.msra.mxu0 %v3482
        %3484 = vmatprep.subr.mxu0 0.0
        %v3485 = vand.u32 %v3357, 4294901760
        %v3486 = vsub.f32 %v3357, %v3485
        %v3487 = vand.u32 %v3486, 4294901760
        %v3488 = vsub.f32 %v3486, %v3487
        %v3489 = vand.u32 %v3488, 4294901760
        %3490 = vmatpush1.msra.mxu0 %v3489
        %3491 = vmatprep.subr.mxu0 0.0
        %v3492 = vand.u32 %v3358, 4294901760
        %v3493 = vsub.f32 %v3358, %v3492
        %v3494 = vand.u32 %v3493, 4294901760
        %v3495 = vsub.f32 %v3493, %v3494
        %v3496 = vand.u32 %v3495, 4294901760
        %3497 = vmatpush1.msra.mxu0 %v3496
        %3498 = vmatprep.subr.mxu0 0.0
        %v3499 = vand.u32 %v3359, 4294901760
        %v3500 = vsub.f32 %v3359, %v3499
        %v3501 = vand.u32 %v3500, 4294901760
        %v3502 = vsub.f32 %v3500, %v3501
        %v3503 = vand.u32 %v3502, 4294901760
        %3504 = vmatpush1.msra.mxu0 %v3503
        %3505 = vmatprep.subr.mxu0 0.0
        %v3506 = vand.u32 %v3360, 4294901760
        %v3507 = vsub.f32 %v3360, %v3506
        %v3508 = vand.u32 %v3507, 4294901760
        %v3509 = vsub.f32 %v3507, %v3508
        %v3510 = vand.u32 %v3509, 4294901760
        %3511 = vmatpush1.msra.mxu0 %v3510
        %3512 = vmatprep.subr.mxu0 0.0
        %v3513 = vand.u32 %v3361, 4294901760
        %v3514 = vsub.f32 %v3361, %v3513
        %v3515 = vand.u32 %v3514, 4294901760
        %v3516 = vsub.f32 %v3514, %v3515
        %v3517 = vand.u32 %v3516, 4294901760
        %3518 = vmatpush1.msra.mxu0 %v3517
        %3519 = vmatprep.subr.mxu0 0.0
        %v3520 = vand.u32 %v3362, 4294901760
        %v3521 = vsub.f32 %v3362, %v3520
        %v3522 = vand.u32 %v3521, 4294901760
        %v3523 = vsub.f32 %v3521, %v3522
        %v3524 = vand.u32 %v3523, 4294901760
        %3525 = vmatpush1.msra.mxu0 %v3524
        %3526 = vmatprep.subr.mxu0 0.0
        %v3527 = vand.u32 %v3363, 4294901760
        %v3528 = vsub.f32 %v3363, %v3527
        %v3529 = vand.u32 %v3528, 4294901760
        %v3530 = vsub.f32 %v3528, %v3529
        %v3531 = vand.u32 %v3530, 4294901760
        %3532 = vmatpush1.msra.mxu0 %v3531
        %3533 = vmatprep.subr.mxu0 0.0
        %3534 = vmatpush1.msra.mxu0 0.0
        %3535 = vmatprep.subr.mxu0 0.0
        %3536 = vmatpush1.msra.mxu0 0.0
        %3537 = vmatprep.subr.mxu0 0.0
        %3538 = vmatpush1.msra.mxu0 0.0
        %3539 = vmatprep.subr.mxu0 0.0
        %3540 = vmatpush1.msra.mxu0 0.0
        %3541 = vmatprep.subr.mxu0 0.0
        %3542 = vmatpush1.msra.mxu0 0.0
        %3543 = vmatprep.subr.mxu0 0.0
        %3544 = vmatpush1.msra.mxu0 0.0
        %3545 = vmatprep.subr.mxu0 0.0
        %3546 = vmatpush1.msra.mxu0 0.0
        %3547 = vmatprep.subr.mxu0 0.0
        %3548 = vmatpush1.msra.mxu0 0.0
        %3549 = vmatprep.subr.mxu0 0.0
        %3550 = vmatpush1.msra.mxu0 0.0
        %3551 = vmatprep.subr.mxu0 0.0
        %3552 = vmatpush1.msra.mxu0 0.0
        %3553 = vmatprep.subr.mxu0 0.0
        %3554 = vmatpush1.msra.mxu0 0.0
        %3555 = vmatprep.subr.mxu0 0.0
        %3556 = vmatpush1.msra.mxu0 0.0
        %3557 = vmatprep.subr.mxu0 0.0
        %3558 = vmatpush1.msra.mxu0 0.0
        %3559 = vmatprep.subr.mxu0 0.0
        %3560 = vmatpush1.msra.mxu0 0.0
        %3561 = vmatprep.subr.mxu0 0.0
        %3562 = vmatpush1.msra.mxu0 0.0
        %3563 = vmatprep.subr.mxu0 0.0
        %3564 = vmatpush1.msra.mxu0 0.0
        %3565 = vmatprep.subr.mxu0 0.0
        %3566 = vmatpush1.msra.mxu0 0.0
        %3567 = vmatprep.subr.mxu0 0.0
        %3568 = vmatpush1.msra.mxu0 0.0
        %3569 = vmatprep.subr.mxu0 0.0
        %3570 = vmatpush1.msra.mxu0 0.0
        %3571 = vmatprep.subr.mxu0 0.0
        %3572 = vmatpush1.msra.mxu0 0.0
        %3573 = vmatprep.subr.mxu0 0.0
        %3574 = vmatpush1.msra.mxu0 0.0
        %3575 = vmatprep.subr.mxu0 0.0
        %3576 = vmatpush1.msra.mxu0 0.0
        %3577 = vmatprep.subr.mxu0 0.0
        %3578 = vmatpush1.msra.mxu0 0.0
        %3579 = vmatprep.subr.mxu0 0.0
        %3580 = vmatpush1.msra.mxu0 0.0
        %3581 = vmatprep.mubr.f32.mxu0 0.0
        %v3582 = vand.u32 %v451, 4294901760
        %3583 = vmatmul.mubr.f32.gmra.mrb[0].mxu0 %v3582
        %v3584 = vpop.f32.mrb[0].mxu0
        %v3585 = vadd.f32 %v3444, %v3584
        %v3586 = vpop.f32.mrb[0].mxu0
        %3587 = vmatprep.mubr.f32.mxu0 0.0
        %v3588 = vand.u32 %v454, 4294901760
        %3589 = vmatmul.mubr.f32.gmra.mrb[0].mxu0 %v3588
        %v3590 = vpop.f32.mrb[0].mxu0
        %v3591 = vadd.f32 %v3454, %v3590
        %v3592 = vpop.f32.mrb[0].mxu0
        %3593 = vmatprep.mubr.f32.mxu0 0.0
        %v3594 = vand.u32 %v457, 4294901760
        %3595 = vmatmul.mubr.f32.gmra.mrb[0].mxu0 %v3594
        %v3596 = vpop.f32.mrb[0].mxu0
        %v3597 = vadd.f32 %v3464, %v3596
        %v3598 = vpop.f32.mrb[0].mxu0
        %3599 = vmatprep.mubr.f32.mxu0 0.0
        %v3600 = vand.u32 %v460, 4294901760
        %3601 = vmatmul.mubr.f32.gmra.mrb[0].mxu0 %v3600
        %v3602 = vpop.f32.mrb[0].mxu0
        %v3603 = vadd.f32 %v3474, %v3602
        %v3604 = vpop.f32.mrb[0].mxu0
        %3605 = vdwg.mxu0
        %3606 = vmatprep.subr.mxu0 0.0
        %v3607 = vand.u32 %v3356, 4294901760
        %v3608 = vsub.f32 %v3356, %v3607
        %3609 = vmatpush1.msra.mxu0 %v3608
        %3610 = vmatprep.subr.mxu0 0.0
        %v3611 = vand.u32 %v3357, 4294901760
        %v3612 = vsub.f32 %v3357, %v3611
        %3613 = vmatpush1.msra.mxu0 %v3612
        %3614 = vmatprep.subr.mxu0 0.0
        %v3615 = vand.u32 %v3358, 4294901760
        %v3616 = vsub.f32 %v3358, %v3615
        %3617 = vmatpush1.msra.mxu0 %v3616
        %3618 = vmatprep.subr.mxu0 0.0
        %v3619 = vand.u32 %v3359, 4294901760
        %v3620 = vsub.f32 %v3359, %v3619
        %3621 = vmatpush1.msra.mxu0 %v3620
        %3622 = vmatprep.subr.mxu0 0.0
        %v3623 = vand.u32 %v3360, 4294901760
        %v3624 = vsub.f32 %v3360, %v3623
        %3625 = vmatpush1.msra.mxu0 %v3624
        %3626 = vmatprep.subr.mxu0 0.0
        %v3627 = vand.u32 %v3361, 4294901760
        %v3628 = vsub.f32 %v3361, %v3627
        %3629 = vmatpush1.msra.mxu0 %v3628
        %3630 = vmatprep.subr.mxu0 0.0
        %v3631 = vand.u32 %v3362, 4294901760
        %v3632 = vsub.f32 %v3362, %v3631
        %3633 = vmatpush1.msra.mxu0 %v3632
        %3634 = vmatprep.subr.mxu0 0.0
        %v3635 = vand.u32 %v3363, 4294901760
        %v3636 = vsub.f32 %v3363, %v3635
        %3637 = vmatpush1.msra.mxu0 %v3636
        %3638 = vmatprep.subr.mxu0 0.0
        %3639 = vmatpush1.msra.mxu0 0.0
        %3640 = vmatprep.subr.mxu0 0.0
        %3641 = vmatpush1.msra.mxu0 0.0
        %3642 = vmatprep.subr.mxu0 0.0
        %3643 = vmatpush1.msra.mxu0 0.0
        %3644 = vmatprep.subr.mxu0 0.0
        %3645 = vmatpush1.msra.mxu0 0.0
        %3646 = vmatprep.subr.mxu0 0.0
        %3647 = vmatpush1.msra.mxu0 0.0
        %3648 = vmatprep.subr.mxu0 0.0
        %3649 = vmatpush1.msra.mxu0 0.0
        %3650 = vmatprep.subr.mxu0 0.0
        %3651 = vmatpush1.msra.mxu0 0.0
        %3652 = vmatprep.subr.mxu0 0.0
        %3653 = vmatpush1.msra.mxu0 0.0
        %3654 = vmatprep.subr.mxu0 0.0
        %3655 = vmatpush1.msra.mxu0 0.0
        %3656 = vmatprep.subr.mxu0 0.0
        %3657 = vmatpush1.msra.mxu0 0.0
        %3658 = vmatprep.subr.mxu0 0.0
        %3659 = vmatpush1.msra.mxu0 0.0
        %3660 = vmatprep.subr.mxu0 0.0
        %3661 = vmatpush1.msra.mxu0 0.0
        %3662 = vmatprep.subr.mxu0 0.0
        %3663 = vmatpush1.msra.mxu0 0.0
        %3664 = vmatprep.subr.mxu0 0.0
        %3665 = vmatpush1.msra.mxu0 0.0
        %3666 = vmatprep.subr.mxu0 0.0
        %3667 = vmatpush1.msra.mxu0 0.0
        %3668 = vmatprep.subr.mxu0 0.0
        %3669 = vmatpush1.msra.mxu0 0.0
        %3670 = vmatprep.subr.mxu0 0.0
        %3671 = vmatpush1.msra.mxu0 0.0
        %3672 = vmatprep.subr.mxu0 0.0
        %3673 = vmatpush1.msra.mxu0 0.0
        %3674 = vmatprep.subr.mxu0 0.0
        %3675 = vmatpush1.msra.mxu0 0.0
        %3676 = vmatprep.subr.mxu0 0.0
        %3677 = vmatpush1.msra.mxu0 0.0
        %3678 = vmatprep.subr.mxu0 0.0
        %3679 = vmatpush1.msra.mxu0 0.0
        %3680 = vmatprep.subr.mxu0 0.0
        %3681 = vmatpush1.msra.mxu0 0.0
        %3682 = vmatprep.subr.mxu0 0.0
        %3683 = vmatpush1.msra.mxu0 0.0
        %3684 = vmatprep.subr.mxu0 0.0
        %3685 = vmatpush1.msra.mxu0 0.0
        %3686 = vmatprep.mubr.f32.mxu0 0.0
        %v3687 = vand.u32 %v451, 4294901760
        %v3688 = vsub.f32 %v451, %v3687
        %3689 = vmatmul.mubr.f32.gmra.mrb[0].mxu0 %v3688
        %v3690 = vpop.f32.mrb[0].mxu0
        %v3691 = vadd.f32 %v3585, %v3690
        %v3692 = vpop.f32.mrb[0].mxu0
        %3693 = vmatprep.mubr.f32.mxu0 0.0
        %v3694 = vand.u32 %v454, 4294901760
        %v3695 = vsub.f32 %v454, %v3694
        %3696 = vmatmul.mubr.f32.gmra.mrb[0].mxu0 %v3695
        %v3697 = vpop.f32.mrb[0].mxu0
        %v3698 = vadd.f32 %v3591, %v3697
        %v3699 = vpop.f32.mrb[0].mxu0
        %3700 = vmatprep.mubr.f32.mxu0 0.0
        %v3701 = vand.u32 %v457, 4294901760
        %v3702 = vsub.f32 %v457, %v3701
        %3703 = vmatmul.mubr.f32.gmra.mrb[0].mxu0 %v3702
        %v3704 = vpop.f32.mrb[0].mxu0
        %v3705 = vadd.f32 %v3597, %v3704
        %v3706 = vpop.f32.mrb[0].mxu0
        %3707 = vmatprep.mubr.f32.mxu0 0.0
        %v3708 = vand.u32 %v460, 4294901760
        %v3709 = vsub.f32 %v460, %v3708
        %3710 = vmatmul.mubr.f32.gmra.mrb[0].mxu0 %v3709
        %v3711 = vpop.f32.mrb[0].mxu0
        %v3712 = vadd.f32 %v3603, %v3711
        %v3713 = vpop.f32.mrb[0].mxu0
        %3714 = vdwg.mxu0
        %3715 = vmatprep.subr.mxu0 0.0
        %v3716 = vand.u32 %v3356, 4294901760
        %3717 = vmatpush1.msra.mxu0 %v3716
        %3718 = vmatprep.subr.mxu0 0.0
        %v3719 = vand.u32 %v3357, 4294901760
        %3720 = vmatpush1.msra.mxu0 %v3719
        %3721 = vmatprep.subr.mxu0 0.0
        %v3722 = vand.u32 %v3358, 4294901760
        %3723 = vmatpush1.msra.mxu0 %v3722
        %3724 = vmatprep.subr.mxu0 0.0
        %v3725 = vand.u32 %v3359, 4294901760
        %3726 = vmatpush1.msra.mxu0 %v3725
        %3727 = vmatprep.subr.mxu0 0.0
        %v3728 = vand.u32 %v3360, 4294901760
        %3729 = vmatpush1.msra.mxu0 %v3728
        %3730 = vmatprep.subr.mxu0 0.0
        %v3731 = vand.u32 %v3361, 4294901760
        %3732 = vmatpush1.msra.mxu0 %v3731
        %3733 = vmatprep.subr.mxu0 0.0
        %v3734 = vand.u32 %v3362, 4294901760
        %3735 = vmatpush1.msra.mxu0 %v3734
        %3736 = vmatprep.subr.mxu0 0.0
        %v3737 = vand.u32 %v3363, 4294901760
        %3738 = vmatpush1.msra.mxu0 %v3737
        %3739 = vmatprep.subr.mxu0 0.0
        %3740 = vmatpush1.msra.mxu0 0.0
        %3741 = vmatprep.subr.mxu0 0.0
        %3742 = vmatpush1.msra.mxu0 0.0
        %3743 = vmatprep.subr.mxu0 0.0
        %3744 = vmatpush1.msra.mxu0 0.0
        %3745 = vmatprep.subr.mxu0 0.0
        %3746 = vmatpush1.msra.mxu0 0.0
        %3747 = vmatprep.subr.mxu0 0.0
        %3748 = vmatpush1.msra.mxu0 0.0
        %3749 = vmatprep.subr.mxu0 0.0
        %3750 = vmatpush1.msra.mxu0 0.0
        %3751 = vmatprep.subr.mxu0 0.0
        %3752 = vmatpush1.msra.mxu0 0.0
        %3753 = vmatprep.subr.mxu0 0.0
        %3754 = vmatpush1.msra.mxu0 0.0
        %3755 = vmatprep.subr.mxu0 0.0
        %3756 = vmatpush1.msra.mxu0 0.0
        %3757 = vmatprep.subr.mxu0 0.0
        %3758 = vmatpush1.msra.mxu0 0.0
        %3759 = vmatprep.subr.mxu0 0.0
        %3760 = vmatpush1.msra.mxu0 0.0
        %3761 = vmatprep.subr.mxu0 0.0
        %3762 = vmatpush1.msra.mxu0 0.0
        %3763 = vmatprep.subr.mxu0 0.0
        %3764 = vmatpush1.msra.mxu0 0.0
        %3765 = vmatprep.subr.mxu0 0.0
        %3766 = vmatpush1.msra.mxu0 0.0
        %3767 = vmatprep.subr.mxu0 0.0
        %3768 = vmatpush1.msra.mxu0 0.0
        %3769 = vmatprep.subr.mxu0 0.0
        %3770 = vmatpush1.msra.mxu0 0.0
        %3771 = vmatprep.subr.mxu0 0.0
        %3772 = vmatpush1.msra.mxu0 0.0
        %3773 = vmatprep.subr.mxu0 0.0
        %3774 = vmatpush1.msra.mxu0 0.0
        %3775 = vmatprep.subr.mxu0 0.0
        %3776 = vmatpush1.msra.mxu0 0.0
        %3777 = vmatprep.subr.mxu0 0.0
        %3778 = vmatpush1.msra.mxu0 0.0
        %3779 = vmatprep.subr.mxu0 0.0
        %3780 = vmatpush1.msra.mxu0 0.0
        %3781 = vmatprep.subr.mxu0 0.0
        %3782 = vmatpush1.msra.mxu0 0.0
        %3783 = vmatprep.subr.mxu0 0.0
        %3784 = vmatpush1.msra.mxu0 0.0
        %3785 = vmatprep.subr.mxu0 0.0
        %3786 = vmatpush1.msra.mxu0 0.0
        %3787 = vmatprep.mubr.f32.mxu0 0.0
        %v3788 = vand.u32 %v451, 4294901760
        %v3789 = vsub.f32 %v451, %v3788
        %v3790 = vand.u32 %v3789, 4294901760
        %3791 = vmatmul.mubr.f32.gmra.mrb[0].mxu0 %v3790
        %v3792 = vpop.f32.mrb[0].mxu0
        %v3793 = vadd.f32 %v3691, %v3792
        %v3794 = vpop.f32.mrb[0].mxu0
        %3795 = vmatprep.mubr.f32.mxu0 0.0
        %v3796 = vand.u32 %v454, 4294901760
        %v3797 = vsub.f32 %v454, %v3796
        %v3798 = vand.u32 %v3797, 4294901760
        %3799 = vmatmul.mubr.f32.gmra.mrb[0].mxu0 %v3798
        %v3800 = vpop.f32.mrb[0].mxu0
        %v3801 = vadd.f32 %v3698, %v3800
        %v3802 = vpop.f32.mrb[0].mxu0
        %3803 = vmatprep.mubr.f32.mxu0 0.0
        %v3804 = vand.u32 %v457, 4294901760
        %v3805 = vsub.f32 %v457, %v3804
        %v3806 = vand.u32 %v3805, 4294901760
        %3807 = vmatmul.mubr.f32.gmra.mrb[0].mxu0 %v3806
        %v3808 = vpop.f32.mrb[0].mxu0
        %v3809 = vadd.f32 %v3705, %v3808
        %v3810 = vpop.f32.mrb[0].mxu0
        %3811 = vmatprep.mubr.f32.mxu0 0.0
        %v3812 = vand.u32 %v460, 4294901760
        %v3813 = vsub.f32 %v460, %v3812
        %v3814 = vand.u32 %v3813, 4294901760
        %3815 = vmatmul.mubr.f32.gmra.mrb[0].mxu0 %v3814
        %v3816 = vpop.f32.mrb[0].mxu0
        %v3817 = vadd.f32 %v3712, %v3816
        %v3818 = vpop.f32.mrb[0].mxu0
        %3819 = vdwg.mxu0
        %3820 = vmatprep.subr.mxu0 0.0
        %v3821 = vand.u32 %v3356, 4294901760
        %v3822 = vsub.f32 %v3356, %v3821
        %v3823 = vand.u32 %v3822, 4294901760
        %3824 = vmatpush1.msra.mxu0 %v3823
        %3825 = vmatprep.subr.mxu0 0.0
        %v3826 = vand.u32 %v3357, 4294901760
        %v3827 = vsub.f32 %v3357, %v3826
        %v3828 = vand.u32 %v3827, 4294901760
        %3829 = vmatpush1.msra.mxu0 %v3828
        %3830 = vmatprep.subr.mxu0 0.0
        %v3831 = vand.u32 %v3358, 4294901760
        %v3832 = vsub.f32 %v3358, %v3831
        %v3833 = vand.u32 %v3832, 4294901760
        %3834 = vmatpush1.msra.mxu0 %v3833
        %3835 = vmatprep.subr.mxu0 0.0
        %v3836 = vand.u32 %v3359, 4294901760
        %v3837 = vsub.f32 %v3359, %v3836
        %v3838 = vand.u32 %v3837, 4294901760
        %3839 = vmatpush1.msra.mxu0 %v3838
        %3840 = vmatprep.subr.mxu0 0.0
        %v3841 = vand.u32 %v3360, 4294901760
        %v3842 = vsub.f32 %v3360, %v3841
        %v3843 = vand.u32 %v3842, 4294901760
        %3844 = vmatpush1.msra.mxu0 %v3843
        %3845 = vmatprep.subr.mxu0 0.0
        %v3846 = vand.u32 %v3361, 4294901760
        %v3847 = vsub.f32 %v3361, %v3846
        %v3848 = vand.u32 %v3847, 4294901760
        %3849 = vmatpush1.msra.mxu0 %v3848
        %3850 = vmatprep.subr.mxu0 0.0
        %v3851 = vand.u32 %v3362, 4294901760
        %v3852 = vsub.f32 %v3362, %v3851
        %v3853 = vand.u32 %v3852, 4294901760
        %3854 = vmatpush1.msra.mxu0 %v3853
        %3855 = vmatprep.subr.mxu0 0.0
        %v3856 = vand.u32 %v3363, 4294901760
        %v3857 = vsub.f32 %v3363, %v3856
        %v3858 = vand.u32 %v3857, 4294901760
        %3859 = vmatpush1.msra.mxu0 %v3858
        %3860 = vmatprep.subr.mxu0 0.0
        %3861 = vmatpush1.msra.mxu0 0.0
        %3862 = vmatprep.subr.mxu0 0.0
        %3863 = vmatpush1.msra.mxu0 0.0
        %3864 = vmatprep.subr.mxu0 0.0
        %3865 = vmatpush1.msra.mxu0 0.0
        %3866 = vmatprep.subr.mxu0 0.0
        %3867 = vmatpush1.msra.mxu0 0.0
        %3868 = vmatprep.subr.mxu0 0.0
        %3869 = vmatpush1.msra.mxu0 0.0
        %3870 = vmatprep.subr.mxu0 0.0
        %3871 = vmatpush1.msra.mxu0 0.0
        %3872 = vmatprep.subr.mxu0 0.0
        %3873 = vmatpush1.msra.mxu0 0.0
        %3874 = vmatprep.subr.mxu0 0.0
        %3875 = vmatpush1.msra.mxu0 0.0
        %3876 = vmatprep.subr.mxu0 0.0
        %3877 = vmatpush1.msra.mxu0 0.0
        %3878 = vmatprep.subr.mxu0 0.0
        %3879 = vmatpush1.msra.mxu0 0.0
        %3880 = vmatprep.subr.mxu0 0.0
        %3881 = vmatpush1.msra.mxu0 0.0
        %3882 = vmatprep.subr.mxu0 0.0
        %3883 = vmatpush1.msra.mxu0 0.0
        %3884 = vmatprep.subr.mxu0 0.0
        %3885 = vmatpush1.msra.mxu0 0.0
        %3886 = vmatprep.subr.mxu0 0.0
        %3887 = vmatpush1.msra.mxu0 0.0
        %3888 = vmatprep.subr.mxu0 0.0
        %3889 = vmatpush1.msra.mxu0 0.0
        %3890 = vmatprep.subr.mxu0 0.0
        %3891 = vmatpush1.msra.mxu0 0.0
        %3892 = vmatprep.subr.mxu0 0.0
        %3893 = vmatpush1.msra.mxu0 0.0
        %3894 = vmatprep.subr.mxu0 0.0
        %3895 = vmatpush1.msra.mxu0 0.0
        %3896 = vmatprep.subr.mxu0 0.0
        %3897 = vmatpush1.msra.mxu0 0.0
        %3898 = vmatprep.subr.mxu0 0.0
        %3899 = vmatpush1.msra.mxu0 0.0
        %3900 = vmatprep.subr.mxu0 0.0
        %3901 = vmatpush1.msra.mxu0 0.0
        %3902 = vmatprep.subr.mxu0 0.0
        %3903 = vmatpush1.msra.mxu0 0.0
        %3904 = vmatprep.subr.mxu0 0.0
        %3905 = vmatpush1.msra.mxu0 0.0
        %3906 = vmatprep.subr.mxu0 0.0
        %3907 = vmatpush1.msra.mxu0 0.0
        %3908 = vmatprep.mubr.f32.mxu0 0.0
        %v3909 = vand.u32 %v451, 4294901760
        %3910 = vmatmul.mubr.f32.gmra.mrb[0].mxu0 %v3909
        %v3911 = vpop.f32.mrb[0].mxu0
        %v3912 = vadd.f32 %v3793, %v3911
        %v3913 = vpop.f32.mrb[0].mxu0
        %3914 = vmatprep.mubr.f32.mxu0 0.0
        %v3915 = vand.u32 %v454, 4294901760
        %3916 = vmatmul.mubr.f32.gmra.mrb[0].mxu0 %v3915
        %v3917 = vpop.f32.mrb[0].mxu0
        %v3918 = vadd.f32 %v3801, %v3917
        %v3919 = vpop.f32.mrb[0].mxu0
        %3920 = vmatprep.mubr.f32.mxu0 0.0
        %v3921 = vand.u32 %v457, 4294901760
        %3922 = vmatmul.mubr.f32.gmra.mrb[0].mxu0 %v3921
        %v3923 = vpop.f32.mrb[0].mxu0
        %v3924 = vadd.f32 %v3809, %v3923
        %v3925 = vpop.f32.mrb[0].mxu0
        %3926 = vmatprep.mubr.f32.mxu0 0.0
        %v3927 = vand.u32 %v460, 4294901760
        %3928 = vmatmul.mubr.f32.gmra.mrb[0].mxu0 %v3927
        %v3929 = vpop.f32.mrb[0].mxu0
        %v3930 = vadd.f32 %v3817, %v3929
        %v3931 = vpop.f32.mrb[0].mxu0
        %3932 = vdwg.mxu0
        %3933 = vmatprep.subr.mxu0 0.0
        %v3934 = vand.u32 %v3356, 4294901760
        %3935 = vmatpush1.msra.mxu0 %v3934
        %3936 = vmatprep.subr.mxu0 0.0
        %v3937 = vand.u32 %v3357, 4294901760
        %3938 = vmatpush1.msra.mxu0 %v3937
        %3939 = vmatprep.subr.mxu0 0.0
        %v3940 = vand.u32 %v3358, 4294901760
        %3941 = vmatpush1.msra.mxu0 %v3940
        %3942 = vmatprep.subr.mxu0 0.0
        %v3943 = vand.u32 %v3359, 4294901760
        %3944 = vmatpush1.msra.mxu0 %v3943
        %3945 = vmatprep.subr.mxu0 0.0
        %v3946 = vand.u32 %v3360, 4294901760
        %3947 = vmatpush1.msra.mxu0 %v3946
        %3948 = vmatprep.subr.mxu0 0.0
        %v3949 = vand.u32 %v3361, 4294901760
        %3950 = vmatpush1.msra.mxu0 %v3949
        %3951 = vmatprep.subr.mxu0 0.0
        %v3952 = vand.u32 %v3362, 4294901760
        %3953 = vmatpush1.msra.mxu0 %v3952
        %3954 = vmatprep.subr.mxu0 0.0
        %v3955 = vand.u32 %v3363, 4294901760
        %3956 = vmatpush1.msra.mxu0 %v3955
        %3957 = vmatprep.subr.mxu0 0.0
        %3958 = vmatpush1.msra.mxu0 0.0
        %3959 = vmatprep.subr.mxu0 0.0
        %3960 = vmatpush1.msra.mxu0 0.0
        %3961 = vmatprep.subr.mxu0 0.0
        %3962 = vmatpush1.msra.mxu0 0.0
        %3963 = vmatprep.subr.mxu0 0.0
        %3964 = vmatpush1.msra.mxu0 0.0
        %3965 = vmatprep.subr.mxu0 0.0
        %3966 = vmatpush1.msra.mxu0 0.0
        %3967 = vmatprep.subr.mxu0 0.0
        %3968 = vmatpush1.msra.mxu0 0.0
        %3969 = vmatprep.subr.mxu0 0.0
        %3970 = vmatpush1.msra.mxu0 0.0
        %3971 = vmatprep.subr.mxu0 0.0
        %3972 = vmatpush1.msra.mxu0 0.0
        %3973 = vmatprep.subr.mxu0 0.0
        %3974 = vmatpush1.msra.mxu0 0.0
        %3975 = vmatprep.subr.mxu0 0.0
        %3976 = vmatpush1.msra.mxu0 0.0
        %3977 = vmatprep.subr.mxu0 0.0
        %3978 = vmatpush1.msra.mxu0 0.0
        %3979 = vmatprep.subr.mxu0 0.0
        %3980 = vmatpush1.msra.mxu0 0.0
        %3981 = vmatprep.subr.mxu0 0.0
        %3982 = vmatpush1.msra.mxu0 0.0
        %3983 = vmatprep.subr.mxu0 0.0
        %3984 = vmatpush1.msra.mxu0 0.0
        %3985 = vmatprep.subr.mxu0 0.0
        %3986 = vmatpush1.msra.mxu0 0.0
        %3987 = vmatprep.subr.mxu0 0.0
        %3988 = vmatpush1.msra.mxu0 0.0
        %3989 = vmatprep.subr.mxu0 0.0
        %3990 = vmatpush1.msra.mxu0 0.0
        %3991 = vmatprep.subr.mxu0 0.0
        %3992 = vmatpush1.msra.mxu0 0.0
        %3993 = vmatprep.subr.mxu0 0.0
        %3994 = vmatpush1.msra.mxu0 0.0
        %3995 = vmatprep.subr.mxu0 0.0
        %3996 = vmatpush1.msra.mxu0 0.0
        %3997 = vmatprep.subr.mxu0 0.0
        %3998 = vmatpush1.msra.mxu0 0.0
        %3999 = vmatprep.subr.mxu0 0.0
        %4000 = vmatpush1.msra.mxu0 0.0
        %4001 = vmatprep.subr.mxu0 0.0
        %4002 = vmatpush1.msra.mxu0 0.0
        %4003 = vmatprep.subr.mxu0 0.0
        %4004 = vmatpush1.msra.mxu0 0.0
        %4005 = vmatprep.mubr.f32.mxu0 0.0
        %v4006 = vand.u32 %v451, 4294901760
        %4007 = vmatmul.mubr.f32.gmra.mrb[0].mxu0 %v4006
        %v4008 = vpop.f32.mrb[0].mxu0
        %v4009 = vadd.f32 %v3912, %v4008
        %v4010 = vpop.f32.mrb[0].mxu0
        %4011 = vmatprep.mubr.f32.mxu0 0.0
        %v4012 = vand.u32 %v454, 4294901760
        %4013 = vmatmul.mubr.f32.gmra.mrb[0].mxu0 %v4012
        %v4014 = vpop.f32.mrb[0].mxu0
        %v4015 = vadd.f32 %v3918, %v4014
        %v4016 = vpop.f32.mrb[0].mxu0
        %4017 = vmatprep.mubr.f32.mxu0 0.0
        %v4018 = vand.u32 %v457, 4294901760
        %4019 = vmatmul.mubr.f32.gmra.mrb[0].mxu0 %v4018
        %v4020 = vpop.f32.mrb[0].mxu0
        %v4021 = vadd.f32 %v3924, %v4020
        %v4022 = vpop.f32.mrb[0].mxu0
        %4023 = vmatprep.mubr.f32.mxu0 0.0
        %v4024 = vand.u32 %v460, 4294901760
        %4025 = vmatmul.mubr.f32.gmra.mrb[0].mxu0 %v4024
        %v4026 = vpop.f32.mrb[0].mxu0
        %v4027 = vadd.f32 %v3930, %v4026
        %v4028 = vpop.f32.mrb[0].mxu0
        %4029 = vdwg.mxu0
        %s4030 = scalar_lea.vmem %s353, 32 [#allocation5]
        %v4031 = vld [vmem:[%s4030] sm:$0xff]
        %v4032 = vld [vmem:[%s4030 + $0x8] sm:$0xff]
        %v4033 = vld [vmem:[%s4030 + $0x10] sm:$0xff]
        %v4034 = vld [vmem:[%s4030 + $0x18] sm:$0xff]
        %4035 = vmatprep.subr.mxu0 0.0
        %v4036 = vand.u32 %v413, 4294901760
        %4037 = vmatpush1.msra.mxu0 %v4036
        %4038 = vmatprep.subr.mxu0 0.0
        %v4039 = vand.u32 %v414, 4294901760
        %4040 = vmatpush1.msra.mxu0 %v4039
        %4041 = vmatprep.subr.mxu0 0.0
        %v4042 = vand.u32 %v415, 4294901760
        %4043 = vmatpush1.msra.mxu0 %v4042
        %4044 = vmatprep.subr.mxu0 0.0
        %v4045 = vand.u32 %v416, 4294901760
        %4046 = vmatpush1.msra.mxu0 %v4045
        %4047 = vmatprep.subr.mxu0 0.0
        %v4048 = vand.u32 %v417, 4294901760
        %4049 = vmatpush1.msra.mxu0 %v4048
        %4050 = vmatprep.subr.mxu0 0.0
        %v4051 = vand.u32 %v418, 4294901760
        %4052 = vmatpush1.msra.mxu0 %v4051
        %4053 = vmatprep.subr.mxu0 0.0
        %v4054 = vand.u32 %v419, 4294901760
        %4055 = vmatpush1.msra.mxu0 %v4054
        %4056 = vmatprep.subr.mxu0 0.0
        %v4057 = vand.u32 %v420, 4294901760
        %4058 = vmatpush1.msra.mxu0 %v4057
        %4059 = vmatprep.subr.mxu0 0.0
        %v4060 = vand.u32 %v421, 4294901760
        %4061 = vmatpush1.msra.mxu0 %v4060
        %4062 = vmatprep.subr.mxu0 0.0
        %v4063 = vand.u32 %v422, 4294901760
        %4064 = vmatpush1.msra.mxu0 %v4063
        %4065 = vmatprep.subr.mxu0 0.0
        %v4066 = vand.u32 %v423, 4294901760
        %4067 = vmatpush1.msra.mxu0 %v4066
        %4068 = vmatprep.subr.mxu0 0.0
        %v4069 = vand.u32 %v424, 4294901760
        %4070 = vmatpush1.msra.mxu0 %v4069
        %4071 = vmatprep.subr.mxu0 0.0
        %v4072 = vand.u32 %v425, 4294901760
        %4073 = vmatpush1.msra.mxu0 %v4072
        %4074 = vmatprep.subr.mxu0 0.0
        %v4075 = vand.u32 %v426, 4294901760
        %4076 = vmatpush1.msra.mxu0 %v4075
        %4077 = vmatprep.subr.mxu0 0.0
        %v4078 = vand.u32 %v427, 4294901760
        %4079 = vmatpush1.msra.mxu0 %v4078
        %4080 = vmatprep.subr.mxu0 0.0
        %v4081 = vand.u32 %v428, 4294901760
        %4082 = vmatpush1.msra.mxu0 %v4081
        %4083 = vmatprep.subr.mxu0 0.0
        %4084 = vmatpush1.msra.mxu0 0.0
        %4085 = vmatprep.subr.mxu0 0.0
        %4086 = vmatpush1.msra.mxu0 0.0
        %4087 = vmatprep.subr.mxu0 0.0
        %4088 = vmatpush1.msra.mxu0 0.0
        %4089 = vmatprep.subr.mxu0 0.0
        %4090 = vmatpush1.msra.mxu0 0.0
        %4091 = vmatprep.subr.mxu0 0.0
        %4092 = vmatpush1.msra.mxu0 0.0
        %4093 = vmatprep.subr.mxu0 0.0
        %4094 = vmatpush1.msra.mxu0 0.0
        %4095 = vmatprep.subr.mxu0 0.0
        %4096 = vmatpush1.msra.mxu0 0.0
        %4097 = vmatprep.subr.mxu0 0.0
        %4098 = vmatpush1.msra.mxu0 0.0
        %4099 = vmatprep.subr.mxu0 0.0
        %4100 = vmatpush1.msra.mxu0 0.0
        %4101 = vmatprep.subr.mxu0 0.0
        %4102 = vmatpush1.msra.mxu0 0.0
        %4103 = vmatprep.subr.mxu0 0.0
        %4104 = vmatpush1.msra.mxu0 0.0
        %4105 = vmatprep.subr.mxu0 0.0
        %4106 = vmatpush1.msra.mxu0 0.0
        %4107 = vmatprep.subr.mxu0 0.0
        %4108 = vmatpush1.msra.mxu0 0.0
        %4109 = vmatprep.subr.mxu0 0.0
        %4110 = vmatpush1.msra.mxu0 0.0
        %4111 = vmatprep.subr.mxu0 0.0
        %4112 = vmatpush1.msra.mxu0 0.0
        %4113 = vmatprep.subr.mxu0 0.0
        %4114 = vmatpush1.msra.mxu0 0.0
        %4115 = vmatprep.mubr.f32.mxu0 0.0
        %v4116 = vand.u32 %v4009, 4294901760
        %v4117 = vsub.f32 %v4009, %v4116
        %v4118 = vand.u32 %v4117, 4294901760
        %v4119 = vsub.f32 %v4117, %v4118
        %v4120 = vand.u32 %v4119, 4294901760
        %4121 = vmatmul.mubr.f32.gmra.mrb[0].mxu0 %v4120
        %v4122 = vpop.f32.mrb[0].mxu0
        %v4123 = vadd.f32 %v4031, %v4122
        %v4124 = vpop.f32.mrb[0].mxu0
        %4125 = vmatprep.mubr.f32.mxu0 0.0
        %v4126 = vand.u32 %v4015, 4294901760
        %v4127 = vsub.f32 %v4015, %v4126
        %v4128 = vand.u32 %v4127, 4294901760
        %v4129 = vsub.f32 %v4127, %v4128
        %v4130 = vand.u32 %v4129, 4294901760
        %4131 = vmatmul.mubr.f32.gmra.mrb[0].mxu0 %v4130
        %v4132 = vpop.f32.mrb[0].mxu0
        %v4133 = vadd.f32 %v4032, %v4132
        %v4134 = vpop.f32.mrb[0].mxu0
        %4135 = vmatprep.mubr.f32.mxu0 0.0
        %v4136 = vand.u32 %v4021, 4294901760
        %v4137 = vsub.f32 %v4021, %v4136
        %v4138 = vand.u32 %v4137, 4294901760
        %v4139 = vsub.f32 %v4137, %v4138
        %v4140 = vand.u32 %v4139, 4294901760
        %4141 = vmatmul.mubr.f32.gmra.mrb[0].mxu0 %v4140
        %v4142 = vpop.f32.mrb[0].mxu0
        %v4143 = vadd.f32 %v4033, %v4142
        %v4144 = vpop.f32.mrb[0].mxu0
        %4145 = vmatprep.mubr.f32.mxu0 0.0
        %v4146 = vand.u32 %v4027, 4294901760
        %v4147 = vsub.f32 %v4027, %v4146
        %v4148 = vand.u32 %v4147, 4294901760
        %v4149 = vsub.f32 %v4147, %v4148
        %v4150 = vand.u32 %v4149, 4294901760
        %4151 = vmatmul.mubr.f32.gmra.mrb[0].mxu0 %v4150
        %v4152 = vpop.f32.mrb[0].mxu0
        %v4153 = vadd.f32 %v4034, %v4152
        %v4154 = vpop.f32.mrb[0].mxu0
        %4155 = vdwg.mxu0
        %4156 = vmatprep.subr.mxu0 0.0
        %v4157 = vand.u32 %v413, 4294901760
        %v4158 = vsub.f32 %v413, %v4157
        %v4159 = vand.u32 %v4158, 4294901760
        %v4160 = vsub.f32 %v4158, %v4159
        %v4161 = vand.u32 %v4160, 4294901760
        %4162 = vmatpush1.msra.mxu0 %v4161
        %4163 = vmatprep.subr.mxu0 0.0
        %v4164 = vand.u32 %v414, 4294901760
        %v4165 = vsub.f32 %v414, %v4164
        %v4166 = vand.u32 %v4165, 4294901760
        %v4167 = vsub.f32 %v4165, %v4166
        %v4168 = vand.u32 %v4167, 4294901760
        %4169 = vmatpush1.msra.mxu0 %v4168
        %4170 = vmatprep.subr.mxu0 0.0
        %v4171 = vand.u32 %v415, 4294901760
        %v4172 = vsub.f32 %v415, %v4171
        %v4173 = vand.u32 %v4172, 4294901760
        %v4174 = vsub.f32 %v4172, %v4173
        %v4175 = vand.u32 %v4174, 4294901760
        %4176 = vmatpush1.msra.mxu0 %v4175
        %4177 = vmatprep.subr.mxu0 0.0
        %v4178 = vand.u32 %v416, 4294901760
        %v4179 = vsub.f32 %v416, %v4178
        %v4180 = vand.u32 %v4179, 4294901760
        %v4181 = vsub.f32 %v4179, %v4180
        %v4182 = vand.u32 %v4181, 4294901760
        %4183 = vmatpush1.msra.mxu0 %v4182
        %4184 = vmatprep.subr.mxu0 0.0
        %v4185 = vand.u32 %v417, 4294901760
        %v4186 = vsub.f32 %v417, %v4185
        %v4187 = vand.u32 %v4186, 4294901760
        %v4188 = vsub.f32 %v4186, %v4187
        %v4189 = vand.u32 %v4188, 4294901760
        %4190 = vmatpush1.msra.mxu0 %v4189
        %4191 = vmatprep.subr.mxu0 0.0
        %v4192 = vand.u32 %v418, 4294901760
        %v4193 = vsub.f32 %v418, %v4192
        %v4194 = vand.u32 %v4193, 4294901760
        %v4195 = vsub.f32 %v4193, %v4194
        %v4196 = vand.u32 %v4195, 4294901760
        %4197 = vmatpush1.msra.mxu0 %v4196
        %4198 = vmatprep.subr.mxu0 0.0
        %v4199 = vand.u32 %v419, 4294901760
        %v4200 = vsub.f32 %v419, %v4199
        %v4201 = vand.u32 %v4200, 4294901760
        %v4202 = vsub.f32 %v4200, %v4201
        %v4203 = vand.u32 %v4202, 4294901760
        %4204 = vmatpush1.msra.mxu0 %v4203
        %4205 = vmatprep.subr.mxu0 0.0
        %v4206 = vand.u32 %v420, 4294901760
        %v4207 = vsub.f32 %v420, %v4206
        %v4208 = vand.u32 %v4207, 4294901760
        %v4209 = vsub.f32 %v4207, %v4208
        %v4210 = vand.u32 %v4209, 4294901760
        %4211 = vmatpush1.msra.mxu0 %v4210
        %4212 = vmatprep.subr.mxu0 0.0
        %v4213 = vand.u32 %v421, 4294901760
        %v4214 = vsub.f32 %v421, %v4213
        %v4215 = vand.u32 %v4214, 4294901760
        %v4216 = vsub.f32 %v4214, %v4215
        %v4217 = vand.u32 %v4216, 4294901760
        %4218 = vmatpush1.msra.mxu0 %v4217
        %4219 = vmatprep.subr.mxu0 0.0
        %v4220 = vand.u32 %v422, 4294901760
        %v4221 = vsub.f32 %v422, %v4220
        %v4222 = vand.u32 %v4221, 4294901760
        %v4223 = vsub.f32 %v4221, %v4222
        %v4224 = vand.u32 %v4223, 4294901760
        %4225 = vmatpush1.msra.mxu0 %v4224
        %4226 = vmatprep.subr.mxu0 0.0
        %v4227 = vand.u32 %v423, 4294901760
        %v4228 = vsub.f32 %v423, %v4227
        %v4229 = vand.u32 %v4228, 4294901760
        %v4230 = vsub.f32 %v4228, %v4229
        %v4231 = vand.u32 %v4230, 4294901760
        %4232 = vmatpush1.msra.mxu0 %v4231
        %4233 = vmatprep.subr.mxu0 0.0
        %v4234 = vand.u32 %v424, 4294901760
        %v4235 = vsub.f32 %v424, %v4234
        %v4236 = vand.u32 %v4235, 4294901760
        %v4237 = vsub.f32 %v4235, %v4236
        %v4238 = vand.u32 %v4237, 4294901760
        %4239 = vmatpush1.msra.mxu0 %v4238
        %4240 = vmatprep.subr.mxu0 0.0
        %v4241 = vand.u32 %v425, 4294901760
        %v4242 = vsub.f32 %v425, %v4241
        %v4243 = vand.u32 %v4242, 4294901760
        %v4244 = vsub.f32 %v4242, %v4243
        %v4245 = vand.u32 %v4244, 4294901760
        %4246 = vmatpush1.msra.mxu0 %v4245
        %4247 = vmatprep.subr.mxu0 0.0
        %v4248 = vand.u32 %v426, 4294901760
        %v4249 = vsub.f32 %v426, %v4248
        %v4250 = vand.u32 %v4249, 4294901760
        %v4251 = vsub.f32 %v4249, %v4250
        %v4252 = vand.u32 %v4251, 4294901760
        %4253 = vmatpush1.msra.mxu0 %v4252
        %4254 = vmatprep.subr.mxu0 0.0
        %v4255 = vand.u32 %v427, 4294901760
        %v4256 = vsub.f32 %v427, %v4255
        %v4257 = vand.u32 %v4256, 4294901760
        %v4258 = vsub.f32 %v4256, %v4257
        %v4259 = vand.u32 %v4258, 4294901760
        %4260 = vmatpush1.msra.mxu0 %v4259
        %4261 = vmatprep.subr.mxu0 0.0
        %v4262 = vand.u32 %v428, 4294901760
        %v4263 = vsub.f32 %v428, %v4262
        %v4264 = vand.u32 %v4263, 4294901760
        %v4265 = vsub.f32 %v4263, %v4264
        %v4266 = vand.u32 %v4265, 4294901760
        %4267 = vmatpush1.msra.mxu0 %v4266
        %4268 = vmatprep.subr.mxu0 0.0
        %4269 = vmatpush1.msra.mxu0 0.0
        %4270 = vmatprep.subr.mxu0 0.0
        %4271 = vmatpush1.msra.mxu0 0.0
        %4272 = vmatprep.subr.mxu0 0.0
        %4273 = vmatpush1.msra.mxu0 0.0
        %4274 = vmatprep.subr.mxu0 0.0
        %4275 = vmatpush1.msra.mxu0 0.0
        %4276 = vmatprep.subr.mxu0 0.0
        %4277 = vmatpush1.msra.mxu0 0.0
        %4278 = vmatprep.subr.mxu0 0.0
        %4279 = vmatpush1.msra.mxu0 0.0
        %4280 = vmatprep.subr.mxu0 0.0
        %4281 = vmatpush1.msra.mxu0 0.0
        %4282 = vmatprep.subr.mxu0 0.0
        %4283 = vmatpush1.msra.mxu0 0.0
        %4284 = vmatprep.subr.mxu0 0.0
        %4285 = vmatpush1.msra.mxu0 0.0
        %4286 = vmatprep.subr.mxu0 0.0
        %4287 = vmatpush1.msra.mxu0 0.0
        %4288 = vmatprep.subr.mxu0 0.0
        %4289 = vmatpush1.msra.mxu0 0.0
        %4290 = vmatprep.subr.mxu0 0.0
        %4291 = vmatpush1.msra.mxu0 0.0
        %4292 = vmatprep.subr.mxu0 0.0
        %4293 = vmatpush1.msra.mxu0 0.0
        %4294 = vmatprep.subr.mxu0 0.0
        %4295 = vmatpush1.msra.mxu0 0.0
        %4296 = vmatprep.subr.mxu0 0.0
        %4297 = vmatpush1.msra.mxu0 0.0
        %4298 = vmatprep.subr.mxu0 0.0
        %4299 = vmatpush1.msra.mxu0 0.0
        %4300 = vmatprep.mubr.f32.mxu0 0.0
        %v4301 = vand.u32 %v4009, 4294901760
        %4302 = vmatmul.mubr.f32.gmra.mrb[0].mxu0 %v4301
        %v4303 = vpop.f32.mrb[0].mxu0
        %v4304 = vadd.f32 %v4123, %v4303
        %v4305 = vpop.f32.mrb[0].mxu0
        %4306 = vmatprep.mubr.f32.mxu0 0.0
        %v4307 = vand.u32 %v4015, 4294901760
        %4308 = vmatmul.mubr.f32.gmra.mrb[0].mxu0 %v4307
        %v4309 = vpop.f32.mrb[0].mxu0
        %v4310 = vadd.f32 %v4133, %v4309
        %v4311 = vpop.f32.mrb[0].mxu0
        %4312 = vmatprep.mubr.f32.mxu0 0.0
        %v4313 = vand.u32 %v4021, 4294901760
        %4314 = vmatmul.mubr.f32.gmra.mrb[0].mxu0 %v4313
        %v4315 = vpop.f32.mrb[0].mxu0
        %v4316 = vadd.f32 %v4143, %v4315
        %v4317 = vpop.f32.mrb[0].mxu0
        %4318 = vmatprep.mubr.f32.mxu0 0.0
        %v4319 = vand.u32 %v4027, 4294901760
        %4320 = vmatmul.mubr.f32.gmra.mrb[0].mxu0 %v4319
        %v4321 = vpop.f32.mrb[0].mxu0
        %v4322 = vadd.f32 %v4153, %v4321
        %v4323 = vpop.f32.mrb[0].mxu0
        %4324 = vdwg.mxu0
        %4325 = vmatprep.subr.mxu0 0.0
        %v4326 = vand.u32 %v413, 4294901760
        %v4327 = vsub.f32 %v413, %v4326
        %4328 = vmatpush1.msra.mxu0 %v4327
        %4329 = vmatprep.subr.mxu0 0.0
        %v4330 = vand.u32 %v414, 4294901760
        %v4331 = vsub.f32 %v414, %v4330
        %4332 = vmatpush1.msra.mxu0 %v4331
        %4333 = vmatprep.subr.mxu0 0.0
        %v4334 = vand.u32 %v415, 4294901760
        %v4335 = vsub.f32 %v415, %v4334
        %4336 = vmatpush1.msra.mxu0 %v4335
        %4337 = vmatprep.subr.mxu0 0.0
        %v4338 = vand.u32 %v416, 4294901760
        %v4339 = vsub.f32 %v416, %v4338
        %4340 = vmatpush1.msra.mxu0 %v4339
        %4341 = vmatprep.subr.mxu0 0.0
        %v4342 = vand.u32 %v417, 4294901760
        %v4343 = vsub.f32 %v417, %v4342
        %4344 = vmatpush1.msra.mxu0 %v4343
        %4345 = vmatprep.subr.mxu0 0.0
        %v4346 = vand.u32 %v418, 4294901760
        %v4347 = vsub.f32 %v418, %v4346
        %4348 = vmatpush1.msra.mxu0 %v4347
        %4349 = vmatprep.subr.mxu0 0.0
        %v4350 = vand.u32 %v419, 4294901760
        %v4351 = vsub.f32 %v419, %v4350
        %4352 = vmatpush1.msra.mxu0 %v4351
        %4353 = vmatprep.subr.mxu0 0.0
        %v4354 = vand.u32 %v420, 4294901760
        %v4355 = vsub.f32 %v420, %v4354
        %4356 = vmatpush1.msra.mxu0 %v4355
        %4357 = vmatprep.subr.mxu0 0.0
        %v4358 = vand.u32 %v421, 4294901760
        %v4359 = vsub.f32 %v421, %v4358
        %4360 = vmatpush1.msra.mxu0 %v4359
        %4361 = vmatprep.subr.mxu0 0.0
        %v4362 = vand.u32 %v422, 4294901760
        %v4363 = vsub.f32 %v422, %v4362
        %4364 = vmatpush1.msra.mxu0 %v4363
        %4365 = vmatprep.subr.mxu0 0.0
        %v4366 = vand.u32 %v423, 4294901760
        %v4367 = vsub.f32 %v423, %v4366
        %4368 = vmatpush1.msra.mxu0 %v4367
        %4369 = vmatprep.subr.mxu0 0.0
        %v4370 = vand.u32 %v424, 4294901760
        %v4371 = vsub.f32 %v424, %v4370
        %4372 = vmatpush1.msra.mxu0 %v4371
        %4373 = vmatprep.subr.mxu0 0.0
        %v4374 = vand.u32 %v425, 4294901760
        %v4375 = vsub.f32 %v425, %v4374
        %4376 = vmatpush1.msra.mxu0 %v4375
        %4377 = vmatprep.subr.mxu0 0.0
        %v4378 = vand.u32 %v426, 4294901760
        %v4379 = vsub.f32 %v426, %v4378
        %4380 = vmatpush1.msra.mxu0 %v4379
        %4381 = vmatprep.subr.mxu0 0.0
        %v4382 = vand.u32 %v427, 4294901760
        %v4383 = vsub.f32 %v427, %v4382
        %4384 = vmatpush1.msra.mxu0 %v4383
        %4385 = vmatprep.subr.mxu0 0.0
        %v4386 = vand.u32 %v428, 4294901760
        %v4387 = vsub.f32 %v428, %v4386
        %4388 = vmatpush1.msra.mxu0 %v4387
        %4389 = vmatprep.subr.mxu0 0.0
        %4390 = vmatpush1.msra.mxu0 0.0
        %4391 = vmatprep.subr.mxu0 0.0
        %4392 = vmatpush1.msra.mxu0 0.0
        %4393 = vmatprep.subr.mxu0 0.0
        %4394 = vmatpush1.msra.mxu0 0.0
        %4395 = vmatprep.subr.mxu0 0.0
        %4396 = vmatpush1.msra.mxu0 0.0
        %4397 = vmatprep.subr.mxu0 0.0
        %4398 = vmatpush1.msra.mxu0 0.0
        %4399 = vmatprep.subr.mxu0 0.0
        %4400 = vmatpush1.msra.mxu0 0.0
        %4401 = vmatprep.subr.mxu0 0.0
        %4402 = vmatpush1.msra.mxu0 0.0
        %4403 = vmatprep.subr.mxu0 0.0
        %4404 = vmatpush1.msra.mxu0 0.0
        %4405 = vmatprep.subr.mxu0 0.0
        %4406 = vmatpush1.msra.mxu0 0.0
        %4407 = vmatprep.subr.mxu0 0.0
        %4408 = vmatpush1.msra.mxu0 0.0
        %4409 = vmatprep.subr.mxu0 0.0
        %4410 = vmatpush1.msra.mxu0 0.0
        %4411 = vmatprep.subr.mxu0 0.0
        %4412 = vmatpush1.msra.mxu0 0.0
        %4413 = vmatprep.subr.mxu0 0.0
        %4414 = vmatpush1.msra.mxu0 0.0
        %4415 = vmatprep.subr.mxu0 0.0
        %4416 = vmatpush1.msra.mxu0 0.0
        %4417 = vmatprep.subr.mxu0 0.0
        %4418 = vmatpush1.msra.mxu0 0.0
        %4419 = vmatprep.subr.mxu0 0.0
        %4420 = vmatpush1.msra.mxu0 0.0
        %4421 = vmatprep.mubr.f32.mxu0 0.0
        %v4422 = vand.u32 %v4009, 4294901760
        %v4423 = vsub.f32 %v4009, %v4422
        %4424 = vmatmul.mubr.f32.gmra.mrb[0].mxu0 %v4423
        %v4425 = vpop.f32.mrb[0].mxu0
        %v4426 = vadd.f32 %v4304, %v4425
        %v4427 = vpop.f32.mrb[0].mxu0
        %4428 = vmatprep.mubr.f32.mxu0 0.0
        %v4429 = vand.u32 %v4015, 4294901760
        %v4430 = vsub.f32 %v4015, %v4429
        %4431 = vmatmul.mubr.f32.gmra.mrb[0].mxu0 %v4430
        %v4432 = vpop.f32.mrb[0].mxu0
        %v4433 = vadd.f32 %v4310, %v4432
        %v4434 = vpop.f32.mrb[0].mxu0
        %4435 = vmatprep.mubr.f32.mxu0 0.0
        %v4436 = vand.u32 %v4021, 4294901760
        %v4437 = vsub.f32 %v4021, %v4436
        %4438 = vmatmul.mubr.f32.gmra.mrb[0].mxu0 %v4437
        %v4439 = vpop.f32.mrb[0].mxu0
        %v4440 = vadd.f32 %v4316, %v4439
        %v4441 = vpop.f32.mrb[0].mxu0
        %4442 = vmatprep.mubr.f32.mxu0 0.0
        %v4443 = vand.u32 %v4027, 4294901760
        %v4444 = vsub.f32 %v4027, %v4443
        %4445 = vmatmul.mubr.f32.gmra.mrb[0].mxu0 %v4444
        %v4446 = vpop.f32.mrb[0].mxu0
        %v4447 = vadd.f32 %v4322, %v4446
        %v4448 = vpop.f32.mrb[0].mxu0
        %4449 = vdwg.mxu0
        %4450 = vmatprep.subr.mxu0 0.0
        %v4451 = vand.u32 %v413, 4294901760
        %4452 = vmatpush1.msra.mxu0 %v4451
        %4453 = vmatprep.subr.mxu0 0.0
        %v4454 = vand.u32 %v414, 4294901760
        %4455 = vmatpush1.msra.mxu0 %v4454
        %4456 = vmatprep.subr.mxu0 0.0
        %v4457 = vand.u32 %v415, 4294901760
        %4458 = vmatpush1.msra.mxu0 %v4457
        %4459 = vmatprep.subr.mxu0 0.0
        %v4460 = vand.u32 %v416, 4294901760
        %4461 = vmatpush1.msra.mxu0 %v4460
        %4462 = vmatprep.subr.mxu0 0.0
        %v4463 = vand.u32 %v417, 4294901760
        %4464 = vmatpush1.msra.mxu0 %v4463
        %4465 = vmatprep.subr.mxu0 0.0
        %v4466 = vand.u32 %v418, 4294901760
        %4467 = vmatpush1.msra.mxu0 %v4466
        %4468 = vmatprep.subr.mxu0 0.0
        %v4469 = vand.u32 %v419, 4294901760
        %4470 = vmatpush1.msra.mxu0 %v4469
        %4471 = vmatprep.subr.mxu0 0.0
        %v4472 = vand.u32 %v420, 4294901760
        %4473 = vmatpush1.msra.mxu0 %v4472
        %4474 = vmatprep.subr.mxu0 0.0
        %v4475 = vand.u32 %v421, 4294901760
        %4476 = vmatpush1.msra.mxu0 %v4475
        %4477 = vmatprep.subr.mxu0 0.0
        %v4478 = vand.u32 %v422, 4294901760
        %4479 = vmatpush1.msra.mxu0 %v4478
        %4480 = vmatprep.subr.mxu0 0.0
        %v4481 = vand.u32 %v423, 4294901760
        %4482 = vmatpush1.msra.mxu0 %v4481
        %4483 = vmatprep.subr.mxu0 0.0
        %v4484 = vand.u32 %v424, 4294901760
        %4485 = vmatpush1.msra.mxu0 %v4484
        %4486 = vmatprep.subr.mxu0 0.0
        %v4487 = vand.u32 %v425, 4294901760
        %4488 = vmatpush1.msra.mxu0 %v4487
        %4489 = vmatprep.subr.mxu0 0.0
        %v4490 = vand.u32 %v426, 4294901760
        %4491 = vmatpush1.msra.mxu0 %v4490
        %4492 = vmatprep.subr.mxu0 0.0
        %v4493 = vand.u32 %v427, 4294901760
        %4494 = vmatpush1.msra.mxu0 %v4493
        %4495 = vmatprep.subr.mxu0 0.0
        %v4496 = vand.u32 %v428, 4294901760
        %4497 = vmatpush1.msra.mxu0 %v4496
        %4498 = vmatprep.subr.mxu0 0.0
        %4499 = vmatpush1.msra.mxu0 0.0
        %4500 = vmatprep.subr.mxu0 0.0
        %4501 = vmatpush1.msra.mxu0 0.0
        %4502 = vmatprep.subr.mxu0 0.0
        %4503 = vmatpush1.msra.mxu0 0.0
        %4504 = vmatprep.subr.mxu0 0.0
        %4505 = vmatpush1.msra.mxu0 0.0
        %4506 = vmatprep.subr.mxu0 0.0
        %4507 = vmatpush1.msra.mxu0 0.0
        %4508 = vmatprep.subr.mxu0 0.0
        %4509 = vmatpush1.msra.mxu0 0.0
        %4510 = vmatprep.subr.mxu0 0.0
        %4511 = vmatpush1.msra.mxu0 0.0
        %4512 = vmatprep.subr.mxu0 0.0
        %4513 = vmatpush1.msra.mxu0 0.0
        %4514 = vmatprep.subr.mxu0 0.0
        %4515 = vmatpush1.msra.mxu0 0.0
        %4516 = vmatprep.subr.mxu0 0.0
        %4517 = vmatpush1.msra.mxu0 0.0
        %4518 = vmatprep.subr.mxu0 0.0
        %4519 = vmatpush1.msra.mxu0 0.0
        %4520 = vmatprep.subr.mxu0 0.0
        %4521 = vmatpush1.msra.mxu0 0.0
        %4522 = vmatprep.subr.mxu0 0.0
        %4523 = vmatpush1.msra.mxu0 0.0
        %4524 = vmatprep.subr.mxu0 0.0
        %4525 = vmatpush1.msra.mxu0 0.0
        %4526 = vmatprep.subr.mxu0 0.0
        %4527 = vmatpush1.msra.mxu0 0.0
        %4528 = vmatprep.subr.mxu0 0.0
        %4529 = vmatpush1.msra.mxu0 0.0
        %4530 = vmatprep.mubr.f32.mxu0 0.0
        %v4531 = vand.u32 %v4009, 4294901760
        %v4532 = vsub.f32 %v4009, %v4531
        %v4533 = vand.u32 %v4532, 4294901760
        %4534 = vmatmul.mubr.f32.gmra.mrb[0].mxu0 %v4533
        %v4535 = vpop.f32.mrb[0].mxu0
        %v4536 = vadd.f32 %v4426, %v4535
        %v4537 = vpop.f32.mrb[0].mxu0
        %4538 = vmatprep.mubr.f32.mxu0 0.0
        %v4539 = vand.u32 %v4015, 4294901760
        %v4540 = vsub.f32 %v4015, %v4539
        %v4541 = vand.u32 %v4540, 4294901760
        %4542 = vmatmul.mubr.f32.gmra.mrb[0].mxu0 %v4541
        %v4543 = vpop.f32.mrb[0].mxu0
        %v4544 = vadd.f32 %v4433, %v4543
        %v4545 = vpop.f32.mrb[0].mxu0
        %4546 = vmatprep.mubr.f32.mxu0 0.0
        %v4547 = vand.u32 %v4021, 4294901760
        %v4548 = vsub.f32 %v4021, %v4547
        %v4549 = vand.u32 %v4548, 4294901760
        %4550 = vmatmul.mubr.f32.gmra.mrb[0].mxu0 %v4549
        %v4551 = vpop.f32.mrb[0].mxu0
        %v4552 = vadd.f32 %v4440, %v4551
        %v4553 = vpop.f32.mrb[0].mxu0
        %4554 = vmatprep.mubr.f32.mxu0 0.0
        %v4555 = vand.u32 %v4027, 4294901760
        %v4556 = vsub.f32 %v4027, %v4555
        %v4557 = vand.u32 %v4556, 4294901760
        %4558 = vmatmul.mubr.f32.gmra.mrb[0].mxu0 %v4557
        %v4559 = vpop.f32.mrb[0].mxu0
        %v4560 = vadd.f32 %v4447, %v4559
        %v4561 = vpop.f32.mrb[0].mxu0
        %4562 = vdwg.mxu0
        %4563 = vmatprep.subr.mxu0 0.0
        %v4564 = vand.u32 %v413, 4294901760
        %v4565 = vsub.f32 %v413, %v4564
        %v4566 = vand.u32 %v4565, 4294901760
        %4567 = vmatpush1.msra.mxu0 %v4566
        %4568 = vmatprep.subr.mxu0 0.0
        %v4569 = vand.u32 %v414, 4294901760
        %v4570 = vsub.f32 %v414, %v4569
        %v4571 = vand.u32 %v4570, 4294901760
        %4572 = vmatpush1.msra.mxu0 %v4571
        %4573 = vmatprep.subr.mxu0 0.0
        %v4574 = vand.u32 %v415, 4294901760
        %v4575 = vsub.f32 %v415, %v4574
        %v4576 = vand.u32 %v4575, 4294901760
        %4577 = vmatpush1.msra.mxu0 %v4576
        %4578 = vmatprep.subr.mxu0 0.0
        %v4579 = vand.u32 %v416, 4294901760
        %v4580 = vsub.f32 %v416, %v4579
        %v4581 = vand.u32 %v4580, 4294901760
        %4582 = vmatpush1.msra.mxu0 %v4581
        %4583 = vmatprep.subr.mxu0 0.0
        %v4584 = vand.u32 %v417, 4294901760
        %v4585 = vsub.f32 %v417, %v4584
        %v4586 = vand.u32 %v4585, 4294901760
        %4587 = vmatpush1.msra.mxu0 %v4586
        %4588 = vmatprep.subr.mxu0 0.0
        %v4589 = vand.u32 %v418, 4294901760
        %v4590 = vsub.f32 %v418, %v4589
        %v4591 = vand.u32 %v4590, 4294901760
        %4592 = vmatpush1.msra.mxu0 %v4591
        %4593 = vmatprep.subr.mxu0 0.0
        %v4594 = vand.u32 %v419, 4294901760
        %v4595 = vsub.f32 %v419, %v4594
        %v4596 = vand.u32 %v4595, 4294901760
        %4597 = vmatpush1.msra.mxu0 %v4596
        %4598 = vmatprep.subr.mxu0 0.0
        %v4599 = vand.u32 %v420, 4294901760
        %v4600 = vsub.f32 %v420, %v4599
        %v4601 = vand.u32 %v4600, 4294901760
        %4602 = vmatpush1.msra.mxu0 %v4601
        %4603 = vmatprep.subr.mxu0 0.0
        %v4604 = vand.u32 %v421, 4294901760
        %v4605 = vsub.f32 %v421, %v4604
        %v4606 = vand.u32 %v4605, 4294901760
        %4607 = vmatpush1.msra.mxu0 %v4606
        %4608 = vmatprep.subr.mxu0 0.0
        %v4609 = vand.u32 %v422, 4294901760
        %v4610 = vsub.f32 %v422, %v4609
        %v4611 = vand.u32 %v4610, 4294901760
        %4612 = vmatpush1.msra.mxu0 %v4611
        %4613 = vmatprep.subr.mxu0 0.0
        %v4614 = vand.u32 %v423, 4294901760
        %v4615 = vsub.f32 %v423, %v4614
        %v4616 = vand.u32 %v4615, 4294901760
        %4617 = vmatpush1.msra.mxu0 %v4616
        %4618 = vmatprep.subr.mxu0 0.0
        %v4619 = vand.u32 %v424, 4294901760
        %v4620 = vsub.f32 %v424, %v4619
        %v4621 = vand.u32 %v4620, 4294901760
        %4622 = vmatpush1.msra.mxu0 %v4621
        %4623 = vmatprep.subr.mxu0 0.0
        %v4624 = vand.u32 %v425, 4294901760
        %v4625 = vsub.f32 %v425, %v4624
        %v4626 = vand.u32 %v4625, 4294901760
        %4627 = vmatpush1.msra.mxu0 %v4626
        %4628 = vmatprep.subr.mxu0 0.0
        %v4629 = vand.u32 %v426, 4294901760
        %v4630 = vsub.f32 %v426, %v4629
        %v4631 = vand.u32 %v4630, 4294901760
        %4632 = vmatpush1.msra.mxu0 %v4631
        %4633 = vmatprep.subr.mxu0 0.0
        %v4634 = vand.u32 %v427, 4294901760
        %v4635 = vsub.f32 %v427, %v4634
        %v4636 = vand.u32 %v4635, 4294901760
        %4637 = vmatpush1.msra.mxu0 %v4636
        %4638 = vmatprep.subr.mxu0 0.0
        %v4639 = vand.u32 %v428, 4294901760
        %v4640 = vsub.f32 %v428, %v4639
        %v4641 = vand.u32 %v4640, 4294901760
        %4642 = vmatpush1.msra.mxu0 %v4641
        %4643 = vmatprep.subr.mxu0 0.0
        %4644 = vmatpush1.msra.mxu0 0.0
        %4645 = vmatprep.subr.mxu0 0.0
        %4646 = vmatpush1.msra.mxu0 0.0
        %4647 = vmatprep.subr.mxu0 0.0
        %4648 = vmatpush1.msra.mxu0 0.0
        %4649 = vmatprep.subr.mxu0 0.0
        %4650 = vmatpush1.msra.mxu0 0.0
        %4651 = vmatprep.subr.mxu0 0.0
        %4652 = vmatpush1.msra.mxu0 0.0
        %4653 = vmatprep.subr.mxu0 0.0
        %4654 = vmatpush1.msra.mxu0 0.0
        %4655 = vmatprep.subr.mxu0 0.0
        %4656 = vmatpush1.msra.mxu0 0.0
        %4657 = vmatprep.subr.mxu0 0.0
        %4658 = vmatpush1.msra.mxu0 0.0
        %4659 = vmatprep.subr.mxu0 0.0
        %4660 = vmatpush1.msra.mxu0 0.0
        %4661 = vmatprep.subr.mxu0 0.0
        %4662 = vmatpush1.msra.mxu0 0.0
        %4663 = vmatprep.subr.mxu0 0.0
        %4664 = vmatpush1.msra.mxu0 0.0
        %4665 = vmatprep.subr.mxu0 0.0
        %4666 = vmatpush1.msra.mxu0 0.0
        %4667 = vmatprep.subr.mxu0 0.0
        %4668 = vmatpush1.msra.mxu0 0.0
        %4669 = vmatprep.subr.mxu0 0.0
        %4670 = vmatpush1.msra.mxu0 0.0
        %4671 = vmatprep.subr.mxu0 0.0
        %4672 = vmatpush1.msra.mxu0 0.0
        %4673 = vmatprep.subr.mxu0 0.0
        %4674 = vmatpush1.msra.mxu0 0.0
        %4675 = vmatprep.mubr.f32.mxu0 0.0
        %v4676 = vand.u32 %v4009, 4294901760
        %4677 = vmatmul.mubr.f32.gmra.mrb[0].mxu0 %v4676
        %v4678 = vpop.f32.mrb[0].mxu0
        %v4679 = vadd.f32 %v4536, %v4678
        %v4680 = vpop.f32.mrb[0].mxu0
        %4681 = vmatprep.mubr.f32.mxu0 0.0
        %v4682 = vand.u32 %v4015, 4294901760
        %4683 = vmatmul.mubr.f32.gmra.mrb[0].mxu0 %v4682
        %v4684 = vpop.f32.mrb[0].mxu0
        %v4685 = vadd.f32 %v4544, %v4684
        %v4686 = vpop.f32.mrb[0].mxu0
        %4687 = vmatprep.mubr.f32.mxu0 0.0
        %v4688 = vand.u32 %v4021, 4294901760
        %4689 = vmatmul.mubr.f32.gmra.mrb[0].mxu0 %v4688
        %v4690 = vpop.f32.mrb[0].mxu0
        %v4691 = vadd.f32 %v4552, %v4690
        %v4692 = vpop.f32.mrb[0].mxu0
        %4693 = vmatprep.mubr.f32.mxu0 0.0
        %v4694 = vand.u32 %v4027, 4294901760
        %4695 = vmatmul.mubr.f32.gmra.mrb[0].mxu0 %v4694
        %v4696 = vpop.f32.mrb[0].mxu0
        %v4697 = vadd.f32 %v4560, %v4696
        %v4698 = vpop.f32.mrb[0].mxu0
        %4699 = vdwg.mxu0
        %4700 = vmatprep.subr.mxu0 0.0
        %v4701 = vand.u32 %v413, 4294901760
        %4702 = vmatpush1.msra.mxu0 %v4701
        %4703 = vmatprep.subr.mxu0 0.0
        %v4704 = vand.u32 %v414, 4294901760
        %4705 = vmatpush1.msra.mxu0 %v4704
        %4706 = vmatprep.subr.mxu0 0.0
        %v4707 = vand.u32 %v415, 4294901760
        %4708 = vmatpush1.msra.mxu0 %v4707
        %4709 = vmatprep.subr.mxu0 0.0
        %v4710 = vand.u32 %v416, 4294901760
        %4711 = vmatpush1.msra.mxu0 %v4710
        %4712 = vmatprep.subr.mxu0 0.0
        %v4713 = vand.u32 %v417, 4294901760
        %4714 = vmatpush1.msra.mxu0 %v4713
        %4715 = vmatprep.subr.mxu0 0.0
        %v4716 = vand.u32 %v418, 4294901760
        %4717 = vmatpush1.msra.mxu0 %v4716
        %4718 = vmatprep.subr.mxu0 0.0
        %v4719 = vand.u32 %v419, 4294901760
        %4720 = vmatpush1.msra.mxu0 %v4719
        %4721 = vmatprep.subr.mxu0 0.0
        %v4722 = vand.u32 %v420, 4294901760
        %4723 = vmatpush1.msra.mxu0 %v4722
        %4724 = vmatprep.subr.mxu0 0.0
        %v4725 = vand.u32 %v421, 4294901760
        %4726 = vmatpush1.msra.mxu0 %v4725
        %4727 = vmatprep.subr.mxu0 0.0
        %v4728 = vand.u32 %v422, 4294901760
        %4729 = vmatpush1.msra.mxu0 %v4728
        %4730 = vmatprep.subr.mxu0 0.0
        %v4731 = vand.u32 %v423, 4294901760
        %4732 = vmatpush1.msra.mxu0 %v4731
        %4733 = vmatprep.subr.mxu0 0.0
        %v4734 = vand.u32 %v424, 4294901760
        %4735 = vmatpush1.msra.mxu0 %v4734
        %4736 = vmatprep.subr.mxu0 0.0
        %v4737 = vand.u32 %v425, 4294901760
        %4738 = vmatpush1.msra.mxu0 %v4737
        %4739 = vmatprep.subr.mxu0 0.0
        %v4740 = vand.u32 %v426, 4294901760
        %4741 = vmatpush1.msra.mxu0 %v4740
        %4742 = vmatprep.subr.mxu0 0.0
        %v4743 = vand.u32 %v427, 4294901760
        %4744 = vmatpush1.msra.mxu0 %v4743
        %4745 = vmatprep.subr.mxu0 0.0
        %v4746 = vand.u32 %v428, 4294901760
        %4747 = vmatpush1.msra.mxu0 %v4746
        %4748 = vmatprep.subr.mxu0 0.0
        %4749 = vmatpush1.msra.mxu0 0.0
        %4750 = vmatprep.subr.mxu0 0.0
        %4751 = vmatpush1.msra.mxu0 0.0
        %4752 = vmatprep.subr.mxu0 0.0
        %4753 = vmatpush1.msra.mxu0 0.0
        %4754 = vmatprep.subr.mxu0 0.0
        %4755 = vmatpush1.msra.mxu0 0.0
        %4756 = vmatprep.subr.mxu0 0.0
        %4757 = vmatpush1.msra.mxu0 0.0
        %4758 = vmatprep.subr.mxu0 0.0
        %4759 = vmatpush1.msra.mxu0 0.0
        %4760 = vmatprep.subr.mxu0 0.0
        %4761 = vmatpush1.msra.mxu0 0.0
        %4762 = vmatprep.subr.mxu0 0.0
        %4763 = vmatpush1.msra.mxu0 0.0
        %4764 = vmatprep.subr.mxu0 0.0
        %4765 = vmatpush1.msra.mxu0 0.0
        %4766 = vmatprep.subr.mxu0 0.0
        %4767 = vmatpush1.msra.mxu0 0.0
        %4768 = vmatprep.subr.mxu0 0.0
        %4769 = vmatpush1.msra.mxu0 0.0
        %4770 = vmatprep.subr.mxu0 0.0
        %4771 = vmatpush1.msra.mxu0 0.0
        %4772 = vmatprep.subr.mxu0 0.0
        %4773 = vmatpush1.msra.mxu0 0.0
        %4774 = vmatprep.subr.mxu0 0.0
        %4775 = vmatpush1.msra.mxu0 0.0
        %4776 = vmatprep.subr.mxu0 0.0
        %4777 = vmatpush1.msra.mxu0 0.0
        %4778 = vmatprep.subr.mxu0 0.0
        %4779 = vmatpush1.msra.mxu0 0.0
        %4780 = vmatprep.mubr.f32.mxu0 0.0
        %v4781 = vand.u32 %v4009, 4294901760
        %4782 = vmatmul.mubr.f32.gmra.mrb[0].mxu0 %v4781
        %v4783 = vpop.f32.mrb[0].mxu0
        %v4784 = vadd.f32 %v4679, %v4783
        %v4785 = vpop.f32.mrb[0].mxu0
        %4786 = vmatprep.mubr.f32.mxu0 0.0
        %v4787 = vand.u32 %v4015, 4294901760
        %4788 = vmatmul.mubr.f32.gmra.mrb[0].mxu0 %v4787
        %v4789 = vpop.f32.mrb[0].mxu0
        %v4790 = vadd.f32 %v4685, %v4789
        %v4791 = vpop.f32.mrb[0].mxu0
        %4792 = vmatprep.mubr.f32.mxu0 0.0
        %v4793 = vand.u32 %v4021, 4294901760
        %4794 = vmatmul.mubr.f32.gmra.mrb[0].mxu0 %v4793
        %v4795 = vpop.f32.mrb[0].mxu0
        %v4796 = vadd.f32 %v4691, %v4795
        %v4797 = vpop.f32.mrb[0].mxu0
        %4798 = vmatprep.mubr.f32.mxu0 0.0
        %v4799 = vand.u32 %v4027, 4294901760
        %4800 = vmatmul.mubr.f32.gmra.mrb[0].mxu0 %v4799
        %v4801 = vpop.f32.mrb[0].mxu0
        %v4802 = vadd.f32 %v4697, %v4801
        %v4803 = vpop.f32.mrb[0].mxu0
        %4804 = vdwg.mxu0
        %v4805 = vmax.f32 %v4784, -1.0
        %v4806 = vmax.f32 %v4790, -1.0
        %v4807 = vmax.f32 %v4796, -1.0
        %v4808 = vmax.f32 %v4802, -1.0
        %v4809 = vmin.f32 %v4805, 1.0
        %v4810 = vmin.f32 %v4806, 1.0
        %v4811 = vmin.f32 %v4807, 1.0
        %v4812 = vmin.f32 %v4808, 1.0
        %v4814 = vsel %vm1910, %v4809, 0
        %v4817 = vsel %vm1910, %v4810, 0
        %v4820 = vsel %vm1910, %v4811, 0
        %v4823 = vsel %vm1910, %v4812, 0
        %4825 = vmatprep.subr.mxu0 0.0
        %v4826 = vand.u32 %v437, 4294901760
        %4827 = vmatpush1.msra.mxu0 %v4826
        %4828 = vmatprep.subr.mxu0 0.0
        %v4829 = vand.u32 %v438, 4294901760
        %4830 = vmatpush1.msra.mxu0 %v4829
        %4831 = vmatprep.subr.mxu0 0.0
        %v4832 = vand.u32 %v439, 4294901760
        %4833 = vmatpush1.msra.mxu0 %v4832
        %4834 = vmatprep.subr.mxu0 0.0
        %v4835 = vand.u32 %v440, 4294901760
        %4836 = vmatpush1.msra.mxu0 %v4835
        %4837 = vmatprep.subr.mxu0 0.0
        %4838 = vmatpush1.msra.mxu0 0.0
        %4839 = vmatprep.subr.mxu0 0.0
        %4840 = vmatpush1.msra.mxu0 0.0
        %4841 = vmatprep.subr.mxu0 0.0
        %4842 = vmatpush1.msra.mxu0 0.0
        %4843 = vmatprep.subr.mxu0 0.0
        %4844 = vmatpush1.msra.mxu0 0.0
        %4845 = vmatprep.subr.mxu0 0.0
        %4846 = vmatpush1.msra.mxu0 0.0
        %4847 = vmatprep.subr.mxu0 0.0
        %4848 = vmatpush1.msra.mxu0 0.0
        %4849 = vmatprep.subr.mxu0 0.0
        %4850 = vmatpush1.msra.mxu0 0.0
        %4851 = vmatprep.subr.mxu0 0.0
        %4852 = vmatpush1.msra.mxu0 0.0
        %4853 = vmatprep.subr.mxu0 0.0
        %4854 = vmatpush1.msra.mxu0 0.0
        %4855 = vmatprep.subr.mxu0 0.0
        %4856 = vmatpush1.msra.mxu0 0.0
        %4857 = vmatprep.subr.mxu0 0.0
        %4858 = vmatpush1.msra.mxu0 0.0
        %4859 = vmatprep.subr.mxu0 0.0
        %4860 = vmatpush1.msra.mxu0 0.0
        %4861 = vmatprep.subr.mxu0 0.0
        %4862 = vmatpush1.msra.mxu0 0.0
        %4863 = vmatprep.subr.mxu0 0.0
        %4864 = vmatpush1.msra.mxu0 0.0
        %4865 = vmatprep.subr.mxu0 0.0
        %4866 = vmatpush1.msra.mxu0 0.0
        %4867 = vmatprep.subr.mxu0 0.0
        %4868 = vmatpush1.msra.mxu0 0.0
        %4869 = vmatprep.subr.mxu0 0.0
        %4870 = vmatpush1.msra.mxu0 0.0
        %4871 = vmatprep.subr.mxu0 0.0
        %4872 = vmatpush1.msra.mxu0 0.0
        %4873 = vmatprep.subr.mxu0 0.0
        %4874 = vmatpush1.msra.mxu0 0.0
        %4875 = vmatprep.subr.mxu0 0.0
        %4876 = vmatpush1.msra.mxu0 0.0
        %4877 = vmatprep.subr.mxu0 0.0
        %4878 = vmatpush1.msra.mxu0 0.0
        %4879 = vmatprep.subr.mxu0 0.0
        %4880 = vmatpush1.msra.mxu0 0.0
        %4881 = vmatprep.subr.mxu0 0.0
        %4882 = vmatpush1.msra.mxu0 0.0
        %4883 = vmatprep.subr.mxu0 0.0
        %4884 = vmatpush1.msra.mxu0 0.0
        %4885 = vmatprep.subr.mxu0 0.0
        %4886 = vmatpush1.msra.mxu0 0.0
        %4887 = vmatprep.subr.mxu0 0.0
        %4888 = vmatpush1.msra.mxu0 0.0
        %4889 = vmatprep.subr.mxu0 0.0
        %4890 = vmatpush1.msra.mxu0 0.0
        %4891 = vmatprep.subr.mxu0 0.0
        %4892 = vmatpush1.msra.mxu0 0.0
        %4893 = vmatprep.mubr.f32.mxu0 0.0
        %v4894 = vand.u32 %v4814, 4294901760
        %v4895 = vsub.f32 %v4814, %v4894
        %v4896 = vand.u32 %v4895, 4294901760
        %v4897 = vsub.f32 %v4895, %v4896
        %v4898 = vand.u32 %v4897, 4294901760
        %4899 = vmatmul.mubr.f32.gmra.mrb[0].mxu0 %v4898
        %v4900 = vpop.f32.mrb[0].mxu0
        %v4901 = vadd.f32 0.0, %v4900
        %v4902 = vpop.f32.mrb[0].mxu0
        %4903 = vmatprep.mubr.f32.mxu0 0.0
        %v4904 = vand.u32 %v4817, 4294901760
        %v4905 = vsub.f32 %v4817, %v4904
        %v4906 = vand.u32 %v4905, 4294901760
        %v4907 = vsub.f32 %v4905, %v4906
        %v4908 = vand.u32 %v4907, 4294901760
        %4909 = vmatmul.mubr.f32.gmra.mrb[0].mxu0 %v4908
        %v4910 = vpop.f32.mrb[0].mxu0
        %v4911 = vadd.f32 0.0, %v4910
        %v4912 = vpop.f32.mrb[0].mxu0
        %4913 = vmatprep.mubr.f32.mxu0 0.0
        %v4914 = vand.u32 %v4820, 4294901760
        %v4915 = vsub.f32 %v4820, %v4914
        %v4916 = vand.u32 %v4915, 4294901760
        %v4917 = vsub.f32 %v4915, %v4916
        %v4918 = vand.u32 %v4917, 4294901760
        %4919 = vmatmul.mubr.f32.gmra.mrb[0].mxu0 %v4918
        %v4920 = vpop.f32.mrb[0].mxu0
        %v4921 = vadd.f32 0.0, %v4920
        %v4922 = vpop.f32.mrb[0].mxu0
        %4923 = vmatprep.mubr.f32.mxu0 0.0
        %v4924 = vand.u32 %v4823, 4294901760
        %v4925 = vsub.f32 %v4823, %v4924
        %v4926 = vand.u32 %v4925, 4294901760
        %v4927 = vsub.f32 %v4925, %v4926
        %v4928 = vand.u32 %v4927, 4294901760
        %4929 = vmatmul.mubr.f32.gmra.mrb[0].mxu0 %v4928
        %v4930 = vpop.f32.mrb[0].mxu0
        %v4931 = vadd.f32 0.0, %v4930
        %v4932 = vpop.f32.mrb[0].mxu0
        %4933 = vdwg.mxu0
        %4934 = vmatprep.subr.mxu0 0.0
        %v4935 = vand.u32 %v437, 4294901760
        %v4936 = vsub.f32 %v437, %v4935
        %v4937 = vand.u32 %v4936, 4294901760
        %v4938 = vsub.f32 %v4936, %v4937
        %v4939 = vand.u32 %v4938, 4294901760
        %4940 = vmatpush1.msra.mxu0 %v4939
        %4941 = vmatprep.subr.mxu0 0.0
        %v4942 = vand.u32 %v438, 4294901760
        %v4943 = vsub.f32 %v438, %v4942
        %v4944 = vand.u32 %v4943, 4294901760
        %v4945 = vsub.f32 %v4943, %v4944
        %v4946 = vand.u32 %v4945, 4294901760
        %4947 = vmatpush1.msra.mxu0 %v4946
        %4948 = vmatprep.subr.mxu0 0.0
        %v4949 = vand.u32 %v439, 4294901760
        %v4950 = vsub.f32 %v439, %v4949
        %v4951 = vand.u32 %v4950, 4294901760
        %v4952 = vsub.f32 %v4950, %v4951
        %v4953 = vand.u32 %v4952, 4294901760
        %4954 = vmatpush1.msra.mxu0 %v4953
        %4955 = vmatprep.subr.mxu0 0.0
        %v4956 = vand.u32 %v440, 4294901760
        %v4957 = vsub.f32 %v440, %v4956
        %v4958 = vand.u32 %v4957, 4294901760
        %v4959 = vsub.f32 %v4957, %v4958
        %v4960 = vand.u32 %v4959, 4294901760
        %4961 = vmatpush1.msra.mxu0 %v4960
        %4962 = vmatprep.subr.mxu0 0.0
        %4963 = vmatpush1.msra.mxu0 0.0
        %4964 = vmatprep.subr.mxu0 0.0
        %4965 = vmatpush1.msra.mxu0 0.0
        %4966 = vmatprep.subr.mxu0 0.0
        %4967 = vmatpush1.msra.mxu0 0.0
        %4968 = vmatprep.subr.mxu0 0.0
        %4969 = vmatpush1.msra.mxu0 0.0
        %4970 = vmatprep.subr.mxu0 0.0
        %4971 = vmatpush1.msra.mxu0 0.0
        %4972 = vmatprep.subr.mxu0 0.0
        %4973 = vmatpush1.msra.mxu0 0.0
        %4974 = vmatprep.subr.mxu0 0.0
        %4975 = vmatpush1.msra.mxu0 0.0
        %4976 = vmatprep.subr.mxu0 0.0
        %4977 = vmatpush1.msra.mxu0 0.0
        %4978 = vmatprep.subr.mxu0 0.0
        %4979 = vmatpush1.msra.mxu0 0.0
        %4980 = vmatprep.subr.mxu0 0.0
        %4981 = vmatpush1.msra.mxu0 0.0
        %4982 = vmatprep.subr.mxu0 0.0
        %4983 = vmatpush1.msra.mxu0 0.0
        %4984 = vmatprep.subr.mxu0 0.0
        %4985 = vmatpush1.msra.mxu0 0.0
        %4986 = vmatprep.subr.mxu0 0.0
        %4987 = vmatpush1.msra.mxu0 0.0
        %4988 = vmatprep.subr.mxu0 0.0
        %4989 = vmatpush1.msra.mxu0 0.0
        %4990 = vmatprep.subr.mxu0 0.0
        %4991 = vmatpush1.msra.mxu0 0.0
        %4992 = vmatprep.subr.mxu0 0.0
        %4993 = vmatpush1.msra.mxu0 0.0
        %4994 = vmatprep.subr.mxu0 0.0
        %4995 = vmatpush1.msra.mxu0 0.0
        %4996 = vmatprep.subr.mxu0 0.0
        %4997 = vmatpush1.msra.mxu0 0.0
        %4998 = vmatprep.subr.mxu0 0.0
        %4999 = vmatpush1.msra.mxu0 0.0
        %5000 = vmatprep.subr.mxu0 0.0
        %5001 = vmatpush1.msra.mxu0 0.0
        %5002 = vmatprep.subr.mxu0 0.0
        %5003 = vmatpush1.msra.mxu0 0.0
        %5004 = vmatprep.subr.mxu0 0.0
        %5005 = vmatpush1.msra.mxu0 0.0
        %5006 = vmatprep.subr.mxu0 0.0
        %5007 = vmatpush1.msra.mxu0 0.0
        %5008 = vmatprep.subr.mxu0 0.0
        %5009 = vmatpush1.msra.mxu0 0.0
        %5010 = vmatprep.subr.mxu0 0.0
        %5011 = vmatpush1.msra.mxu0 0.0
        %5012 = vmatprep.subr.mxu0 0.0
        %5013 = vmatpush1.msra.mxu0 0.0
        %5014 = vmatprep.subr.mxu0 0.0
        %5015 = vmatpush1.msra.mxu0 0.0
        %5016 = vmatprep.subr.mxu0 0.0
        %5017 = vmatpush1.msra.mxu0 0.0
        %5018 = vmatprep.mubr.f32.mxu0 0.0
        %v5019 = vand.u32 %v4814, 4294901760
        %5020 = vmatmul.mubr.f32.gmra.mrb[0].mxu0 %v5019
        %v5021 = vpop.f32.mrb[0].mxu0
        %v5022 = vadd.f32 %v4901, %v5021
        %v5023 = vpop.f32.mrb[0].mxu0
        %5024 = vmatprep.mubr.f32.mxu0 0.0
        %v5025 = vand.u32 %v4817, 4294901760
        %5026 = vmatmul.mubr.f32.gmra.mrb[0].mxu0 %v5025
        %v5027 = vpop.f32.mrb[0].mxu0
        %v5028 = vadd.f32 %v4911, %v5027
        %v5029 = vpop.f32.mrb[0].mxu0
        %5030 = vmatprep.mubr.f32.mxu0 0.0
        %v5031 = vand.u32 %v4820, 4294901760
        %5032 = vmatmul.mubr.f32.gmra.mrb[0].mxu0 %v5031
        %v5033 = vpop.f32.mrb[0].mxu0
        %v5034 = vadd.f32 %v4921, %v5033
        %v5035 = vpop.f32.mrb[0].mxu0
        %5036 = vmatprep.mubr.f32.mxu0 0.0
        %v5037 = vand.u32 %v4823, 4294901760
        %5038 = vmatmul.mubr.f32.gmra.mrb[0].mxu0 %v5037
        %v5039 = vpop.f32.mrb[0].mxu0
        %v5040 = vadd.f32 %v4931, %v5039
        %v5041 = vpop.f32.mrb[0].mxu0
        %5042 = vdwg.mxu0
        %5043 = vmatprep.subr.mxu0 0.0
        %v5044 = vand.u32 %v437, 4294901760
        %v5045 = vsub.f32 %v437, %v5044
        %5046 = vmatpush1.msra.mxu0 %v5045
        %5047 = vmatprep.subr.mxu0 0.0
        %v5048 = vand.u32 %v438, 4294901760
        %v5049 = vsub.f32 %v438, %v5048
        %5050 = vmatpush1.msra.mxu0 %v5049
        %5051 = vmatprep.subr.mxu0 0.0
        %v5052 = vand.u32 %v439, 4294901760
        %v5053 = vsub.f32 %v439, %v5052
        %5054 = vmatpush1.msra.mxu0 %v5053
        %5055 = vmatprep.subr.mxu0 0.0
        %v5056 = vand.u32 %v440, 4294901760
        %v5057 = vsub.f32 %v440, %v5056
        %5058 = vmatpush1.msra.mxu0 %v5057
        %5059 = vmatprep.subr.mxu0 0.0
        %5060 = vmatpush1.msra.mxu0 0.0
        %5061 = vmatprep.subr.mxu0 0.0
        %5062 = vmatpush1.msra.mxu0 0.0
        %5063 = vmatprep.subr.mxu0 0.0
        %5064 = vmatpush1.msra.mxu0 0.0
        %5065 = vmatprep.subr.mxu0 0.0
        %5066 = vmatpush1.msra.mxu0 0.0
        %5067 = vmatprep.subr.mxu0 0.0
        %5068 = vmatpush1.msra.mxu0 0.0
        %5069 = vmatprep.subr.mxu0 0.0
        %5070 = vmatpush1.msra.mxu0 0.0
        %5071 = vmatprep.subr.mxu0 0.0
        %5072 = vmatpush1.msra.mxu0 0.0
        %5073 = vmatprep.subr.mxu0 0.0
        %5074 = vmatpush1.msra.mxu0 0.0
        %5075 = vmatprep.subr.mxu0 0.0
        %5076 = vmatpush1.msra.mxu0 0.0
        %5077 = vmatprep.subr.mxu0 0.0
        %5078 = vmatpush1.msra.mxu0 0.0
        %5079 = vmatprep.subr.mxu0 0.0
        %5080 = vmatpush1.msra.mxu0 0.0
        %5081 = vmatprep.subr.mxu0 0.0
        %5082 = vmatpush1.msra.mxu0 0.0
        %5083 = vmatprep.subr.mxu0 0.0
        %5084 = vmatpush1.msra.mxu0 0.0
        %5085 = vmatprep.subr.mxu0 0.0
        %5086 = vmatpush1.msra.mxu0 0.0
        %5087 = vmatprep.subr.mxu0 0.0
        %5088 = vmatpush1.msra.mxu0 0.0
        %5089 = vmatprep.subr.mxu0 0.0
        %5090 = vmatpush1.msra.mxu0 0.0
        %5091 = vmatprep.subr.mxu0 0.0
        %5092 = vmatpush1.msra.mxu0 0.0
        %5093 = vmatprep.subr.mxu0 0.0
        %5094 = vmatpush1.msra.mxu0 0.0
        %5095 = vmatprep.subr.mxu0 0.0
        %5096 = vmatpush1.msra.mxu0 0.0
        %5097 = vmatprep.subr.mxu0 0.0
        %5098 = vmatpush1.msra.mxu0 0.0
        %5099 = vmatprep.subr.mxu0 0.0
        %5100 = vmatpush1.msra.mxu0 0.0
        %5101 = vmatprep.subr.mxu0 0.0
        %5102 = vmatpush1.msra.mxu0 0.0
        %5103 = vmatprep.subr.mxu0 0.0
        %5104 = vmatpush1.msra.mxu0 0.0
        %5105 = vmatprep.subr.mxu0 0.0
        %5106 = vmatpush1.msra.mxu0 0.0
        %5107 = vmatprep.subr.mxu0 0.0
        %5108 = vmatpush1.msra.mxu0 0.0
        %5109 = vmatprep.subr.mxu0 0.0
        %5110 = vmatpush1.msra.mxu0 0.0
        %5111 = vmatprep.subr.mxu0 0.0
        %5112 = vmatpush1.msra.mxu0 0.0
        %5113 = vmatprep.subr.mxu0 0.0
        %5114 = vmatpush1.msra.mxu0 0.0
        %5115 = vmatprep.mubr.f32.mxu0 0.0
        %v5116 = vand.u32 %v4814, 4294901760
        %v5117 = vsub.f32 %v4814, %v5116
        %5118 = vmatmul.mubr.f32.gmra.mrb[0].mxu0 %v5117
        %v5119 = vpop.f32.mrb[0].mxu0
        %v5120 = vadd.f32 %v5022, %v5119
        %v5121 = vpop.f32.mrb[0].mxu0
        %5122 = vmatprep.mubr.f32.mxu0 0.0
        %v5123 = vand.u32 %v4817, 4294901760
        %v5124 = vsub.f32 %v4817, %v5123
        %5125 = vmatmul.mubr.f32.gmra.mrb[0].mxu0 %v5124
        %v5126 = vpop.f32.mrb[0].mxu0
        %v5127 = vadd.f32 %v5028, %v5126
        %v5128 = vpop.f32.mrb[0].mxu0
        %5129 = vmatprep.mubr.f32.mxu0 0.0
        %v5130 = vand.u32 %v4820, 4294901760
        %v5131 = vsub.f32 %v4820, %v5130
        %5132 = vmatmul.mubr.f32.gmra.mrb[0].mxu0 %v5131
        %v5133 = vpop.f32.mrb[0].mxu0
        %v5134 = vadd.f32 %v5034, %v5133
        %v5135 = vpop.f32.mrb[0].mxu0
        %5136 = vmatprep.mubr.f32.mxu0 0.0
        %v5137 = vand.u32 %v4823, 4294901760
        %v5138 = vsub.f32 %v4823, %v5137
        %5139 = vmatmul.mubr.f32.gmra.mrb[0].mxu0 %v5138
        %v5140 = vpop.f32.mrb[0].mxu0
        %v5141 = vadd.f32 %v5040, %v5140
        %v5142 = vpop.f32.mrb[0].mxu0
        %5143 = vdwg.mxu0
        %5144 = vmatprep.subr.mxu0 0.0
        %v5145 = vand.u32 %v437, 4294901760
        %5146 = vmatpush1.msra.mxu0 %v5145
        %5147 = vmatprep.subr.mxu0 0.0
        %v5148 = vand.u32 %v438, 4294901760
        %5149 = vmatpush1.msra.mxu0 %v5148
        %5150 = vmatprep.subr.mxu0 0.0
        %v5151 = vand.u32 %v439, 4294901760
        %5152 = vmatpush1.msra.mxu0 %v5151
        %5153 = vmatprep.subr.mxu0 0.0
        %v5154 = vand.u32 %v440, 4294901760
        %5155 = vmatpush1.msra.mxu0 %v5154
        %5156 = vmatprep.subr.mxu0 0.0
        %5157 = vmatpush1.msra.mxu0 0.0
        %5158 = vmatprep.subr.mxu0 0.0
        %5159 = vmatpush1.msra.mxu0 0.0
        %5160 = vmatprep.subr.mxu0 0.0
        %5161 = vmatpush1.msra.mxu0 0.0
        %5162 = vmatprep.subr.mxu0 0.0
        %5163 = vmatpush1.msra.mxu0 0.0
        %5164 = vmatprep.subr.mxu0 0.0
        %5165 = vmatpush1.msra.mxu0 0.0
        %5166 = vmatprep.subr.mxu0 0.0
        %5167 = vmatpush1.msra.mxu0 0.0
        %5168 = vmatprep.subr.mxu0 0.0
        %5169 = vmatpush1.msra.mxu0 0.0
        %5170 = vmatprep.subr.mxu0 0.0
        %5171 = vmatpush1.msra.mxu0 0.0
        %5172 = vmatprep.subr.mxu0 0.0
        %5173 = vmatpush1.msra.mxu0 0.0
        %5174 = vmatprep.subr.mxu0 0.0
        %5175 = vmatpush1.msra.mxu0 0.0
        %5176 = vmatprep.subr.mxu0 0.0
        %5177 = vmatpush1.msra.mxu0 0.0
        %5178 = vmatprep.subr.mxu0 0.0
        %5179 = vmatpush1.msra.mxu0 0.0
        %5180 = vmatprep.subr.mxu0 0.0
        %5181 = vmatpush1.msra.mxu0 0.0
        %5182 = vmatprep.subr.mxu0 0.0
        %5183 = vmatpush1.msra.mxu0 0.0
        %5184 = vmatprep.subr.mxu0 0.0
        %5185 = vmatpush1.msra.mxu0 0.0
        %5186 = vmatprep.subr.mxu0 0.0
        %5187 = vmatpush1.msra.mxu0 0.0
        %5188 = vmatprep.subr.mxu0 0.0
        %5189 = vmatpush1.msra.mxu0 0.0
        %5190 = vmatprep.subr.mxu0 0.0
        %5191 = vmatpush1.msra.mxu0 0.0
        %5192 = vmatprep.subr.mxu0 0.0
        %5193 = vmatpush1.msra.mxu0 0.0
        %5194 = vmatprep.subr.mxu0 0.0
        %5195 = vmatpush1.msra.mxu0 0.0
        %5196 = vmatprep.subr.mxu0 0.0
        %5197 = vmatpush1.msra.mxu0 0.0
        %5198 = vmatprep.subr.mxu0 0.0
        %5199 = vmatpush1.msra.mxu0 0.0
        %5200 = vmatprep.subr.mxu0 0.0
        %5201 = vmatpush1.msra.mxu0 0.0
        %5202 = vmatprep.subr.mxu0 0.0
        %5203 = vmatpush1.msra.mxu0 0.0
        %5204 = vmatprep.subr.mxu0 0.0
        %5205 = vmatpush1.msra.mxu0 0.0
        %5206 = vmatprep.subr.mxu0 0.0
        %5207 = vmatpush1.msra.mxu0 0.0
        %5208 = vmatprep.subr.mxu0 0.0
        %5209 = vmatpush1.msra.mxu0 0.0
        %5210 = vmatprep.subr.mxu0 0.0
        %5211 = vmatpush1.msra.mxu0 0.0
        %5212 = vmatprep.mubr.f32.mxu0 0.0
        %v5213 = vand.u32 %v4814, 4294901760
        %v5214 = vsub.f32 %v4814, %v5213
        %v5215 = vand.u32 %v5214, 4294901760
        %5216 = vmatmul.mubr.f32.gmra.mrb[0].mxu0 %v5215
        %v5217 = vpop.f32.mrb[0].mxu0
        %v5218 = vadd.f32 %v5120, %v5217
        %v5219 = vpop.f32.mrb[0].mxu0
        %5220 = vmatprep.mubr.f32.mxu0 0.0
        %v5221 = vand.u32 %v4817, 4294901760
        %v5222 = vsub.f32 %v4817, %v5221
        %v5223 = vand.u32 %v5222, 4294901760
        %5224 = vmatmul.mubr.f32.gmra.mrb[0].mxu0 %v5223
        %v5225 = vpop.f32.mrb[0].mxu0
        %v5226 = vadd.f32 %v5127, %v5225
        %v5227 = vpop.f32.mrb[0].mxu0
        %5228 = vmatprep.mubr.f32.mxu0 0.0
        %v5229 = vand.u32 %v4820, 4294901760
        %v5230 = vsub.f32 %v4820, %v5229
        %v5231 = vand.u32 %v5230, 4294901760
        %5232 = vmatmul.mubr.f32.gmra.mrb[0].mxu0 %v5231
        %v5233 = vpop.f32.mrb[0].mxu0
        %v5234 = vadd.f32 %v5134, %v5233
        %v5235 = vpop.f32.mrb[0].mxu0
        %5236 = vmatprep.mubr.f32.mxu0 0.0
        %v5237 = vand.u32 %v4823, 4294901760
        %v5238 = vsub.f32 %v4823, %v5237
        %v5239 = vand.u32 %v5238, 4294901760
        %5240 = vmatmul.mubr.f32.gmra.mrb[0].mxu0 %v5239
        %v5241 = vpop.f32.mrb[0].mxu0
        %v5242 = vadd.f32 %v5141, %v5241
        %v5243 = vpop.f32.mrb[0].mxu0
        %5244 = vdwg.mxu0
        %5245 = vmatprep.subr.mxu0 0.0
        %v5246 = vand.u32 %v437, 4294901760
        %v5247 = vsub.f32 %v437, %v5246
        %v5248 = vand.u32 %v5247, 4294901760
        %5249 = vmatpush1.msra.mxu0 %v5248
        %5250 = vmatprep.subr.mxu0 0.0
        %v5251 = vand.u32 %v438, 4294901760
        %v5252 = vsub.f32 %v438, %v5251
        %v5253 = vand.u32 %v5252, 4294901760
        %5254 = vmatpush1.msra.mxu0 %v5253
        %5255 = vmatprep.subr.mxu0 0.0
        %v5256 = vand.u32 %v439, 4294901760
        %v5257 = vsub.f32 %v439, %v5256
        %v5258 = vand.u32 %v5257, 4294901760
        %5259 = vmatpush1.msra.mxu0 %v5258
        %5260 = vmatprep.subr.mxu0 0.0
        %v5261 = vand.u32 %v440, 4294901760
        %v5262 = vsub.f32 %v440, %v5261
        %v5263 = vand.u32 %v5262, 4294901760
        %5264 = vmatpush1.msra.mxu0 %v5263
        %5265 = vmatprep.subr.mxu0 0.0
        %5266 = vmatpush1.msra.mxu0 0.0
        %5267 = vmatprep.subr.mxu0 0.0
        %5268 = vmatpush1.msra.mxu0 0.0
        %5269 = vmatprep.subr.mxu0 0.0
        %5270 = vmatpush1.msra.mxu0 0.0
        %5271 = vmatprep.subr.mxu0 0.0
        %5272 = vmatpush1.msra.mxu0 0.0
        %5273 = vmatprep.subr.mxu0 0.0
        %5274 = vmatpush1.msra.mxu0 0.0
        %5275 = vmatprep.subr.mxu0 0.0
        %5276 = vmatpush1.msra.mxu0 0.0
        %5277 = vmatprep.subr.mxu0 0.0
        %5278 = vmatpush1.msra.mxu0 0.0
        %5279 = vmatprep.subr.mxu0 0.0
        %5280 = vmatpush1.msra.mxu0 0.0
        %5281 = vmatprep.subr.mxu0 0.0
        %5282 = vmatpush1.msra.mxu0 0.0
        %5283 = vmatprep.subr.mxu0 0.0
        %5284 = vmatpush1.msra.mxu0 0.0
        %5285 = vmatprep.subr.mxu0 0.0
        %5286 = vmatpush1.msra.mxu0 0.0
        %5287 = vmatprep.subr.mxu0 0.0
        %5288 = vmatpush1.msra.mxu0 0.0
        %5289 = vmatprep.subr.mxu0 0.0
        %5290 = vmatpush1.msra.mxu0 0.0
        %5291 = vmatprep.subr.mxu0 0.0
        %5292 = vmatpush1.msra.mxu0 0.0
        %5293 = vmatprep.subr.mxu0 0.0
        %5294 = vmatpush1.msra.mxu0 0.0
        %5295 = vmatprep.subr.mxu0 0.0
        %5296 = vmatpush1.msra.mxu0 0.0
        %5297 = vmatprep.subr.mxu0 0.0
        %5298 = vmatpush1.msra.mxu0 0.0
        %5299 = vmatprep.subr.mxu0 0.0
        %5300 = vmatpush1.msra.mxu0 0.0
        %5301 = vmatprep.subr.mxu0 0.0
        %5302 = vmatpush1.msra.mxu0 0.0
        %5303 = vmatprep.subr.mxu0 0.0
        %5304 = vmatpush1.msra.mxu0 0.0
        %5305 = vmatprep.subr.mxu0 0.0
        %5306 = vmatpush1.msra.mxu0 0.0
        %5307 = vmatprep.subr.mxu0 0.0
        %5308 = vmatpush1.msra.mxu0 0.0
        %5309 = vmatprep.subr.mxu0 0.0
        %5310 = vmatpush1.msra.mxu0 0.0
        %5311 = vmatprep.subr.mxu0 0.0
        %5312 = vmatpush1.msra.mxu0 0.0
        %5313 = vmatprep.subr.mxu0 0.0
        %5314 = vmatpush1.msra.mxu0 0.0
        %5315 = vmatprep.subr.mxu0 0.0
        %5316 = vmatpush1.msra.mxu0 0.0
        %5317 = vmatprep.subr.mxu0 0.0
        %5318 = vmatpush1.msra.mxu0 0.0
        %5319 = vmatprep.subr.mxu0 0.0
        %5320 = vmatpush1.msra.mxu0 0.0
        %5321 = vmatprep.mubr.f32.mxu0 0.0
        %v5322 = vand.u32 %v4814, 4294901760
        %5323 = vmatmul.mubr.f32.gmra.mrb[0].mxu0 %v5322
        %v5324 = vpop.f32.mrb[0].mxu0
        %v5325 = vadd.f32 %v5218, %v5324
        %v5326 = vpop.f32.mrb[0].mxu0
        %5327 = vmatprep.mubr.f32.mxu0 0.0
        %v5328 = vand.u32 %v4817, 4294901760
        %5329 = vmatmul.mubr.f32.gmra.mrb[0].mxu0 %v5328
        %v5330 = vpop.f32.mrb[0].mxu0
        %v5331 = vadd.f32 %v5226, %v5330
        %v5332 = vpop.f32.mrb[0].mxu0
        %5333 = vmatprep.mubr.f32.mxu0 0.0
        %v5334 = vand.u32 %v4820, 4294901760
        %5335 = vmatmul.mubr.f32.gmra.mrb[0].mxu0 %v5334
        %v5336 = vpop.f32.mrb[0].mxu0
        %v5337 = vadd.f32 %v5234, %v5336
        %v5338 = vpop.f32.mrb[0].mxu0
        %5339 = vmatprep.mubr.f32.mxu0 0.0
        %v5340 = vand.u32 %v4823, 4294901760
        %5341 = vmatmul.mubr.f32.gmra.mrb[0].mxu0 %v5340
        %v5342 = vpop.f32.mrb[0].mxu0
        %v5343 = vadd.f32 %v5242, %v5342
        %v5344 = vpop.f32.mrb[0].mxu0
        %5345 = vdwg.mxu0
        %5346 = vmatprep.subr.mxu0 0.0
        %v5347 = vand.u32 %v437, 4294901760
        %5348 = vmatpush1.msra.mxu0 %v5347
        %5349 = vmatprep.subr.mxu0 0.0
        %v5350 = vand.u32 %v438, 4294901760
        %5351 = vmatpush1.msra.mxu0 %v5350
        %5352 = vmatprep.subr.mxu0 0.0
        %v5353 = vand.u32 %v439, 4294901760
        %5354 = vmatpush1.msra.mxu0 %v5353
        %5355 = vmatprep.subr.mxu0 0.0
        %v5356 = vand.u32 %v440, 4294901760
        %5357 = vmatpush1.msra.mxu0 %v5356
        %5358 = vmatprep.subr.mxu0 0.0
        %5359 = vmatpush1.msra.mxu0 0.0
        %5360 = vmatprep.subr.mxu0 0.0
        %5361 = vmatpush1.msra.mxu0 0.0
        %5362 = vmatprep.subr.mxu0 0.0
        %5363 = vmatpush1.msra.mxu0 0.0
        %5364 = vmatprep.subr.mxu0 0.0
        %5365 = vmatpush1.msra.mxu0 0.0
        %5366 = vmatprep.subr.mxu0 0.0
        %5367 = vmatpush1.msra.mxu0 0.0
        %5368 = vmatprep.subr.mxu0 0.0
        %5369 = vmatpush1.msra.mxu0 0.0
        %5370 = vmatprep.subr.mxu0 0.0
        %5371 = vmatpush1.msra.mxu0 0.0
        %5372 = vmatprep.subr.mxu0 0.0
        %5373 = vmatpush1.msra.mxu0 0.0
        %5374 = vmatprep.subr.mxu0 0.0
        %5375 = vmatpush1.msra.mxu0 0.0
        %5376 = vmatprep.subr.mxu0 0.0
        %5377 = vmatpush1.msra.mxu0 0.0
        %5378 = vmatprep.subr.mxu0 0.0
        %5379 = vmatpush1.msra.mxu0 0.0
        %5380 = vmatprep.subr.mxu0 0.0
        %5381 = vmatpush1.msra.mxu0 0.0
        %5382 = vmatprep.subr.mxu0 0.0
        %5383 = vmatpush1.msra.mxu0 0.0
        %5384 = vmatprep.subr.mxu0 0.0
        %5385 = vmatpush1.msra.mxu0 0.0
        %5386 = vmatprep.subr.mxu0 0.0
        %5387 = vmatpush1.msra.mxu0 0.0
        %5388 = vmatprep.subr.mxu0 0.0
        %5389 = vmatpush1.msra.mxu0 0.0
        %5390 = vmatprep.subr.mxu0 0.0
        %5391 = vmatpush1.msra.mxu0 0.0
        %5392 = vmatprep.subr.mxu0 0.0
        %5393 = vmatpush1.msra.mxu0 0.0
        %5394 = vmatprep.subr.mxu0 0.0
        %5395 = vmatpush1.msra.mxu0 0.0
        %5396 = vmatprep.subr.mxu0 0.0
        %5397 = vmatpush1.msra.mxu0 0.0
        %5398 = vmatprep.subr.mxu0 0.0
        %5399 = vmatpush1.msra.mxu0 0.0
        %5400 = vmatprep.subr.mxu0 0.0
        %5401 = vmatpush1.msra.mxu0 0.0
        %5402 = vmatprep.subr.mxu0 0.0
        %5403 = vmatpush1.msra.mxu0 0.0
        %5404 = vmatprep.subr.mxu0 0.0
        %5405 = vmatpush1.msra.mxu0 0.0
        %5406 = vmatprep.subr.mxu0 0.0
        %5407 = vmatpush1.msra.mxu0 0.0
        %5408 = vmatprep.subr.mxu0 0.0
        %5409 = vmatpush1.msra.mxu0 0.0
        %5410 = vmatprep.subr.mxu0 0.0
        %5411 = vmatpush1.msra.mxu0 0.0
        %5412 = vmatprep.subr.mxu0 0.0
        %5413 = vmatpush1.msra.mxu0 0.0
        %5414 = vmatprep.mubr.f32.mxu0 0.0
        %v5415 = vand.u32 %v4814, 4294901760
        %5416 = vmatmul.mubr.f32.gmra.mrb[0].mxu0 %v5415
        %v5417 = vpop.f32.mrb[0].mxu0
        %v5418 = vadd.f32 %v5325, %v5417
        %v5419 = vpop.f32.mrb[0].mxu0
        %5420 = vmatprep.mubr.f32.mxu0 0.0
        %v5421 = vand.u32 %v4817, 4294901760
        %5422 = vmatmul.mubr.f32.gmra.mrb[0].mxu0 %v5421
        %v5423 = vpop.f32.mrb[0].mxu0
        %v5424 = vadd.f32 %v5331, %v5423
        %v5425 = vpop.f32.mrb[0].mxu0
        %5426 = vmatprep.mubr.f32.mxu0 0.0
        %v5427 = vand.u32 %v4820, 4294901760
        %5428 = vmatmul.mubr.f32.gmra.mrb[0].mxu0 %v5427
        %v5429 = vpop.f32.mrb[0].mxu0
        %v5430 = vadd.f32 %v5337, %v5429
        %v5431 = vpop.f32.mrb[0].mxu0
        %5432 = vmatprep.mubr.f32.mxu0 0.0
        %v5433 = vand.u32 %v4823, 4294901760
        %5434 = vmatmul.mubr.f32.gmra.mrb[0].mxu0 %v5433
        %v5435 = vpop.f32.mrb[0].mxu0
        %v5436 = vadd.f32 %v5343, %v5435
        %v5437 = vpop.f32.mrb[0].mxu0
        %5438 = vdwg.mxu0
        %5439 = vmatprep.subr.mxu0 0.0
        %v5440 = vand.u32 %v5418, 4294901760
        %5441 = vmatpush1.msra.mxu0 %v5440
        %5442 = vmatprep.subr.mxu0 0.0
        %v5443 = vand.u32 %v5424, 4294901760
        %5444 = vmatpush1.msra.mxu0 %v5443
        %5445 = vmatprep.subr.mxu0 0.0
        %v5446 = vand.u32 %v5430, 4294901760
        %5447 = vmatpush1.msra.mxu0 %v5446
        %5448 = vmatprep.subr.mxu0 0.0
        %v5449 = vand.u32 %v5436, 4294901760
        %5450 = vmatpush1.msra.mxu0 %v5449
        %5451 = vmatprep.subr.mxu0 0.0
        %5452 = vmatpush1.msra.mxu0 0.0
        %5453 = vmatprep.subr.mxu0 0.0
        %5454 = vmatpush1.msra.mxu0 0.0
        %5455 = vmatprep.subr.mxu0 0.0
        %5456 = vmatpush1.msra.mxu0 0.0
        %5457 = vmatprep.subr.mxu0 0.0
        %5458 = vmatpush1.msra.mxu0 0.0
        %5459 = vmatprep.subr.mxu0 0.0
        %5460 = vmatpush1.msra.mxu0 0.0
        %5461 = vmatprep.subr.mxu0 0.0
        %5462 = vmatpush1.msra.mxu0 0.0
        %5463 = vmatprep.subr.mxu0 0.0
        %5464 = vmatpush1.msra.mxu0 0.0
        %5465 = vmatprep.subr.mxu0 0.0
        %5466 = vmatpush1.msra.mxu0 0.0
        %5467 = vmatprep.subr.mxu0 0.0
        %5468 = vmatpush1.msra.mxu0 0.0
        %5469 = vmatprep.subr.mxu0 0.0
        %5470 = vmatpush1.msra.mxu0 0.0
        %5471 = vmatprep.subr.mxu0 0.0
        %5472 = vmatpush1.msra.mxu0 0.0
        %5473 = vmatprep.subr.mxu0 0.0
        %5474 = vmatpush1.msra.mxu0 0.0
        %5475 = vmatprep.subr.mxu0 0.0
        %5476 = vmatpush1.msra.mxu0 0.0
        %5477 = vmatprep.subr.mxu0 0.0
        %5478 = vmatpush1.msra.mxu0 0.0
        %5479 = vmatprep.subr.mxu0 0.0
        %5480 = vmatpush1.msra.mxu0 0.0
        %5481 = vmatprep.subr.mxu0 0.0
        %5482 = vmatpush1.msra.mxu0 0.0
        %5483 = vmatprep.subr.mxu0 0.0
        %5484 = vmatpush1.msra.mxu0 0.0
        %5485 = vmatprep.subr.mxu0 0.0
        %5486 = vmatpush1.msra.mxu0 0.0
        %5487 = vmatprep.subr.mxu0 0.0
        %5488 = vmatpush1.msra.mxu0 0.0
        %5489 = vmatprep.subr.mxu0 0.0
        %5490 = vmatpush1.msra.mxu0 0.0
        %5491 = vmatprep.subr.mxu0 0.0
        %5492 = vmatpush1.msra.mxu0 0.0
        %5493 = vmatprep.subr.mxu0 0.0
        %5494 = vmatpush1.msra.mxu0 0.0
        %5495 = vmatprep.subr.mxu0 0.0
        %5496 = vmatpush1.msra.mxu0 0.0
        %5497 = vmatprep.subr.mxu0 0.0
        %5498 = vmatpush1.msra.mxu0 0.0
        %5499 = vmatprep.subr.mxu0 0.0
        %5500 = vmatpush1.msra.mxu0 0.0
        %5501 = vmatprep.subr.mxu0 0.0
        %5502 = vmatpush1.msra.mxu0 0.0
        %5503 = vmatprep.subr.mxu0 0.0
        %5504 = vmatpush1.msra.mxu0 0.0
        %5505 = vmatprep.subr.mxu0 0.0
        %5506 = vmatpush1.msra.mxu0 0.0
        %5507 = vmatprep.mubr.f32.mxu0 0.0
        %v5508 = vand.u32 %v2538, 4294901760
        %v5509 = vsub.f32 %v2538, %v5508
        %v5510 = vand.u32 %v5509, 4294901760
        %v5511 = vsub.f32 %v5509, %v5510
        %v5512 = vand.u32 %v5511, 4294901760
        %5513 = vmatmul.mubr.f32.gmra.mrb[0].mxu0 %v5512
        %v5514 = vpop.f32.mrb[0].mxu0
        %v5515 = vadd.f32 0.0, %v5514
        %v5516 = vpop.f32.mrb[0].mxu0
        %5517 = vmatprep.mubr.f32.mxu0 0.0
        %v5518 = vand.u32 %v2541, 4294901760
        %v5519 = vsub.f32 %v2541, %v5518
        %v5520 = vand.u32 %v5519, 4294901760
        %v5521 = vsub.f32 %v5519, %v5520
        %v5522 = vand.u32 %v5521, 4294901760
        %5523 = vmatmul.mubr.f32.gmra.mrb[0].mxu0 %v5522
        %v5524 = vpop.f32.mrb[0].mxu0
        %v5525 = vadd.f32 0.0, %v5524
        %v5526 = vpop.f32.mrb[0].mxu0
        %5527 = vmatprep.mubr.f32.mxu0 0.0
        %v5528 = vand.u32 %v2544, 4294901760
        %v5529 = vsub.f32 %v2544, %v5528
        %v5530 = vand.u32 %v5529, 4294901760
        %v5531 = vsub.f32 %v5529, %v5530
        %v5532 = vand.u32 %v5531, 4294901760
        %5533 = vmatmul.mubr.f32.gmra.mrb[0].mxu0 %v5532
        %v5534 = vpop.f32.mrb[0].mxu0
        %v5535 = vadd.f32 0.0, %v5534
        %v5536 = vpop.f32.mrb[0].mxu0
        %5537 = vmatprep.mubr.f32.mxu0 0.0
        %v5538 = vand.u32 %v2547, 4294901760
        %v5539 = vsub.f32 %v2547, %v5538
        %v5540 = vand.u32 %v5539, 4294901760
        %v5541 = vsub.f32 %v5539, %v5540
        %v5542 = vand.u32 %v5541, 4294901760
        %5543 = vmatmul.mubr.f32.gmra.mrb[0].mxu0 %v5542
        %v5544 = vpop.f32.mrb[0].mxu0
        %v5545 = vadd.f32 0.0, %v5544
        %v5546 = vpop.f32.mrb[0].mxu0
        %5547 = vmatprep.mubr.f32.mxu0 0.0
        %v5548 = vand.u32 %v2550, 4294901760
        %v5549 = vsub.f32 %v2550, %v5548
        %v5550 = vand.u32 %v5549, 4294901760
        %v5551 = vsub.f32 %v5549, %v5550
        %v5552 = vand.u32 %v5551, 4294901760
        %5553 = vmatmul.mubr.f32.gmra.mrb[0].mxu0 %v5552
        %v5554 = vpop.f32.mrb[0].mxu0
        %v5555 = vadd.f32 0.0, %v5554
        %v5556 = vpop.f32.mrb[0].mxu0
        %5557 = vmatprep.mubr.f32.mxu0 0.0
        %v5558 = vand.u32 %v2553, 4294901760
        %v5559 = vsub.f32 %v2553, %v5558
        %v5560 = vand.u32 %v5559, 4294901760
        %v5561 = vsub.f32 %v5559, %v5560
        %v5562 = vand.u32 %v5561, 4294901760
        %5563 = vmatmul.mubr.f32.gmra.mrb[0].mxu0 %v5562
        %v5564 = vpop.f32.mrb[0].mxu0
        %v5565 = vadd.f32 0.0, %v5564
        %v5566 = vpop.f32.mrb[0].mxu0
        %5567 = vmatprep.mubr.f32.mxu0 0.0
        %v5568 = vand.u32 %v2556, 4294901760
        %v5569 = vsub.f32 %v2556, %v5568
        %v5570 = vand.u32 %v5569, 4294901760
        %v5571 = vsub.f32 %v5569, %v5570
        %v5572 = vand.u32 %v5571, 4294901760
        %5573 = vmatmul.mubr.f32.gmra.mrb[0].mxu0 %v5572
        %v5574 = vpop.f32.mrb[0].mxu0
        %v5575 = vadd.f32 0.0, %v5574
        %v5576 = vpop.f32.mrb[0].mxu0
        %5577 = vmatprep.mubr.f32.mxu0 0.0
        %v5578 = vand.u32 %v2559, 4294901760
        %v5579 = vsub.f32 %v2559, %v5578
        %v5580 = vand.u32 %v5579, 4294901760
        %v5581 = vsub.f32 %v5579, %v5580
        %v5582 = vand.u32 %v5581, 4294901760
        %5583 = vmatmul.mubr.f32.gmra.mrb[0].mxu0 %v5582
        %v5584 = vpop.f32.mrb[0].mxu0
        %v5585 = vadd.f32 0.0, %v5584
        %v5586 = vpop.f32.mrb[0].mxu0
        %5587 = vdwg.mxu0
        %5588 = vmatprep.subr.mxu0 0.0
        %v5589 = vand.u32 %v5418, 4294901760
        %v5590 = vsub.f32 %v5418, %v5589
        %v5591 = vand.u32 %v5590, 4294901760
        %v5592 = vsub.f32 %v5590, %v5591
        %v5593 = vand.u32 %v5592, 4294901760
        %5594 = vmatpush1.msra.mxu0 %v5593
        %5595 = vmatprep.subr.mxu0 0.0
        %v5596 = vand.u32 %v5424, 4294901760
        %v5597 = vsub.f32 %v5424, %v5596
        %v5598 = vand.u32 %v5597, 4294901760
        %v5599 = vsub.f32 %v5597, %v5598
        %v5600 = vand.u32 %v5599, 4294901760
        %5601 = vmatpush1.msra.mxu0 %v5600
        %5602 = vmatprep.subr.mxu0 0.0
        %v5603 = vand.u32 %v5430, 4294901760
        %v5604 = vsub.f32 %v5430, %v5603
        %v5605 = vand.u32 %v5604, 4294901760
        %v5606 = vsub.f32 %v5604, %v5605
        %v5607 = vand.u32 %v5606, 4294901760
        %5608 = vmatpush1.msra.mxu0 %v5607
        %5609 = vmatprep.subr.mxu0 0.0
        %v5610 = vand.u32 %v5436, 4294901760
        %v5611 = vsub.f32 %v5436, %v5610
        %v5612 = vand.u32 %v5611, 4294901760
        %v5613 = vsub.f32 %v5611, %v5612
        %v5614 = vand.u32 %v5613, 4294901760
        %5615 = vmatpush1.msra.mxu0 %v5614
        %5616 = vmatprep.subr.mxu0 0.0
        %5617 = vmatpush1.msra.mxu0 0.0
        %5618 = vmatprep.subr.mxu0 0.0
        %5619 = vmatpush1.msra.mxu0 0.0
        %5620 = vmatprep.subr.mxu0 0.0
        %5621 = vmatpush1.msra.mxu0 0.0
        %5622 = vmatprep.subr.mxu0 0.0
        %5623 = vmatpush1.msra.mxu0 0.0
        %5624 = vmatprep.subr.mxu0 0.0
        %5625 = vmatpush1.msra.mxu0 0.0
        %5626 = vmatprep.subr.mxu0 0.0
        %5627 = vmatpush1.msra.mxu0 0.0
        %5628 = vmatprep.subr.mxu0 0.0
        %5629 = vmatpush1.msra.mxu0 0.0
        %5630 = vmatprep.subr.mxu0 0.0
        %5631 = vmatpush1.msra.mxu0 0.0
        %5632 = vmatprep.subr.mxu0 0.0
        %5633 = vmatpush1.msra.mxu0 0.0
        %5634 = vmatprep.subr.mxu0 0.0
        %5635 = vmatpush1.msra.mxu0 0.0
        %5636 = vmatprep.subr.mxu0 0.0
        %5637 = vmatpush1.msra.mxu0 0.0
        %5638 = vmatprep.subr.mxu0 0.0
        %5639 = vmatpush1.msra.mxu0 0.0
        %5640 = vmatprep.subr.mxu0 0.0
        %5641 = vmatpush1.msra.mxu0 0.0
        %5642 = vmatprep.subr.mxu0 0.0
        %5643 = vmatpush1.msra.mxu0 0.0
        %5644 = vmatprep.subr.mxu0 0.0
        %5645 = vmatpush1.msra.mxu0 0.0
        %5646 = vmatprep.subr.mxu0 0.0
        %5647 = vmatpush1.msra.mxu0 0.0
        %5648 = vmatprep.subr.mxu0 0.0
        %5649 = vmatpush1.msra.mxu0 0.0
        %5650 = vmatprep.subr.mxu0 0.0
        %5651 = vmatpush1.msra.mxu0 0.0
        %5652 = vmatprep.subr.mxu0 0.0
        %5653 = vmatpush1.msra.mxu0 0.0
        %5654 = vmatprep.subr.mxu0 0.0
        %5655 = vmatpush1.msra.mxu0 0.0
        %5656 = vmatprep.subr.mxu0 0.0
        %5657 = vmatpush1.msra.mxu0 0.0
        %5658 = vmatprep.subr.mxu0 0.0
        %5659 = vmatpush1.msra.mxu0 0.0
        %5660 = vmatprep.subr.mxu0 0.0
        %5661 = vmatpush1.msra.mxu0 0.0
        %5662 = vmatprep.subr.mxu0 0.0
        %5663 = vmatpush1.msra.mxu0 0.0
        %5664 = vmatprep.subr.mxu0 0.0
        %5665 = vmatpush1.msra.mxu0 0.0
        %5666 = vmatprep.subr.mxu0 0.0
        %5667 = vmatpush1.msra.mxu0 0.0
        %5668 = vmatprep.subr.mxu0 0.0
        %5669 = vmatpush1.msra.mxu0 0.0
        %5670 = vmatprep.subr.mxu0 0.0
        %5671 = vmatpush1.msra.mxu0 0.0
        %5672 = vmatprep.mubr.f32.mxu0 0.0
        %v5673 = vand.u32 %v2538, 4294901760
        %5674 = vmatmul.mubr.f32.gmra.mrb[0].mxu0 %v5673
        %v5675 = vpop.f32.mrb[0].mxu0
        %v5676 = vadd.f32 %v5515, %v5675
        %v5677 = vpop.f32.mrb[0].mxu0
        %5678 = vmatprep.mubr.f32.mxu0 0.0
        %v5679 = vand.u32 %v2541, 4294901760
        %5680 = vmatmul.mubr.f32.gmra.mrb[0].mxu0 %v5679
        %v5681 = vpop.f32.mrb[0].mxu0
        %v5682 = vadd.f32 %v5525, %v5681
        %v5683 = vpop.f32.mrb[0].mxu0
        %5684 = vmatprep.mubr.f32.mxu0 0.0
        %v5685 = vand.u32 %v2544, 4294901760
        %5686 = vmatmul.mubr.f32.gmra.mrb[0].mxu0 %v5685
        %v5687 = vpop.f32.mrb[0].mxu0
        %v5688 = vadd.f32 %v5535, %v5687
        %v5689 = vpop.f32.mrb[0].mxu0
        %5690 = vmatprep.mubr.f32.mxu0 0.0
        %v5691 = vand.u32 %v2547, 4294901760
        %5692 = vmatmul.mubr.f32.gmra.mrb[0].mxu0 %v5691
        %v5693 = vpop.f32.mrb[0].mxu0
        %v5694 = vadd.f32 %v5545, %v5693
        %v5695 = vpop.f32.mrb[0].mxu0
        %5696 = vmatprep.mubr.f32.mxu0 0.0
        %v5697 = vand.u32 %v2550, 4294901760
        %5698 = vmatmul.mubr.f32.gmra.mrb[0].mxu0 %v5697
        %v5699 = vpop.f32.mrb[0].mxu0
        %v5700 = vadd.f32 %v5555, %v5699
        %v5701 = vpop.f32.mrb[0].mxu0
        %5702 = vmatprep.mubr.f32.mxu0 0.0
        %v5703 = vand.u32 %v2553, 4294901760
        %5704 = vmatmul.mubr.f32.gmra.mrb[0].mxu0 %v5703
        %v5705 = vpop.f32.mrb[0].mxu0
        %v5706 = vadd.f32 %v5565, %v5705
        %v5707 = vpop.f32.mrb[0].mxu0
        %5708 = vmatprep.mubr.f32.mxu0 0.0
        %v5709 = vand.u32 %v2556, 4294901760
        %5710 = vmatmul.mubr.f32.gmra.mrb[0].mxu0 %v5709
        %v5711 = vpop.f32.mrb[0].mxu0
        %v5712 = vadd.f32 %v5575, %v5711
        %v5713 = vpop.f32.mrb[0].mxu0
        %5714 = vmatprep.mubr.f32.mxu0 0.0
        %v5715 = vand.u32 %v2559, 4294901760
        %5716 = vmatmul.mubr.f32.gmra.mrb[0].mxu0 %v5715
        %v5717 = vpop.f32.mrb[0].mxu0
        %v5718 = vadd.f32 %v5585, %v5717
        %v5719 = vpop.f32.mrb[0].mxu0
        %5720 = vdwg.mxu0
        %5721 = vmatprep.subr.mxu0 0.0
        %v5722 = vand.u32 %v5418, 4294901760
        %v5723 = vsub.f32 %v5418, %v5722
        %5724 = vmatpush1.msra.mxu0 %v5723
        %5725 = vmatprep.subr.mxu0 0.0
        %v5726 = vand.u32 %v5424, 4294901760
        %v5727 = vsub.f32 %v5424, %v5726
        %5728 = vmatpush1.msra.mxu0 %v5727
        %5729 = vmatprep.subr.mxu0 0.0
        %v5730 = vand.u32 %v5430, 4294901760
        %v5731 = vsub.f32 %v5430, %v5730
        %5732 = vmatpush1.msra.mxu0 %v5731
        %5733 = vmatprep.subr.mxu0 0.0
        %v5734 = vand.u32 %v5436, 4294901760
        %v5735 = vsub.f32 %v5436, %v5734
        %5736 = vmatpush1.msra.mxu0 %v5735
        %5737 = vmatprep.subr.mxu0 0.0
        %5738 = vmatpush1.msra.mxu0 0.0
        %5739 = vmatprep.subr.mxu0 0.0
        %5740 = vmatpush1.msra.mxu0 0.0
        %5741 = vmatprep.subr.mxu0 0.0
        %5742 = vmatpush1.msra.mxu0 0.0
        %5743 = vmatprep.subr.mxu0 0.0
        %5744 = vmatpush1.msra.mxu0 0.0
        %5745 = vmatprep.subr.mxu0 0.0
        %5746 = vmatpush1.msra.mxu0 0.0
        %5747 = vmatprep.subr.mxu0 0.0
        %5748 = vmatpush1.msra.mxu0 0.0
        %5749 = vmatprep.subr.mxu0 0.0
        %5750 = vmatpush1.msra.mxu0 0.0
        %5751 = vmatprep.subr.mxu0 0.0
        %5752 = vmatpush1.msra.mxu0 0.0
        %5753 = vmatprep.subr.mxu0 0.0
        %5754 = vmatpush1.msra.mxu0 0.0
        %5755 = vmatprep.subr.mxu0 0.0
        %5756 = vmatpush1.msra.mxu0 0.0
        %5757 = vmatprep.subr.mxu0 0.0
        %5758 = vmatpush1.msra.mxu0 0.0
        %5759 = vmatprep.subr.mxu0 0.0
        %5760 = vmatpush1.msra.mxu0 0.0
        %5761 = vmatprep.subr.mxu0 0.0
        %5762 = vmatpush1.msra.mxu0 0.0
        %5763 = vmatprep.subr.mxu0 0.0
        %5764 = vmatpush1.msra.mxu0 0.0
        %5765 = vmatprep.subr.mxu0 0.0
        %5766 = vmatpush1.msra.mxu0 0.0
        %5767 = vmatprep.subr.mxu0 0.0
        %5768 = vmatpush1.msra.mxu0 0.0
        %5769 = vmatprep.subr.mxu0 0.0
        %5770 = vmatpush1.msra.mxu0 0.0
        %5771 = vmatprep.subr.mxu0 0.0
        %5772 = vmatpush1.msra.mxu0 0.0
        %5773 = vmatprep.subr.mxu0 0.0
        %5774 = vmatpush1.msra.mxu0 0.0
        %5775 = vmatprep.subr.mxu0 0.0
        %5776 = vmatpush1.msra.mxu0 0.0
        %5777 = vmatprep.subr.mxu0 0.0
        %5778 = vmatpush1.msra.mxu0 0.0
        %5779 = vmatprep.subr.mxu0 0.0
        %5780 = vmatpush1.msra.mxu0 0.0
        %5781 = vmatprep.subr.mxu0 0.0
        %5782 = vmatpush1.msra.mxu0 0.0
        %5783 = vmatprep.subr.mxu0 0.0
        %5784 = vmatpush1.msra.mxu0 0.0
        %5785 = vmatprep.subr.mxu0 0.0
        %5786 = vmatpush1.msra.mxu0 0.0
        %5787 = vmatprep.subr.mxu0 0.0
        %5788 = vmatpush1.msra.mxu0 0.0
        %5789 = vmatprep.subr.mxu0 0.0
        %5790 = vmatpush1.msra.mxu0 0.0
        %5791 = vmatprep.subr.mxu0 0.0
        %5792 = vmatpush1.msra.mxu0 0.0
        %5793 = vmatprep.mubr.f32.mxu0 0.0
        %v5794 = vand.u32 %v2538, 4294901760
        %v5795 = vsub.f32 %v2538, %v5794
        %5796 = vmatmul.mubr.f32.gmra.mrb[0].mxu0 %v5795
        %v5797 = vpop.f32.mrb[0].mxu0
        %v5798 = vadd.f32 %v5676, %v5797
        %v5799 = vpop.f32.mrb[0].mxu0
        %5800 = vmatprep.mubr.f32.mxu0 0.0
        %v5801 = vand.u32 %v2541, 4294901760
        %v5802 = vsub.f32 %v2541, %v5801
        %5803 = vmatmul.mubr.f32.gmra.mrb[0].mxu0 %v5802
        %v5804 = vpop.f32.mrb[0].mxu0
        %v5805 = vadd.f32 %v5682, %v5804
        %v5806 = vpop.f32.mrb[0].mxu0
        %5807 = vmatprep.mubr.f32.mxu0 0.0
        %v5808 = vand.u32 %v2544, 4294901760
        %v5809 = vsub.f32 %v2544, %v5808
        %5810 = vmatmul.mubr.f32.gmra.mrb[0].mxu0 %v5809
        %v5811 = vpop.f32.mrb[0].mxu0
        %v5812 = vadd.f32 %v5688, %v5811
        %v5813 = vpop.f32.mrb[0].mxu0
        %5814 = vmatprep.mubr.f32.mxu0 0.0
        %v5815 = vand.u32 %v2547, 4294901760
        %v5816 = vsub.f32 %v2547, %v5815
        %5817 = vmatmul.mubr.f32.gmra.mrb[0].mxu0 %v5816
        %v5818 = vpop.f32.mrb[0].mxu0
        %v5819 = vadd.f32 %v5694, %v5818
        %v5820 = vpop.f32.mrb[0].mxu0
        %5821 = vmatprep.mubr.f32.mxu0 0.0
        %v5822 = vand.u32 %v2550, 4294901760
        %v5823 = vsub.f32 %v2550, %v5822
        %5824 = vmatmul.mubr.f32.gmra.mrb[0].mxu0 %v5823
        %v5825 = vpop.f32.mrb[0].mxu0
        %v5826 = vadd.f32 %v5700, %v5825
        %v5827 = vpop.f32.mrb[0].mxu0
        %5828 = vmatprep.mubr.f32.mxu0 0.0
        %v5829 = vand.u32 %v2553, 4294901760
        %v5830 = vsub.f32 %v2553, %v5829
        %5831 = vmatmul.mubr.f32.gmra.mrb[0].mxu0 %v5830
        %v5832 = vpop.f32.mrb[0].mxu0
        %v5833 = vadd.f32 %v5706, %v5832
        %v5834 = vpop.f32.mrb[0].mxu0
        %5835 = vmatprep.mubr.f32.mxu0 0.0
        %v5836 = vand.u32 %v2556, 4294901760
        %v5837 = vsub.f32 %v2556, %v5836
        %5838 = vmatmul.mubr.f32.gmra.mrb[0].mxu0 %v5837
        %v5839 = vpop.f32.mrb[0].mxu0
        %v5840 = vadd.f32 %v5712, %v5839
        %v5841 = vpop.f32.mrb[0].mxu0
        %5842 = vmatprep.mubr.f32.mxu0 0.0
        %v5843 = vand.u32 %v2559, 4294901760
        %v5844 = vsub.f32 %v2559, %v5843
        %5845 = vmatmul.mubr.f32.gmra.mrb[0].mxu0 %v5844
        %v5846 = vpop.f32.mrb[0].mxu0
        %v5847 = vadd.f32 %v5718, %v5846
        %v5848 = vpop.f32.mrb[0].mxu0
        %5849 = vdwg.mxu0
        %5850 = vmatprep.subr.mxu0 0.0
        %v5851 = vand.u32 %v5418, 4294901760
        %5852 = vmatpush1.msra.mxu0 %v5851
        %5853 = vmatprep.subr.mxu0 0.0
        %v5854 = vand.u32 %v5424, 4294901760
        %5855 = vmatpush1.msra.mxu0 %v5854
        %5856 = vmatprep.subr.mxu0 0.0
        %v5857 = vand.u32 %v5430, 4294901760
        %5858 = vmatpush1.msra.mxu0 %v5857
        %5859 = vmatprep.subr.mxu0 0.0
        %v5860 = vand.u32 %v5436, 4294901760
        %5861 = vmatpush1.msra.mxu0 %v5860
        %5862 = vmatprep.subr.mxu0 0.0
        %5863 = vmatpush1.msra.mxu0 0.0
        %5864 = vmatprep.subr.mxu0 0.0
        %5865 = vmatpush1.msra.mxu0 0.0
        %5866 = vmatprep.subr.mxu0 0.0
        %5867 = vmatpush1.msra.mxu0 0.0
        %5868 = vmatprep.subr.mxu0 0.0
        %5869 = vmatpush1.msra.mxu0 0.0
        %5870 = vmatprep.subr.mxu0 0.0
        %5871 = vmatpush1.msra.mxu0 0.0
        %5872 = vmatprep.subr.mxu0 0.0
        %5873 = vmatpush1.msra.mxu0 0.0
        %5874 = vmatprep.subr.mxu0 0.0
        %5875 = vmatpush1.msra.mxu0 0.0
        %5876 = vmatprep.subr.mxu0 0.0
        %5877 = vmatpush1.msra.mxu0 0.0
        %5878 = vmatprep.subr.mxu0 0.0
        %5879 = vmatpush1.msra.mxu0 0.0
        %5880 = vmatprep.subr.mxu0 0.0
        %5881 = vmatpush1.msra.mxu0 0.0
        %5882 = vmatprep.subr.mxu0 0.0
        %5883 = vmatpush1.msra.mxu0 0.0
        %5884 = vmatprep.subr.mxu0 0.0
        %5885 = vmatpush1.msra.mxu0 0.0
        %5886 = vmatprep.subr.mxu0 0.0
        %5887 = vmatpush1.msra.mxu0 0.0
        %5888 = vmatprep.subr.mxu0 0.0
        %5889 = vmatpush1.msra.mxu0 0.0
        %5890 = vmatprep.subr.mxu0 0.0
        %5891 = vmatpush1.msra.mxu0 0.0
        %5892 = vmatprep.subr.mxu0 0.0
        %5893 = vmatpush1.msra.mxu0 0.0
        %5894 = vmatprep.subr.mxu0 0.0
        %5895 = vmatpush1.msra.mxu0 0.0
        %5896 = vmatprep.subr.mxu0 0.0
        %5897 = vmatpush1.msra.mxu0 0.0
        %5898 = vmatprep.subr.mxu0 0.0
        %5899 = vmatpush1.msra.mxu0 0.0
        %5900 = vmatprep.subr.mxu0 0.0
        %5901 = vmatpush1.msra.mxu0 0.0
        %5902 = vmatprep.subr.mxu0 0.0
        %5903 = vmatpush1.msra.mxu0 0.0
        %5904 = vmatprep.subr.mxu0 0.0
        %5905 = vmatpush1.msra.mxu0 0.0
        %5906 = vmatprep.subr.mxu0 0.0
        %5907 = vmatpush1.msra.mxu0 0.0
        %5908 = vmatprep.subr.mxu0 0.0
        %5909 = vmatpush1.msra.mxu0 0.0
        %5910 = vmatprep.subr.mxu0 0.0
        %5911 = vmatpush1.msra.mxu0 0.0
        %5912 = vmatprep.subr.mxu0 0.0
        %5913 = vmatpush1.msra.mxu0 0.0
        %5914 = vmatprep.subr.mxu0 0.0
        %5915 = vmatpush1.msra.mxu0 0.0
        %5916 = vmatprep.subr.mxu0 0.0
        %5917 = vmatpush1.msra.mxu0 0.0
        %5918 = vmatprep.mubr.f32.mxu0 0.0
        %v5919 = vand.u32 %v2538, 4294901760
        %v5920 = vsub.f32 %v2538, %v5919
        %v5921 = vand.u32 %v5920, 4294901760
        %5922 = vmatmul.mubr.f32.gmra.mrb[0].mxu0 %v5921
        %v5923 = vpop.f32.mrb[0].mxu0
        %v5924 = vadd.f32 %v5798, %v5923
        %v5925 = vpop.f32.mrb[0].mxu0
        %5926 = vmatprep.mubr.f32.mxu0 0.0
        %v5927 = vand.u32 %v2541, 4294901760
        %v5928 = vsub.f32 %v2541, %v5927
        %v5929 = vand.u32 %v5928, 4294901760
        %5930 = vmatmul.mubr.f32.gmra.mrb[0].mxu0 %v5929
        %v5931 = vpop.f32.mrb[0].mxu0
        %v5932 = vadd.f32 %v5805, %v5931
        %v5933 = vpop.f32.mrb[0].mxu0
        %5934 = vmatprep.mubr.f32.mxu0 0.0
        %v5935 = vand.u32 %v2544, 4294901760
        %v5936 = vsub.f32 %v2544, %v5935
        %v5937 = vand.u32 %v5936, 4294901760
        %5938 = vmatmul.mubr.f32.gmra.mrb[0].mxu0 %v5937
        %v5939 = vpop.f32.mrb[0].mxu0
        %v5940 = vadd.f32 %v5812, %v5939
        %v5941 = vpop.f32.mrb[0].mxu0
        %5942 = vmatprep.mubr.f32.mxu0 0.0
        %v5943 = vand.u32 %v2547, 4294901760
        %v5944 = vsub.f32 %v2547, %v5943
        %v5945 = vand.u32 %v5944, 4294901760
        %5946 = vmatmul.mubr.f32.gmra.mrb[0].mxu0 %v5945
        %v5947 = vpop.f32.mrb[0].mxu0
        %v5948 = vadd.f32 %v5819, %v5947
        %v5949 = vpop.f32.mrb[0].mxu0
        %5950 = vmatprep.mubr.f32.mxu0 0.0
        %v5951 = vand.u32 %v2550, 4294901760
        %v5952 = vsub.f32 %v2550, %v5951
        %v5953 = vand.u32 %v5952, 4294901760
        %5954 = vmatmul.mubr.f32.gmra.mrb[0].mxu0 %v5953
        %v5955 = vpop.f32.mrb[0].mxu0
        %v5956 = vadd.f32 %v5826, %v5955
        %v5957 = vpop.f32.mrb[0].mxu0
        %5958 = vmatprep.mubr.f32.mxu0 0.0
        %v5959 = vand.u32 %v2553, 4294901760
        %v5960 = vsub.f32 %v2553, %v5959
        %v5961 = vand.u32 %v5960, 4294901760
        %5962 = vmatmul.mubr.f32.gmra.mrb[0].mxu0 %v5961
        %v5963 = vpop.f32.mrb[0].mxu0
        %v5964 = vadd.f32 %v5833, %v5963
        %v5965 = vpop.f32.mrb[0].mxu0
        %5966 = vmatprep.mubr.f32.mxu0 0.0
        %v5967 = vand.u32 %v2556, 4294901760
        %v5968 = vsub.f32 %v2556, %v5967
        %v5969 = vand.u32 %v5968, 4294901760
        %5970 = vmatmul.mubr.f32.gmra.mrb[0].mxu0 %v5969
        %v5971 = vpop.f32.mrb[0].mxu0
        %v5972 = vadd.f32 %v5840, %v5971
        %v5973 = vpop.f32.mrb[0].mxu0
        %5974 = vmatprep.mubr.f32.mxu0 0.0
        %v5975 = vand.u32 %v2559, 4294901760
        %v5976 = vsub.f32 %v2559, %v5975
        %v5977 = vand.u32 %v5976, 4294901760
        %5978 = vmatmul.mubr.f32.gmra.mrb[0].mxu0 %v5977
        %v5979 = vpop.f32.mrb[0].mxu0
        %v5980 = vadd.f32 %v5847, %v5979
        %v5981 = vpop.f32.mrb[0].mxu0
        %5982 = vdwg.mxu0
        %5983 = vmatprep.subr.mxu0 0.0
        %v5984 = vand.u32 %v5418, 4294901760
        %v5985 = vsub.f32 %v5418, %v5984
        %v5986 = vand.u32 %v5985, 4294901760
        %5987 = vmatpush1.msra.mxu0 %v5986
        %5988 = vmatprep.subr.mxu0 0.0
        %v5989 = vand.u32 %v5424, 4294901760
        %v5990 = vsub.f32 %v5424, %v5989
        %v5991 = vand.u32 %v5990, 4294901760
        %5992 = vmatpush1.msra.mxu0 %v5991
        %5993 = vmatprep.subr.mxu0 0.0
        %v5994 = vand.u32 %v5430, 4294901760
        %v5995 = vsub.f32 %v5430, %v5994
        %v5996 = vand.u32 %v5995, 4294901760
        %5997 = vmatpush1.msra.mxu0 %v5996
        %5998 = vmatprep.subr.mxu0 0.0
        %v5999 = vand.u32 %v5436, 4294901760
        %v6000 = vsub.f32 %v5436, %v5999
        %v6001 = vand.u32 %v6000, 4294901760
        %6002 = vmatpush1.msra.mxu0 %v6001
        %6003 = vmatprep.subr.mxu0 0.0
        %6004 = vmatpush1.msra.mxu0 0.0
        %6005 = vmatprep.subr.mxu0 0.0
        %6006 = vmatpush1.msra.mxu0 0.0
        %6007 = vmatprep.subr.mxu0 0.0
        %6008 = vmatpush1.msra.mxu0 0.0
        %6009 = vmatprep.subr.mxu0 0.0
        %6010 = vmatpush1.msra.mxu0 0.0
        %6011 = vmatprep.subr.mxu0 0.0
        %6012 = vmatpush1.msra.mxu0 0.0
        %6013 = vmatprep.subr.mxu0 0.0
        %6014 = vmatpush1.msra.mxu0 0.0
        %6015 = vmatprep.subr.mxu0 0.0
        %6016 = vmatpush1.msra.mxu0 0.0
        %6017 = vmatprep.subr.mxu0 0.0
        %6018 = vmatpush1.msra.mxu0 0.0
        %6019 = vmatprep.subr.mxu0 0.0
        %6020 = vmatpush1.msra.mxu0 0.0
        %6021 = vmatprep.subr.mxu0 0.0
        %6022 = vmatpush1.msra.mxu0 0.0
        %6023 = vmatprep.subr.mxu0 0.0
        %6024 = vmatpush1.msra.mxu0 0.0
        %6025 = vmatprep.subr.mxu0 0.0
        %6026 = vmatpush1.msra.mxu0 0.0
        %6027 = vmatprep.subr.mxu0 0.0
        %6028 = vmatpush1.msra.mxu0 0.0
        %6029 = vmatprep.subr.mxu0 0.0
        %6030 = vmatpush1.msra.mxu0 0.0
        %6031 = vmatprep.subr.mxu0 0.0
        %6032 = vmatpush1.msra.mxu0 0.0
        %6033 = vmatprep.subr.mxu0 0.0
        %6034 = vmatpush1.msra.mxu0 0.0
        %6035 = vmatprep.subr.mxu0 0.0
        %6036 = vmatpush1.msra.mxu0 0.0
        %6037 = vmatprep.subr.mxu0 0.0
        %6038 = vmatpush1.msra.mxu0 0.0
        %6039 = vmatprep.subr.mxu0 0.0
        %6040 = vmatpush1.msra.mxu0 0.0
        %6041 = vmatprep.subr.mxu0 0.0
        %6042 = vmatpush1.msra.mxu0 0.0
        %6043 = vmatprep.subr.mxu0 0.0
        %6044 = vmatpush1.msra.mxu0 0.0
        %6045 = vmatprep.subr.mxu0 0.0
        %6046 = vmatpush1.msra.mxu0 0.0
        %6047 = vmatprep.subr.mxu0 0.0
        %6048 = vmatpush1.msra.mxu0 0.0
        %6049 = vmatprep.subr.mxu0 0.0
        %6050 = vmatpush1.msra.mxu0 0.0
        %6051 = vmatprep.subr.mxu0 0.0
        %6052 = vmatpush1.msra.mxu0 0.0
        %6053 = vmatprep.subr.mxu0 0.0
        %6054 = vmatpush1.msra.mxu0 0.0
        %6055 = vmatprep.subr.mxu0 0.0
        %6056 = vmatpush1.msra.mxu0 0.0
        %6057 = vmatprep.subr.mxu0 0.0
        %6058 = vmatpush1.msra.mxu0 0.0
        %6059 = vmatprep.mubr.f32.mxu0 0.0
        %v6060 = vand.u32 %v2538, 4294901760
        %6061 = vmatmul.mubr.f32.gmra.mrb[0].mxu0 %v6060
        %v6062 = vpop.f32.mrb[0].mxu0
        %v6063 = vadd.f32 %v5924, %v6062
        %v6064 = vpop.f32.mrb[0].mxu0
        %6065 = vmatprep.mubr.f32.mxu0 0.0
        %v6066 = vand.u32 %v2541, 4294901760
        %6067 = vmatmul.mubr.f32.gmra.mrb[0].mxu0 %v6066
        %v6068 = vpop.f32.mrb[0].mxu0
        %v6069 = vadd.f32 %v5932, %v6068
        %v6070 = vpop.f32.mrb[0].mxu0
        %6071 = vmatprep.mubr.f32.mxu0 0.0
        %v6072 = vand.u32 %v2544, 4294901760
        %6073 = vmatmul.mubr.f32.gmra.mrb[0].mxu0 %v6072
        %v6074 = vpop.f32.mrb[0].mxu0
        %v6075 = vadd.f32 %v5940, %v6074
        %v6076 = vpop.f32.mrb[0].mxu0
        %6077 = vmatprep.mubr.f32.mxu0 0.0
        %v6078 = vand.u32 %v2547, 4294901760
        %6079 = vmatmul.mubr.f32.gmra.mrb[0].mxu0 %v6078
        %v6080 = vpop.f32.mrb[0].mxu0
        %v6081 = vadd.f32 %v5948, %v6080
        %v6082 = vpop.f32.mrb[0].mxu0
        %6083 = vmatprep.mubr.f32.mxu0 0.0
        %v6084 = vand.u32 %v2550, 4294901760
        %6085 = vmatmul.mubr.f32.gmra.mrb[0].mxu0 %v6084
        %v6086 = vpop.f32.mrb[0].mxu0
        %v6087 = vadd.f32 %v5956, %v6086
        %v6088 = vpop.f32.mrb[0].mxu0
        %6089 = vmatprep.mubr.f32.mxu0 0.0
        %v6090 = vand.u32 %v2553, 4294901760
        %6091 = vmatmul.mubr.f32.gmra.mrb[0].mxu0 %v6090
        %v6092 = vpop.f32.mrb[0].mxu0
        %v6093 = vadd.f32 %v5964, %v6092
        %v6094 = vpop.f32.mrb[0].mxu0
        %6095 = vmatprep.mubr.f32.mxu0 0.0
        %v6096 = vand.u32 %v2556, 4294901760
        %6097 = vmatmul.mubr.f32.gmra.mrb[0].mxu0 %v6096
        %v6098 = vpop.f32.mrb[0].mxu0
        %v6099 = vadd.f32 %v5972, %v6098
        %v6100 = vpop.f32.mrb[0].mxu0
        %6101 = vmatprep.mubr.f32.mxu0 0.0
        %v6102 = vand.u32 %v2559, 4294901760
        %6103 = vmatmul.mubr.f32.gmra.mrb[0].mxu0 %v6102
        %v6104 = vpop.f32.mrb[0].mxu0
        %v6105 = vadd.f32 %v5980, %v6104
        %v6106 = vpop.f32.mrb[0].mxu0
        %6107 = vdwg.mxu0
        %6108 = vmatprep.subr.mxu0 0.0
        %v6109 = vand.u32 %v5418, 4294901760
        %6110 = vmatpush1.msra.mxu0 %v6109
        %6111 = vmatprep.subr.mxu0 0.0
        %v6112 = vand.u32 %v5424, 4294901760
        %6113 = vmatpush1.msra.mxu0 %v6112
        %6114 = vmatprep.subr.mxu0 0.0
        %v6115 = vand.u32 %v5430, 4294901760
        %6116 = vmatpush1.msra.mxu0 %v6115
        %6117 = vmatprep.subr.mxu0 0.0
        %v6118 = vand.u32 %v5436, 4294901760
        %6119 = vmatpush1.msra.mxu0 %v6118
        %6120 = vmatprep.subr.mxu0 0.0
        %6121 = vmatpush1.msra.mxu0 0.0
        %6122 = vmatprep.subr.mxu0 0.0
        %6123 = vmatpush1.msra.mxu0 0.0
        %6124 = vmatprep.subr.mxu0 0.0
        %6125 = vmatpush1.msra.mxu0 0.0
        %6126 = vmatprep.subr.mxu0 0.0
        %6127 = vmatpush1.msra.mxu0 0.0
        %6128 = vmatprep.subr.mxu0 0.0
        %6129 = vmatpush1.msra.mxu0 0.0
        %6130 = vmatprep.subr.mxu0 0.0
        %6131 = vmatpush1.msra.mxu0 0.0
        %6132 = vmatprep.subr.mxu0 0.0
        %6133 = vmatpush1.msra.mxu0 0.0
        %6134 = vmatprep.subr.mxu0 0.0
        %6135 = vmatpush1.msra.mxu0 0.0
        %6136 = vmatprep.subr.mxu0 0.0
        %6137 = vmatpush1.msra.mxu0 0.0
        %6138 = vmatprep.subr.mxu0 0.0
        %6139 = vmatpush1.msra.mxu0 0.0
        %6140 = vmatprep.subr.mxu0 0.0
        %6141 = vmatpush1.msra.mxu0 0.0
        %6142 = vmatprep.subr.mxu0 0.0
        %6143 = vmatpush1.msra.mxu0 0.0
        %6144 = vmatprep.subr.mxu0 0.0
        %6145 = vmatpush1.msra.mxu0 0.0
        %6146 = vmatprep.subr.mxu0 0.0
        %6147 = vmatpush1.msra.mxu0 0.0
        %6148 = vmatprep.subr.mxu0 0.0
        %6149 = vmatpush1.msra.mxu0 0.0
        %6150 = vmatprep.subr.mxu0 0.0
        %6151 = vmatpush1.msra.mxu0 0.0
        %6152 = vmatprep.subr.mxu0 0.0
        %6153 = vmatpush1.msra.mxu0 0.0
        %6154 = vmatprep.subr.mxu0 0.0
        %6155 = vmatpush1.msra.mxu0 0.0
        %6156 = vmatprep.subr.mxu0 0.0
        %6157 = vmatpush1.msra.mxu0 0.0
        %6158 = vmatprep.subr.mxu0 0.0
        %6159 = vmatpush1.msra.mxu0 0.0
        %6160 = vmatprep.subr.mxu0 0.0
        %6161 = vmatpush1.msra.mxu0 0.0
        %6162 = vmatprep.subr.mxu0 0.0
        %6163 = vmatpush1.msra.mxu0 0.0
        %6164 = vmatprep.subr.mxu0 0.0
        %6165 = vmatpush1.msra.mxu0 0.0
        %6166 = vmatprep.subr.mxu0 0.0
        %6167 = vmatpush1.msra.mxu0 0.0
        %6168 = vmatprep.subr.mxu0 0.0
        %6169 = vmatpush1.msra.mxu0 0.0
        %6170 = vmatprep.subr.mxu0 0.0
        %6171 = vmatpush1.msra.mxu0 0.0
        %6172 = vmatprep.subr.mxu0 0.0
        %6173 = vmatpush1.msra.mxu0 0.0
        %6174 = vmatprep.subr.mxu0 0.0
        %6175 = vmatpush1.msra.mxu0 0.0
        %6176 = vmatprep.mubr.f32.mxu0 0.0
        %v6177 = vand.u32 %v2538, 4294901760
        %6178 = vmatmul.mubr.f32.gmra.mrb[0].mxu0 %v6177
        %v6179 = vpop.f32.mrb[0].mxu0
        %v6180 = vadd.f32 %v6063, %v6179
        %v6181 = vpop.f32.mrb[0].mxu0
        %6182 = vmatprep.mubr.f32.mxu0 0.0
        %v6183 = vand.u32 %v2541, 4294901760
        %6184 = vmatmul.mubr.f32.gmra.mrb[0].mxu0 %v6183
        %v6185 = vpop.f32.mrb[0].mxu0
        %v6186 = vadd.f32 %v6069, %v6185
        %v6187 = vpop.f32.mrb[0].mxu0
        %6188 = vmatprep.mubr.f32.mxu0 0.0
        %v6189 = vand.u32 %v2544, 4294901760
        %6190 = vmatmul.mubr.f32.gmra.mrb[0].mxu0 %v6189
        %v6191 = vpop.f32.mrb[0].mxu0
        %v6192 = vadd.f32 %v6075, %v6191
        %v6193 = vpop.f32.mrb[0].mxu0
        %6194 = vmatprep.mubr.f32.mxu0 0.0
        %v6195 = vand.u32 %v2547, 4294901760
        %6196 = vmatmul.mubr.f32.gmra.mrb[0].mxu0 %v6195
        %v6197 = vpop.f32.mrb[0].mxu0
        %v6198 = vadd.f32 %v6081, %v6197
        %v6199 = vpop.f32.mrb[0].mxu0
        %6200 = vmatprep.mubr.f32.mxu0 0.0
        %v6201 = vand.u32 %v2550, 4294901760
        %6202 = vmatmul.mubr.f32.gmra.mrb[0].mxu0 %v6201
        %v6203 = vpop.f32.mrb[0].mxu0
        %v6204 = vadd.f32 %v6087, %v6203
        %v6205 = vpop.f32.mrb[0].mxu0
        %6206 = vmatprep.mubr.f32.mxu0 0.0
        %v6207 = vand.u32 %v2553, 4294901760
        %6208 = vmatmul.mubr.f32.gmra.mrb[0].mxu0 %v6207
        %v6209 = vpop.f32.mrb[0].mxu0
        %v6210 = vadd.f32 %v6093, %v6209
        %v6211 = vpop.f32.mrb[0].mxu0
        %6212 = vmatprep.mubr.f32.mxu0 0.0
        %v6213 = vand.u32 %v2556, 4294901760
        %6214 = vmatmul.mubr.f32.gmra.mrb[0].mxu0 %v6213
        %v6215 = vpop.f32.mrb[0].mxu0
        %v6216 = vadd.f32 %v6099, %v6215
        %v6217 = vpop.f32.mrb[0].mxu0
        %6218 = vmatprep.mubr.f32.mxu0 0.0
        %v6219 = vand.u32 %v2559, 4294901760
        %6220 = vmatmul.mubr.f32.gmra.mrb[0].mxu0 %v6219
        %v6221 = vpop.f32.mrb[0].mxu0
        %v6222 = vadd.f32 %v6105, %v6221
        %v6223 = vpop.f32.mrb[0].mxu0
        %6224 = vdwg.mxu0
        %s6225 = scalar_lea.vmem %s402, 64 [#allocation13]
        %6226 = vst [vmem:[%s6225] sm:$0xff] %v6180
        %6227 = vst [vmem:[%s6225 + $0x8] sm:$0xff] %v6186
        %6228 = vst [vmem:[%s6225 + $0x10] sm:$0xff] %v6192
        %6229 = vst [vmem:[%s6225 + $0x18] sm:$0xff] %v6198
        %6230 = vst [vmem:[%s6225 + $0x20] sm:$0xff] %v6204
        %6231 = vst [vmem:[%s6225 + $0x28] sm:$0xff] %v6210
        %6232 = vst [vmem:[%s6225 + $0x30] sm:$0xff] %v6216
        %6233 = vst [vmem:[%s6225 + $0x38] sm:$0xff] %v6222
        %s6234 = sand.u32 %s198, 1
        %s6235 = scalar_lea.sflag [#allocation4], %s6234
        %s6236 = sand.u32 %s198, 1
        %s6237 = smul.addr %s6236, 128
        %s6238 = scalar_lea.vmem [#allocation13], %s6237
        // Predicated region
        $region69: #{tpu_custom_call.1} parent=43 // pred_check
          %p6239 = pneg %p208
        $region70: #{tpu_custom_call.1} parent=43 // pred_check_branch
          %6241 = sbr.rel (%p6239) target = $region72
        $region71: #{tpu_custom_call.1} parent=43 // pred_region
          %s6242 = smul.u32 2, %s32
          %s6243 = smul.u32 8, %s33
          %s6245 = ssub.s32 2048, 2048
          %6246 = vsyncadd %s6235, %s6245
          %s6247 = smul.addr %s6242, 8
          %s6248 = sadd.s32 %s6243, %s6247
          %s6249 = smul.addr %s6248, 128
          %s6250 = scalar_lea.hbm %s6, %s6249
          %s6251 = sshll.u32 %s6238, 4
          %s6252 = int_to_ptr.vmem [resolvable:$true] %s6251
          %6257 = dma.vmem_to_hbm [thread:$0]  %s6252, 2048, %s6250, %s6235, 128, 128, 8
        $region72: #{tpu_custom_call.1} parent=43 // pred_fallthru
          _
      $region44: #{tpu_custom_call.1} parent=5 // pred_fallthru
        _
      %p6258 = scmp.le.s32.totalorder 2, %s23
      // Predicated region
      $region73: #{tpu_custom_call.1} parent=5 // pred_check
        %p6259 = pneg %p6258
      $region74: #{tpu_custom_call.1} parent=5 // pred_check_branch
        %6261 = sbr.rel (%p6259) target = $region76
      $region75: #{tpu_custom_call.1} parent=5 // pred_region
        %s6262 = ssub.s32 %s23, 2
        // Predicated region
        $region77: #{tpu_custom_call.1} parent=75 // pred_check
          %p6263 = pneg %p214
        $region78: #{tpu_custom_call.1} parent=75 // pred_check_branch
          %6265 = sbr.rel (%p6263) target = $region80
        $region79: #{tpu_custom_call.1} parent=75 // pred_region
          %s6266 = sand.u32 %s199, 1
          %s6267 = scalar_lea.sflag [#allocation4], %s6266
          %s6268 = sand.u32 %s199, 1
          %s6269 = smul.addr %s6268, 128
          %s6270 = scalar_lea.vmem [#allocation13], %s6269
          %6271 = dma.done %s6267, 2048
        $region80: #{tpu_custom_call.1} parent=75 // pred_fallthru
          _
      $region76: #{tpu_custom_call.1} parent=5 // pred_fallthru
        _
    $region6: #{tpu_custom_call.1} parent=1 // loop_footer
      %s27 = sadd.s32 1, %s23
    $region7: #{tpu_custom_call.1} parent=1 // loop_footer_branch
      %22 = sbr.rel target = $region3
    $region8: #{tpu_custom_call.1} parent=1 // loop_exit
      _
    %6272 = vsyncpa [#allocation3], 1
    %s6273 = scalar_lea.sflag [#allocation3], 1
    %6274 = vsyncpa %s6273, 1
    %6275 = vsyncpa [#allocation6], 1
    %s6276 = scalar_lea.sflag [#allocation6], 1
    %6277 = vsyncpa %s6276, 1
    %6278 = vsyncpa [#allocation9], 1
    %6279 = vsyncpa [#allocation12], 1
    %6280 = vsyncpa [#allocation4], 1
    %s6281 = scalar_lea.sflag [#allocation4], 1
    %6282 = vsyncpa %s6281, 1

</llo_original>
